<compile_context>
chip_gen: v6e
topology: v6e:2x2x1
jax: 0.10.0
libtpu: 0.0.40
codegen_flags: <defaults>
</compile_context>

<pallas_src>
import jax
import jax.numpy as jnp
from jax.experimental import pallas as pl
from jax.experimental.pallas import tpu as pltpu


# ---------------------------------------------------------------------------
# Fused kernel: per-level pooled sums -> concat -> f32 MXU matmul (bf16 w1 upcast)
#               -> exact GELU -> VPU mul + lane reduce -> (B, 1) f32
# ---------------------------------------------------------------------------
def _make_fused_kernel(n_levels):
    def kernel(*refs):
        x_refs = refs[:n_levels]
        w1_ref, bw_ref, b2_ref, o_ref = refs[n_levels:]

        # --- pooled SUMS per level (1/L_i folded into w1); lane-axis reduce (XLU) ---
        pooled = [jnp.sum(xr[...].astype(jnp.float32), axis=-1) for xr in x_refs]
        feat = jnp.concatenate(pooled, axis=-1)                # (B, C_total) f32

        # --- Linear 1 on the MXU in f32 (w1 stored bf16, upcast in-kernel) ---
        w1 = w1_ref[...].astype(jnp.float32)                   # (C_total, H)
        h = jnp.dot(feat, w1, preferred_element_type=jnp.float32)
        bw = bw_ref[...]                                       # (2, H): row0=b1, row1=w2^T
        h = h + bw[0:1, :]

        # exact GELU (torch nn.GELU default): 0.5*x*(1 + erf(x/sqrt(2)))
        h = 0.5 * h * (1.0 + jax.lax.erf(h * 0.7071067811865476))

        # --- Linear 2 (out_features = 1): VPU multiply + lane reduce, b2 from SMEM ---
        y = jnp.sum(h * bw[1:2, :], axis=-1, keepdims=True) + b2_ref[0, 0]
        o_ref[...] = y.astype(o_ref.dtype)

    return kernel


def _fused_head(xs, w1p, bw, b2):
    bsz = xs[0].shape[0]
    kernel = _make_fused_kernel(len(xs))

    in_specs = [pl.BlockSpec(x.shape, lambda i: (0, 0, 0)) for x in xs]
    in_specs += [
        pl.BlockSpec(w1p.shape, lambda i: (0, 0)),             # bf16 weight slab
        pl.BlockSpec(bw.shape, lambda i: (0, 0)),              # packed b1 / w2^T
        pl.BlockSpec(memory_space=pltpu.MemorySpace.SMEM),     # scalar b2
    ]
    return pl.pallas_call(
        kernel,
        out_shape=jax.ShapeDtypeStruct((bsz, 1), jnp.float32),
        grid=(1,),
        in_specs=in_specs,
        out_specs=pl.BlockSpec((bsz, 1), lambda i: (0, 0)),
        compiler_params=pltpu.CompilerParams(
            dimension_semantics=("arbitrary",)),
    )(*xs, w1p, bw, b2)


# ---------------------------------------------------------------------------
# Parameter preparation (offline): fold 1/L_i into w1 rows, bf16 w1,
# pack b1 and w2^T into one (2, H) slab, b2 stays a (1, 1) scalar for SMEM.
# ---------------------------------------------------------------------------
def prepare_params(raw, level_channels, level_lens):
    w1 = raw["w1"].astype(jnp.float32)                          # (D_in, H)
    inv = jnp.concatenate(
        [jnp.full((c,), 1.0 / float(l), jnp.float32)
         for c, l in zip(level_channels, level_lens)])          # (D_in,)
    return {
        "w1p": (w1 * inv[:, None]).astype(jnp.bfloat16),        # pre-scaled, bf16
        "bw": jnp.concatenate(
            [raw["b1"].reshape(1, -1), raw["w2"].reshape(1, -1)],
            axis=0).astype(jnp.float32),                        # (2, H)
        "b2": raw["b2"].reshape(1, 1).astype(jnp.float32),      # (1, 1) -> SMEM
        "level_lens": tuple(int(l) for l in level_lens),
    }


# ---------------------------------------------------------------------------
# Full forward: list of NCHW (or NCL) features -> one fused Pallas kernel.
# ---------------------------------------------------------------------------
def avgpool_regression_forward(outs, prepared):
    xs, lens = [], []
    for x in outs:
        if x.ndim == 4:
            b, c, h, w = x.shape
            x = x.reshape(b, c, h * w)                 # NCHW -> NCL (glue reshape only)
        lens.append(x.shape[-1])
        xs.append(x)                                   # keep (B, C, L); no transposes
    assert tuple(lens) == prepared["level_lens"], \
        "params were prepared for different spatial sizes"
    return _fused_head(xs, prepared["w1p"], prepared["bw"], prepared["b2"])


def init_params(key, d_in=256 * 4, hidden=512):
    k1, k2, k3, k4 = jax.random.split(key, 4)
    lim1 = 1.0 / jnp.sqrt(d_in)
    lim2 = 1.0 / jnp.sqrt(hidden)
    return {
        "w1": jax.random.uniform(k1, (d_in, hidden), jnp.float32, -lim1, lim1),
        "b1": jax.random.uniform(k2, (1, hidden), jnp.float32, -lim1, lim1),
        "w2": jax.random.uniform(k3, (hidden, 1), jnp.float32, -lim2, lim2),
        "b2": jax.random.uniform(k4, (1, 1), jnp.float32, -lim2, lim2),
    }


if __name__ == "__main__":
    key = jax.random.PRNGKey(0)
    kp, *kx = jax.random.split(key, 5)

    B, C = 2, 256
    spatial = [16, 8, 4, 2]     # 4 FPN levels (feature_num=4) -> L = 256, 64, 16, 4
    outs = [
        jax.random.normal(k, (B, C, s, s), jnp.float32)
        for k, s in zip(kx, spatial)
    ]

    raw = init_params(kp, d_in=C * len(spatial), hidden=512)
    prepared = prepare_params(raw,
                              level_channels=[C] * len(spatial),
                              level_lens=[s * s for s in spatial])

    y = avgpool_regression_forward(outs, prepared)
    y = jax.block_until_ready(y)

    # pure-JAX f32 reference; only remaining rounding source is bf16 w1 storage,
    # so tolerance tightens vs the previous double-quantized version.
    feats = jnp.concatenate(
        [jnp.mean(x.reshape(B, C, -1), axis=-1) for x in outs], axis=1)
    h = feats @ raw["w1"] + raw["b1"]
    h = jax.nn.gelu(h, approximate=False)
    y_ref = h @ raw["w2"] + raw["b2"]

    assert y.shape == (B, 1)
    assert y.dtype == jnp.float32
    assert jnp.allclose(y, y_ref, atol=1e-2, rtol=1e-2), (y, y_ref)

    print("KERNEL_OK")
</pallas_src>

<mosaic_0001>
module attributes {stable_mosaic.version = 11 : i64} {
  func.func @kernel(%arg0: i32, %arg1: memref<2x256x256xf32, #tpu.memory_space<vmem>>, %arg2: memref<2x256x64xf32, #tpu.memory_space<vmem>>, %arg3: memref<2x256x16xf32, #tpu.memory_space<vmem>>, %arg4: memref<2x256x4xf32, #tpu.memory_space<vmem>>, %arg5: memref<1024x512xbf16, #tpu.memory_space<vmem>>, %arg6: memref<2x512xf32, #tpu.memory_space<vmem>>, %arg7: memref<1x1xf32, #tpu.memory_space<smem>>, %arg8: memref<2x1xf32, #tpu.memory_space<vmem>>) attributes {dimension_semantics = [#tpu.dimension_semantics<arbitrary>], iteration_bounds = array<i64: 1>, scalar_prefetch = 0 : i64, scratch_operands = 0 : i64, tpu.core_type = #tpu.core_type<tc>, window_params = [{pipeline_mode = #tpu.pipeline_mode<synchronous>, transform_indices = @transform_0, window_bounds = array<i64: 2, 256, 256>}, {pipeline_mode = #tpu.pipeline_mode<synchronous>, transform_indices = @transform_1, window_bounds = array<i64: 2, 256, 64>}, {pipeline_mode = #tpu.pipeline_mode<synchronous>, transform_indices = @transform_2, window_bounds = array<i64: 2, 256, 16>}, {pipeline_mode = #tpu.pipeline_mode<synchronous>, transform_indices = @transform_3, window_bounds = array<i64: 2, 256, 4>}, {pipeline_mode = #tpu.pipeline_mode<synchronous>, transform_indices = @transform_4, window_bounds = array<i64: 1024, 512>}, {pipeline_mode = #tpu.pipeline_mode<synchronous>, transform_indices = @transform_5, window_bounds = array<i64: 2, 512>}, {transform_indices = @transform_6, window_bounds = array<i64: 1, 1>}, {pipeline_mode = #tpu.pipeline_mode<synchronous>, transform_indices = @transform_7, window_bounds = array<i64: 2, 1>}]} {
    %c0 = arith.constant 0 : index
    %c0_0 = arith.constant 0 : index
    %c0_1 = arith.constant 0 : index
    %0 = vector.load %arg1[%c0, %c0_0, %c0_1] : memref<2x256x256xf32, #tpu.memory_space<vmem>>, vector<2x256x256xf32>
    %cst = arith.constant dense<0.000000e+00> : vector<2x256xf32>
    %1 = vector.multi_reduction <add>, %0, %cst [2] : vector<2x256x256xf32> to vector<2x256xf32>
    %c0_2 = arith.constant 0 : index
    %c0_3 = arith.constant 0 : index
    %c0_4 = arith.constant 0 : index
    %2 = vector.load %arg2[%c0_2, %c0_3, %c0_4] : memref<2x256x64xf32, #tpu.memory_space<vmem>>, vector<2x256x64xf32>
    %cst_5 = arith.constant dense<0.000000e+00> : vector<2x256xf32>
    %3 = vector.multi_reduction <add>, %2, %cst_5 [2] : vector<2x256x64xf32> to vector<2x256xf32>
    %c0_6 = arith.constant 0 : index
    %c0_7 = arith.constant 0 : index
    %c0_8 = arith.constant 0 : index
    %4 = vector.load %arg3[%c0_6, %c0_7, %c0_8] : memref<2x256x16xf32, #tpu.memory_space<vmem>>, vector<2x256x16xf32>
    %cst_9 = arith.constant dense<0.000000e+00> : vector<2x256xf32>
    %5 = vector.multi_reduction <add>, %4, %cst_9 [2] : vector<2x256x16xf32> to vector<2x256xf32>
    %c0_10 = arith.constant 0 : index
    %c0_11 = arith.constant 0 : index
    %c0_12 = arith.constant 0 : index
    %6 = vector.load %arg4[%c0_10, %c0_11, %c0_12] : memref<2x256x4xf32, #tpu.memory_space<vmem>>, vector<2x256x4xf32>
    %cst_13 = arith.constant dense<0.000000e+00> : vector<2x256xf32>
    %7 = vector.multi_reduction <add>, %6, %cst_13 [2] : vector<2x256x4xf32> to vector<2x256xf32>
    %8 = tpu.concatenate %1, %3, %5, %7 in 1 : vector<2x256xf32>, vector<2x256xf32>, vector<2x256xf32>, vector<2x256xf32> -> vector<2x1024xf32>
    %c0_14 = arith.constant 0 : index
    %c0_15 = arith.constant 0 : index
    %9 = vector.load %arg5[%c0_14, %c0_15] : memref<1024x512xbf16, #tpu.memory_space<vmem>>, vector<1024x512xbf16>
    %10 = arith.extf %9 : vector<1024x512xbf16> to vector<1024x512xf32>
    %cst_16 = arith.constant dense<0.000000e+00> : vector<2x512xf32>
    %11 = tpu.matmul %8, %10, %cst_16 {dimension_numbers = #tpu.dot_dimension_numbers<[1], [0], [0], [1], [0, 0, 1, 1], [], []>} : vector<2x1024xf32>, vector<1024x512xf32>, vector<2x512xf32> -> vector<2x512xf32>
    %c0_17 = arith.constant 0 : index
    %c0_18 = arith.constant 0 : index
    %12 = vector.load %arg6[%c0_17, %c0_18] : memref<2x512xf32, #tpu.memory_space<vmem>>, vector<2x512xf32>
    %13 = vector.extract_strided_slice %12 {offsets = [0, 0], sizes = [1, 512], strides = [1, 1]} : vector<2x512xf32> to vector<1x512xf32>
    %14 = vector.broadcast %13 : vector<1x512xf32> to vector<2x512xf32>
    %15 = arith.addf %11, %14 : vector<2x512xf32>
    %cst_19 = arith.constant 5.000000e-01 : f32
    %16 = vector.broadcast %cst_19 : f32 to vector<2x512xf32>
    %17 = arith.mulf %16, %15 : vector<2x512xf32>
    %cst_20 = arith.constant 0.707106769 : f32
    %18 = vector.broadcast %cst_20 : f32 to vector<2x512xf32>
    %19 = arith.mulf %15, %18 : vector<2x512xf32>
    %20 = math.erf %19 : vector<2x512xf32>
    %cst_21 = arith.constant 1.000000e+00 : f32
    %21 = vector.broadcast %cst_21 : f32 to vector<2x512xf32>
    %22 = arith.addf %21, %20 : vector<2x512xf32>
    %23 = arith.mulf %17, %22 : vector<2x512xf32>
    %24 = vector.extract_strided_slice %12 {offsets = [1, 0], sizes = [1, 512], strides = [1, 1]} : vector<2x512xf32> to vector<1x512xf32>
    %25 = vector.broadcast %24 : vector<1x512xf32> to vector<2x512xf32>
    %26 = arith.mulf %23, %25 : vector<2x512xf32>
    %cst_22 = arith.constant dense<0.000000e+00> : vector<2xf32>
    %27 = vector.multi_reduction <add>, %26, %cst_22 [1] : vector<2x512xf32> to vector<2xf32>
    %28 = vector.shape_cast %27 : vector<2xf32> to vector<2x1xf32>
    %c0_23 = arith.constant 0 : index
    %c0_24 = arith.constant 0 : index
    %29 = memref.load %arg7[%c0_23, %c0_24] : memref<1x1xf32, #tpu.memory_space<smem>>
    %30 = vector.broadcast %29 : f32 to vector<2x1xf32>
    %31 = arith.addf %28, %30 : vector<2x1xf32>
    %c0_25 = arith.constant 0 : index
    %c0_26 = arith.constant 0 : index
    %32 = vector.load %arg8[%c0_25, %c0_26] : memref<2x1xf32, #tpu.memory_space<vmem>>, vector<2x1xf32>
    tpu.vector_store %arg8[%c0_25, %c0_26], %31 {strides = array<i32>} : memref<2x1xf32, #tpu.memory_space<vmem>>, vector<2x1xf32>,
    return
  }
  func.func @transform_0(%arg0: i32) -> (i32, i32, i32) {
    %c0_i32 = arith.constant 0 : i32
    %c0_i32_0 = arith.constant 0 : i32
    %c0_i32_1 = arith.constant 0 : i32
    %c0_i32_2 = arith.constant 0 : i32
    return %c0_i32, %c0_i32_0, %c0_i32_1 : i32, i32, i32
  }
  func.func @transform_1(%arg0: i32) -> (i32, i32, i32) {
    %c0_i32 = arith.constant 0 : i32
    %c0_i32_0 = arith.constant 0 : i32
    %c0_i32_1 = arith.constant 0 : i32
    %c0_i32_2 = arith.constant 0 : i32
    return %c0_i32, %c0_i32_0, %c0_i32_1 : i32, i32, i32
  }
  func.func @transform_2(%arg0: i32) -> (i32, i32, i32) {
    %c0_i32 = arith.constant 0 : i32
    %c0_i32_0 = arith.constant 0 : i32
    %c0_i32_1 = arith.constant 0 : i32
    %c0_i32_2 = arith.constant 0 : i32
    return %c0_i32, %c0_i32_0, %c0_i32_1 : i32, i32, i32
  }
  func.func @transform_3(%arg0: i32) -> (i32, i32, i32) {
    %c0_i32 = arith.constant 0 : i32
    %c0_i32_0 = arith.constant 0 : i32
    %c0_i32_1 = arith.constant 0 : i32
    %c0_i32_2 = arith.constant 0 : i32
    return %c0_i32, %c0_i32_0, %c0_i32_1 : i32, i32, i32
  }
  func.func @transform_4(%arg0: i32) -> (i32, i32) {
    %c0_i32 = arith.constant 0 : i32
    %c0_i32_0 = arith.constant 0 : i32
    %c0_i32_1 = arith.constant 0 : i32
    return %c0_i32, %c0_i32_0 : i32, i32
  }
  func.func @transform_5(%arg0: i32) -> (i32, i32) {
    %c0_i32 = arith.constant 0 : i32
    %c0_i32_0 = arith.constant 0 : i32
    %c0_i32_1 = arith.constant 0 : i32
    return %c0_i32, %c0_i32_0 : i32, i32
  }
  func.func @transform_6(%arg0: i32) -> (i32, i32) {
    %c0_i32 = arith.constant 0 : i32
    %c0_i32_0 = arith.constant 0 : i32
    %c0_i32_1 = arith.constant 0 : i32
    return %c0_i32, %c0_i32_0 : i32, i32
  }
  func.func @transform_7(%arg0: i32) -> (i32, i32) {
    %c0_i32 = arith.constant 0 : i32
    %c0_i32_0 = arith.constant 0 : i32
    %c0_i32_1 = arith.constant 0 : i32
    return %c0_i32, %c0_i32_0 : i32, i32
  }
}

</mosaic_0001>

<llo_original>
// kernel: tpu_custom_call.1
$region0: #{tpu_custom_call.1}
  #allocation0 [shape = 'u32[]', space=smem, size = 0x4, offset = 0x4, fixed_abs, tag = 'smem constant byte address 0x4 - core index']
  #allocation1 [shape = 'u32[144,128]{1,0:T(1,128)}', space=vmem, size = 0x12000, scoped, tag = 'internal scratch']
  #allocation2 [shape = 'f32[1,1]{1,0:T(1,128)S(6)}', space=smem, size = 0x200, scoped, tag = 'scoped memory for tpu_custom_call.1']
  %s0 = inlined_call_operand.vmem [shape: f32[2,256,256], index: 0, kind: input, shape index: {}]
  %s1 = inlined_call_operand.vmem [shape: f32[2,256,64], index: 1, kind: input, shape index: {}]
  %s2 = inlined_call_operand.vmem [shape: f32[2,256,16], index: 2, kind: input, shape index: {}]
  %s3 = inlined_call_operand.vmem [shape: f32[2,256,4], index: 3, kind: input, shape index: {}]
  %s4 = inlined_call_operand.hbm [shape: bf16[1024,512], index: 4, kind: input, shape index: {}]
  %s5 = inlined_call_operand.vmem [shape: f32[2,512], index: 5, kind: input, shape index: {}]
  %s6 = inlined_call_operand.<no memory space> [shape: f32[1,1], index: 6, kind: input, shape index: {}]
  %s7 = inlined_call_operand.vmem [shape: f32[2,1], index: 7, kind: output, shape index: {}]
  %s8 = sld [smem:[#allocation0]]
  $region42: #{tpu_custom_call.1} parent=0
    _
  %s10 = ssub.s32 1, %s8
  %s11 = scalar_select 0, %s10, %s8
  %12 = sst [smem:[#allocation2]] %s6
  $region1: #{tpu_custom_call.1} parent=0
    #allocation3 [shape = 'u8[1048576]{0}', space=vmem, size = 0x100000, scoped, tag = 'input window, operand 4, single buffered']
    #allocation4 [shape = 's32[1]{0}', space=sflag, size = 0x4, scoped, tag = 'scoped memory for tpu_custom_call.1']
    %13 = vsyncpa [#allocation4], 0
    // Predicated region
    $region2: #{tpu_custom_call.1} parent=1 // pred_check
      _
    $region3: #{tpu_custom_call.1} parent=1 // pred_check_branch
      %15 = sbr.rel (0) target = $region5
    $region4: #{tpu_custom_call.1} parent=1 // pred_region
      _
    $region5: #{tpu_custom_call.1} parent=1 // pred_fallthru
      _
    // Predicated region
    $region6: #{tpu_custom_call.1} parent=1 // pred_check
      _
    $region7: #{tpu_custom_call.1} parent=1 // pred_check_branch
      %17 = sbr.rel (0) target = $region9
    $region8: #{tpu_custom_call.1} parent=1 // pred_region
      _
    $region9: #{tpu_custom_call.1} parent=1 // pred_fallthru
      _
    // Predicated region
    $region10: #{tpu_custom_call.1} parent=1 // pred_check
      _
    $region11: #{tpu_custom_call.1} parent=1 // pred_check_branch
      %19 = sbr.rel (0) target = $region13
    $region12: #{tpu_custom_call.1} parent=1 // pred_region
      _
    $region13: #{tpu_custom_call.1} parent=1 // pred_fallthru
      _
    // Predicated region
    $region14: #{tpu_custom_call.1} parent=1 // pred_check
      _
    $region15: #{tpu_custom_call.1} parent=1 // pred_check_branch
      %21 = sbr.rel (0) target = $region17
    $region16: #{tpu_custom_call.1} parent=1 // pred_region
      _
    $region17: #{tpu_custom_call.1} parent=1 // pred_fallthru
      _
    // Predicated region
    $region18: #{tpu_custom_call.1} parent=1 // pred_check
      _
    $region19: #{tpu_custom_call.1} parent=1 // pred_check_branch
      %23 = sbr.rel (0) target = $region21
    $region20: #{tpu_custom_call.1} parent=1 // pred_region
      %s25 = ssub.s32 32768, 32768
      %26 = vsyncadd [#allocation4], %s25
      %s27 = sshll.u32 [#allocation3], 4
      %s28 = int_to_ptr.vmem [resolvable:$true] %s27
      %33 = dma.hbm_to_vmem [thread:$0]  %s4, 32768, %s28, [#allocation4], 256, 256, 16
    $region21: #{tpu_custom_call.1} parent=1 // pred_fallthru
      _
    // Predicated region
    $region22: #{tpu_custom_call.1} parent=1 // pred_check
      _
    $region23: #{tpu_custom_call.1} parent=1 // pred_check_branch
      %35 = sbr.rel (0) target = $region25
    $region24: #{tpu_custom_call.1} parent=1 // pred_region
      _
    $region25: #{tpu_custom_call.1} parent=1 // pred_fallthru
      _
    // Predicated region
    $region26: #{tpu_custom_call.1} parent=1 // pred_check
      _
    $region27: #{tpu_custom_call.1} parent=1 // pred_check_branch
      %37 = sbr.rel (0) target = $region29
    $region28: #{tpu_custom_call.1} parent=1 // pred_region
      _
    $region29: #{tpu_custom_call.1} parent=1 // pred_fallthru
      _
    // Predicated region
    $region30: #{tpu_custom_call.1} parent=1 // pred_check
      _
    $region31: #{tpu_custom_call.1} parent=1 // pred_check_branch
      %39 = sbr.rel (0) target = $region33
    $region32: #{tpu_custom_call.1} parent=1 // pred_region
      %40 = dma.done [#allocation4], 32768
    $region33: #{tpu_custom_call.1} parent=1 // pred_fallthru
      _
    %v41 = vld [vmem:[%s0] sm:$0xff]
    %v42 = vld [vmem:[%s0 + $0x8] sm:$0xff]
    %v43 = vld [vmem:[%s0 + $0x10] sm:$0xff]
    %v44 = vld [vmem:[%s0 + $0x18] sm:$0xff]
    %v45 = vld [vmem:[%s0 + $0x20] sm:$0xff]
    %v46 = vld [vmem:[%s0 + $0x28] sm:$0xff]
    %v47 = vld [vmem:[%s0 + $0x30] sm:$0xff]
    %v48 = vld [vmem:[%s0 + $0x38] sm:$0xff]
    %v49 = vld [vmem:[%s0 + $0x40] sm:$0xff]
    %v50 = vld [vmem:[%s0 + $0x48] sm:$0xff]
    %v51 = vld [vmem:[%s0 + $0x50] sm:$0xff]
    %v52 = vld [vmem:[%s0 + $0x58] sm:$0xff]
    %v53 = vld [vmem:[%s0 + $0x60] sm:$0xff]
    %v54 = vld [vmem:[%s0 + $0x68] sm:$0xff]
    %v55 = vld [vmem:[%s0 + $0x70] sm:$0xff]
    %v56 = vld [vmem:[%s0 + $0x78] sm:$0xff]
    %v57 = vld [vmem:[%s0 + $0x80] sm:$0xff]
    %v58 = vld [vmem:[%s0 + $0x88] sm:$0xff]
    %v59 = vld [vmem:[%s0 + $0x90] sm:$0xff]
    %v60 = vld [vmem:[%s0 + $0x98] sm:$0xff]
    %v61 = vld [vmem:[%s0 + $0xa0] sm:$0xff]
    %v62 = vld [vmem:[%s0 + $0xa8] sm:$0xff]
    %v63 = vld [vmem:[%s0 + $0xb0] sm:$0xff]
    %v64 = vld [vmem:[%s0 + $0xb8] sm:$0xff]
    %v65 = vld [vmem:[%s0 + $0xc0] sm:$0xff]
    %v66 = vld [vmem:[%s0 + $0xc8] sm:$0xff]
    %v67 = vld [vmem:[%s0 + $0xd0] sm:$0xff]
    %v68 = vld [vmem:[%s0 + $0xd8] sm:$0xff]
    %v69 = vld [vmem:[%s0 + $0xe0] sm:$0xff]
    %v70 = vld [vmem:[%s0 + $0xe8] sm:$0xff]
    %v71 = vld [vmem:[%s0 + $0xf0] sm:$0xff]
    %v72 = vld [vmem:[%s0 + $0xf8] sm:$0xff]
    %v73 = vld [vmem:[%s0 + $0x100] sm:$0xff]
    %v74 = vld [vmem:[%s0 + $0x108] sm:$0xff]
    %v75 = vld [vmem:[%s0 + $0x110] sm:$0xff]
    %v76 = vld [vmem:[%s0 + $0x118] sm:$0xff]
    %v77 = vld [vmem:[%s0 + $0x120] sm:$0xff]
    %v78 = vld [vmem:[%s0 + $0x128] sm:$0xff]
    %v79 = vld [vmem:[%s0 + $0x130] sm:$0xff]
    %v80 = vld [vmem:[%s0 + $0x138] sm:$0xff]
    %v81 = vld [vmem:[%s0 + $0x140] sm:$0xff]
    %v82 = vld [vmem:[%s0 + $0x148] sm:$0xff]
    %v83 = vld [vmem:[%s0 + $0x150] sm:$0xff]
    %v84 = vld [vmem:[%s0 + $0x158] sm:$0xff]
    %v85 = vld [vmem:[%s0 + $0x160] sm:$0xff]
    %v86 = vld [vmem:[%s0 + $0x168] sm:$0xff]
    %v87 = vld [vmem:[%s0 + $0x170] sm:$0xff]
    %v88 = vld [vmem:[%s0 + $0x178] sm:$0xff]
    %v89 = vld [vmem:[%s0 + $0x180] sm:$0xff]
    %v90 = vld [vmem:[%s0 + $0x188] sm:$0xff]
    %v91 = vld [vmem:[%s0 + $0x190] sm:$0xff]
    %v92 = vld [vmem:[%s0 + $0x198] sm:$0xff]
    %v93 = vld [vmem:[%s0 + $0x1a0] sm:$0xff]
    %v94 = vld [vmem:[%s0 + $0x1a8] sm:$0xff]
    %v95 = vld [vmem:[%s0 + $0x1b0] sm:$0xff]
    %v96 = vld [vmem:[%s0 + $0x1b8] sm:$0xff]
    %v97 = vld [vmem:[%s0 + $0x1c0] sm:$0xff]
    %v98 = vld [vmem:[%s0 + $0x1c8] sm:$0xff]
    %v99 = vld [vmem:[%s0 + $0x1d0] sm:$0xff]
    %v100 = vld [vmem:[%s0 + $0x1d8] sm:$0xff]
    %v101 = vld [vmem:[%s0 + $0x1e0] sm:$0xff]
    %v102 = vld [vmem:[%s0 + $0x1e8] sm:$0xff]
    %v103 = vld [vmem:[%s0 + $0x1f0] sm:$0xff]
    %v104 = vld [vmem:[%s0 + $0x1f8] sm:$0xff]
    %v105 = vld [vmem:[%s0 + $0x200] sm:$0xff]
    %v106 = vld [vmem:[%s0 + $0x208] sm:$0xff]
    %v107 = vld [vmem:[%s0 + $0x210] sm:$0xff]
    %v108 = vld [vmem:[%s0 + $0x218] sm:$0xff]
    %v109 = vld [vmem:[%s0 + $0x220] sm:$0xff]
    %v110 = vld [vmem:[%s0 + $0x228] sm:$0xff]
    %v111 = vld [vmem:[%s0 + $0x230] sm:$0xff]
    %v112 = vld [vmem:[%s0 + $0x238] sm:$0xff]
    %v113 = vld [vmem:[%s0 + $0x240] sm:$0xff]
    %v114 = vld [vmem:[%s0 + $0x248] sm:$0xff]
    %v115 = vld [vmem:[%s0 + $0x250] sm:$0xff]
    %v116 = vld [vmem:[%s0 + $0x258] sm:$0xff]
    %v117 = vld [vmem:[%s0 + $0x260] sm:$0xff]
    %v118 = vld [vmem:[%s0 + $0x268] sm:$0xff]
    %v119 = vld [vmem:[%s0 + $0x270] sm:$0xff]
    %v120 = vld [vmem:[%s0 + $0x278] sm:$0xff]
    %v121 = vld [vmem:[%s0 + $0x280] sm:$0xff]
    %v122 = vld [vmem:[%s0 + $0x288] sm:$0xff]
    %v123 = vld [vmem:[%s0 + $0x290] sm:$0xff]
    %v124 = vld [vmem:[%s0 + $0x298] sm:$0xff]
    %v125 = vld [vmem:[%s0 + $0x2a0] sm:$0xff]
    %v126 = vld [vmem:[%s0 + $0x2a8] sm:$0xff]
    %v127 = vld [vmem:[%s0 + $0x2b0] sm:$0xff]
    %v128 = vld [vmem:[%s0 + $0x2b8] sm:$0xff]
    %v129 = vld [vmem:[%s0 + $0x2c0] sm:$0xff]
    %v130 = vld [vmem:[%s0 + $0x2c8] sm:$0xff]
    %v131 = vld [vmem:[%s0 + $0x2d0] sm:$0xff]
    %v132 = vld [vmem:[%s0 + $0x2d8] sm:$0xff]
    %v133 = vld [vmem:[%s0 + $0x2e0] sm:$0xff]
    %v134 = vld [vmem:[%s0 + $0x2e8] sm:$0xff]
    %v135 = vld [vmem:[%s0 + $0x2f0] sm:$0xff]
    %v136 = vld [vmem:[%s0 + $0x2f8] sm:$0xff]
    %v137 = vld [vmem:[%s0 + $0x300] sm:$0xff]
    %v138 = vld [vmem:[%s0 + $0x308] sm:$0xff]
    %v139 = vld [vmem:[%s0 + $0x310] sm:$0xff]
    %v140 = vld [vmem:[%s0 + $0x318] sm:$0xff]
    %v141 = vld [vmem:[%s0 + $0x320] sm:$0xff]
    %v142 = vld [vmem:[%s0 + $0x328] sm:$0xff]
    %v143 = vld [vmem:[%s0 + $0x330] sm:$0xff]
    %v144 = vld [vmem:[%s0 + $0x338] sm:$0xff]
    %v145 = vld [vmem:[%s0 + $0x340] sm:$0xff]
    %v146 = vld [vmem:[%s0 + $0x348] sm:$0xff]
    %v147 = vld [vmem:[%s0 + $0x350] sm:$0xff]
    %v148 = vld [vmem:[%s0 + $0x358] sm:$0xff]
    %v149 = vld [vmem:[%s0 + $0x360] sm:$0xff]
    %v150 = vld [vmem:[%s0 + $0x368] sm:$0xff]
    %v151 = vld [vmem:[%s0 + $0x370] sm:$0xff]
    %v152 = vld [vmem:[%s0 + $0x378] sm:$0xff]
    %v153 = vld [vmem:[%s0 + $0x380] sm:$0xff]
    %v154 = vld [vmem:[%s0 + $0x388] sm:$0xff]
    %v155 = vld [vmem:[%s0 + $0x390] sm:$0xff]
    %v156 = vld [vmem:[%s0 + $0x398] sm:$0xff]
    %v157 = vld [vmem:[%s0 + $0x3a0] sm:$0xff]
    %v158 = vld [vmem:[%s0 + $0x3a8] sm:$0xff]
    %v159 = vld [vmem:[%s0 + $0x3b0] sm:$0xff]
    %v160 = vld [vmem:[%s0 + $0x3b8] sm:$0xff]
    %v161 = vld [vmem:[%s0 + $0x3c0] sm:$0xff]
    %v162 = vld [vmem:[%s0 + $0x3c8] sm:$0xff]
    %v163 = vld [vmem:[%s0 + $0x3d0] sm:$0xff]
    %v164 = vld [vmem:[%s0 + $0x3d8] sm:$0xff]
    %v165 = vld [vmem:[%s0 + $0x3e0] sm:$0xff]
    %v166 = vld [vmem:[%s0 + $0x3e8] sm:$0xff]
    %v167 = vld [vmem:[%s0 + $0x3f0] sm:$0xff]
    %v168 = vld [vmem:[%s0 + $0x3f8] sm:$0xff]
    %v169 = vadd.f32 %v41, %v42
    %170 = vadd.xlane.f32.xlu0 %v169
    %v171 = vpop.xlane.xlu0 %170
    %v172 = vadd.f32 %v43, %v44
    %173 = vadd.xlane.f32.xlu0 %v172
    %v174 = vpop.xlane.xlu0 %173
    %v175 = vadd.f32 %v45, %v46
    %176 = vadd.xlane.f32.xlu0 %v175
    %v177 = vpop.xlane.xlu0 %176
    %v178 = vadd.f32 %v47, %v48
    %179 = vadd.xlane.f32.xlu0 %v178
    %v180 = vpop.xlane.xlu0 %179
    %v181 = vadd.f32 %v49, %v50
    %182 = vadd.xlane.f32.xlu0 %v181
    %v183 = vpop.xlane.xlu0 %182
    %v184 = vadd.f32 %v51, %v52
    %185 = vadd.xlane.f32.xlu0 %v184
    %v186 = vpop.xlane.xlu0 %185
    %v187 = vadd.f32 %v53, %v54
    %188 = vadd.xlane.f32.xlu0 %v187
    %v189 = vpop.xlane.xlu0 %188
    %v190 = vadd.f32 %v55, %v56
    %191 = vadd.xlane.f32.xlu0 %v190
    %v192 = vpop.xlane.xlu0 %191
    %v193 = vadd.f32 %v57, %v58
    %194 = vadd.xlane.f32.xlu0 %v193
    %v195 = vpop.xlane.xlu0 %194
    %v196 = vadd.f32 %v59, %v60
    %197 = vadd.xlane.f32.xlu0 %v196
    %v198 = vpop.xlane.xlu0 %197
    %v199 = vadd.f32 %v61, %v62
    %200 = vadd.xlane.f32.xlu0 %v199
    %v201 = vpop.xlane.xlu0 %200
    %v202 = vadd.f32 %v63, %v64
    %203 = vadd.xlane.f32.xlu0 %v202
    %v204 = vpop.xlane.xlu0 %203
    %v205 = vadd.f32 %v65, %v66
    %206 = vadd.xlane.f32.xlu0 %v205
    %v207 = vpop.xlane.xlu0 %206
    %v208 = vadd.f32 %v67, %v68
    %209 = vadd.xlane.f32.xlu0 %v208
    %v210 = vpop.xlane.xlu0 %209
    %v211 = vadd.f32 %v69, %v70
    %212 = vadd.xlane.f32.xlu0 %v211
    %v213 = vpop.xlane.xlu0 %212
    %v214 = vadd.f32 %v71, %v72
    %215 = vadd.xlane.f32.xlu0 %v214
    %v216 = vpop.xlane.xlu0 %215
    %v217 = vadd.f32 %v73, %v74
    %218 = vadd.xlane.f32.xlu0 %v217
    %v219 = vpop.xlane.xlu0 %218
    %v220 = vadd.f32 %v75, %v76
    %221 = vadd.xlane.f32.xlu0 %v220
    %v222 = vpop.xlane.xlu0 %221
    %v223 = vadd.f32 %v77, %v78
    %224 = vadd.xlane.f32.xlu0 %v223
    %v225 = vpop.xlane.xlu0 %224
    %v226 = vadd.f32 %v79, %v80
    %227 = vadd.xlane.f32.xlu0 %v226
    %v228 = vpop.xlane.xlu0 %227
    %v229 = vadd.f32 %v81, %v82
    %230 = vadd.xlane.f32.xlu0 %v229
    %v231 = vpop.xlane.xlu0 %230
    %v232 = vadd.f32 %v83, %v84
    %233 = vadd.xlane.f32.xlu0 %v232
    %v234 = vpop.xlane.xlu0 %233
    %v235 = vadd.f32 %v85, %v86
    %236 = vadd.xlane.f32.xlu0 %v235
    %v237 = vpop.xlane.xlu0 %236
    %v238 = vadd.f32 %v87, %v88
    %239 = vadd.xlane.f32.xlu0 %v238
    %v240 = vpop.xlane.xlu0 %239
    %v241 = vadd.f32 %v89, %v90
    %242 = vadd.xlane.f32.xlu0 %v241
    %v243 = vpop.xlane.xlu0 %242
    %v244 = vadd.f32 %v91, %v92
    %245 = vadd.xlane.f32.xlu0 %v244
    %v246 = vpop.xlane.xlu0 %245
    %v247 = vadd.f32 %v93, %v94
    %248 = vadd.xlane.f32.xlu0 %v247
    %v249 = vpop.xlane.xlu0 %248
    %v250 = vadd.f32 %v95, %v96
    %251 = vadd.xlane.f32.xlu0 %v250
    %v252 = vpop.xlane.xlu0 %251
    %v253 = vadd.f32 %v97, %v98
    %254 = vadd.xlane.f32.xlu0 %v253
    %v255 = vpop.xlane.xlu0 %254
    %v256 = vadd.f32 %v99, %v100
    %257 = vadd.xlane.f32.xlu0 %v256
    %v258 = vpop.xlane.xlu0 %257
    %v259 = vadd.f32 %v101, %v102
    %260 = vadd.xlane.f32.xlu0 %v259
    %v261 = vpop.xlane.xlu0 %260
    %v262 = vadd.f32 %v103, %v104
    %263 = vadd.xlane.f32.xlu0 %v262
    %v264 = vpop.xlane.xlu0 %263
    %v265 = vadd.f32 %v105, %v106
    %266 = vadd.xlane.f32.xlu0 %v265
    %v267 = vpop.xlane.xlu0 %266
    %v268 = vadd.f32 %v107, %v108
    %269 = vadd.xlane.f32.xlu0 %v268
    %v270 = vpop.xlane.xlu0 %269
    %v271 = vadd.f32 %v109, %v110
    %272 = vadd.xlane.f32.xlu0 %v271
    %v273 = vpop.xlane.xlu0 %272
    %v274 = vadd.f32 %v111, %v112
    %275 = vadd.xlane.f32.xlu0 %v274
    %v276 = vpop.xlane.xlu0 %275
    %v277 = vadd.f32 %v113, %v114
    %278 = vadd.xlane.f32.xlu0 %v277
    %v279 = vpop.xlane.xlu0 %278
    %v280 = vadd.f32 %v115, %v116
    %281 = vadd.xlane.f32.xlu0 %v280
    %v282 = vpop.xlane.xlu0 %281
    %v283 = vadd.f32 %v117, %v118
    %284 = vadd.xlane.f32.xlu0 %v283
    %v285 = vpop.xlane.xlu0 %284
    %v286 = vadd.f32 %v119, %v120
    %287 = vadd.xlane.f32.xlu0 %v286
    %v288 = vpop.xlane.xlu0 %287
    %v289 = vadd.f32 %v121, %v122
    %290 = vadd.xlane.f32.xlu0 %v289
    %v291 = vpop.xlane.xlu0 %290
    %v292 = vadd.f32 %v123, %v124
    %293 = vadd.xlane.f32.xlu0 %v292
    %v294 = vpop.xlane.xlu0 %293
    %v295 = vadd.f32 %v125, %v126
    %296 = vadd.xlane.f32.xlu0 %v295
    %v297 = vpop.xlane.xlu0 %296
    %v298 = vadd.f32 %v127, %v128
    %299 = vadd.xlane.f32.xlu0 %v298
    %v300 = vpop.xlane.xlu0 %299
    %v301 = vadd.f32 %v129, %v130
    %302 = vadd.xlane.f32.xlu0 %v301
    %v303 = vpop.xlane.xlu0 %302
    %v304 = vadd.f32 %v131, %v132
    %305 = vadd.xlane.f32.xlu0 %v304
    %v306 = vpop.xlane.xlu0 %305
    %v307 = vadd.f32 %v133, %v134
    %308 = vadd.xlane.f32.xlu0 %v307
    %v309 = vpop.xlane.xlu0 %308
    %v310 = vadd.f32 %v135, %v136
    %311 = vadd.xlane.f32.xlu0 %v310
    %v312 = vpop.xlane.xlu0 %311
    %v313 = vadd.f32 %v137, %v138
    %314 = vadd.xlane.f32.xlu0 %v313
    %v315 = vpop.xlane.xlu0 %314
    %v316 = vadd.f32 %v139, %v140
    %317 = vadd.xlane.f32.xlu0 %v316
    %v318 = vpop.xlane.xlu0 %317
    %v319 = vadd.f32 %v141, %v142
    %320 = vadd.xlane.f32.xlu0 %v319
    %v321 = vpop.xlane.xlu0 %320
    %v322 = vadd.f32 %v143, %v144
    %323 = vadd.xlane.f32.xlu0 %v322
    %v324 = vpop.xlane.xlu0 %323
    %v325 = vadd.f32 %v145, %v146
    %326 = vadd.xlane.f32.xlu0 %v325
    %v327 = vpop.xlane.xlu0 %326
    %v328 = vadd.f32 %v147, %v148
    %329 = vadd.xlane.f32.xlu0 %v328
    %v330 = vpop.xlane.xlu0 %329
    %v331 = vadd.f32 %v149, %v150
    %332 = vadd.xlane.f32.xlu0 %v331
    %v333 = vpop.xlane.xlu0 %332
    %v334 = vadd.f32 %v151, %v152
    %335 = vadd.xlane.f32.xlu0 %v334
    %v336 = vpop.xlane.xlu0 %335
    %v337 = vadd.f32 %v153, %v154
    %338 = vadd.xlane.f32.xlu0 %v337
    %v339 = vpop.xlane.xlu0 %338
    %v340 = vadd.f32 %v155, %v156
    %341 = vadd.xlane.f32.xlu0 %v340
    %v342 = vpop.xlane.xlu0 %341
    %v343 = vadd.f32 %v157, %v158
    %344 = vadd.xlane.f32.xlu0 %v343
    %v345 = vpop.xlane.xlu0 %344
    %v346 = vadd.f32 %v159, %v160
    %347 = vadd.xlane.f32.xlu0 %v346
    %v348 = vpop.xlane.xlu0 %347
    %v349 = vadd.f32 %v161, %v162
    %350 = vadd.xlane.f32.xlu0 %v349
    %v351 = vpop.xlane.xlu0 %350
    %v352 = vadd.f32 %v163, %v164
    %353 = vadd.xlane.f32.xlu0 %v352
    %v354 = vpop.xlane.xlu0 %353
    %v355 = vadd.f32 %v165, %v166
    %356 = vadd.xlane.f32.xlu0 %v355
    %v357 = vpop.xlane.xlu0 %356
    %v358 = vadd.f32 %v167, %v168
    %359 = vadd.xlane.f32.xlu0 %v358
    %v360 = vpop.xlane.xlu0 %359
    %v361 = vld [vmem:[%s1] sm:$0xff]
    %v362 = vld [vmem:[%s1 + $0x8] sm:$0xff]
    %v363 = vld [vmem:[%s1 + $0x10] sm:$0xff]
    %v364 = vld [vmem:[%s1 + $0x18] sm:$0xff]
    %v365 = vld [vmem:[%s1 + $0x20] sm:$0xff]
    %v366 = vld [vmem:[%s1 + $0x28] sm:$0xff]
    %v367 = vld [vmem:[%s1 + $0x30] sm:$0xff]
    %v368 = vld [vmem:[%s1 + $0x38] sm:$0xff]
    %v369 = vld [vmem:[%s1 + $0x40] sm:$0xff]
    %v370 = vld [vmem:[%s1 + $0x48] sm:$0xff]
    %v371 = vld [vmem:[%s1 + $0x50] sm:$0xff]
    %v372 = vld [vmem:[%s1 + $0x58] sm:$0xff]
    %v373 = vld [vmem:[%s1 + $0x60] sm:$0xff]
    %v374 = vld [vmem:[%s1 + $0x68] sm:$0xff]
    %v375 = vld [vmem:[%s1 + $0x70] sm:$0xff]
    %v376 = vld [vmem:[%s1 + $0x78] sm:$0xff]
    %v377 = vld [vmem:[%s1 + $0x80] sm:$0xff]
    %v378 = vld [vmem:[%s1 + $0x88] sm:$0xff]
    %v379 = vld [vmem:[%s1 + $0x90] sm:$0xff]
    %v380 = vld [vmem:[%s1 + $0x98] sm:$0xff]
    %v381 = vld [vmem:[%s1 + $0xa0] sm:$0xff]
    %v382 = vld [vmem:[%s1 + $0xa8] sm:$0xff]
    %v383 = vld [vmem:[%s1 + $0xb0] sm:$0xff]
    %v384 = vld [vmem:[%s1 + $0xb8] sm:$0xff]
    %v385 = vld [vmem:[%s1 + $0xc0] sm:$0xff]
    %v386 = vld [vmem:[%s1 + $0xc8] sm:$0xff]
    %v387 = vld [vmem:[%s1 + $0xd0] sm:$0xff]
    %v388 = vld [vmem:[%s1 + $0xd8] sm:$0xff]
    %v389 = vld [vmem:[%s1 + $0xe0] sm:$0xff]
    %v390 = vld [vmem:[%s1 + $0xe8] sm:$0xff]
    %v391 = vld [vmem:[%s1 + $0xf0] sm:$0xff]
    %v392 = vld [vmem:[%s1 + $0xf8] sm:$0xff]
    %v393 = vld [vmem:[%s1 + $0x100] sm:$0xff]
    %v394 = vld [vmem:[%s1 + $0x108] sm:$0xff]
    %v395 = vld [vmem:[%s1 + $0x110] sm:$0xff]
    %v396 = vld [vmem:[%s1 + $0x118] sm:$0xff]
    %v397 = vld [vmem:[%s1 + $0x120] sm:$0xff]
    %v398 = vld [vmem:[%s1 + $0x128] sm:$0xff]
    %v399 = vld [vmem:[%s1 + $0x130] sm:$0xff]
    %v400 = vld [vmem:[%s1 + $0x138] sm:$0xff]
    %v401 = vld [vmem:[%s1 + $0x140] sm:$0xff]
    %v402 = vld [vmem:[%s1 + $0x148] sm:$0xff]
    %v403 = vld [vmem:[%s1 + $0x150] sm:$0xff]
    %v404 = vld [vmem:[%s1 + $0x158] sm:$0xff]
    %v405 = vld [vmem:[%s1 + $0x160] sm:$0xff]
    %v406 = vld [vmem:[%s1 + $0x168] sm:$0xff]
    %v407 = vld [vmem:[%s1 + $0x170] sm:$0xff]
    %v408 = vld [vmem:[%s1 + $0x178] sm:$0xff]
    %v409 = vld [vmem:[%s1 + $0x180] sm:$0xff]
    %v410 = vld [vmem:[%s1 + $0x188] sm:$0xff]
    %v411 = vld [vmem:[%s1 + $0x190] sm:$0xff]
    %v412 = vld [vmem:[%s1 + $0x198] sm:$0xff]
    %v413 = vld [vmem:[%s1 + $0x1a0] sm:$0xff]
    %v414 = vld [vmem:[%s1 + $0x1a8] sm:$0xff]
    %v415 = vld [vmem:[%s1 + $0x1b0] sm:$0xff]
    %v416 = vld [vmem:[%s1 + $0x1b8] sm:$0xff]
    %v417 = vld [vmem:[%s1 + $0x1c0] sm:$0xff]
    %v418 = vld [vmem:[%s1 + $0x1c8] sm:$0xff]
    %v419 = vld [vmem:[%s1 + $0x1d0] sm:$0xff]
    %v420 = vld [vmem:[%s1 + $0x1d8] sm:$0xff]
    %v421 = vld [vmem:[%s1 + $0x1e0] sm:$0xff]
    %v422 = vld [vmem:[%s1 + $0x1e8] sm:$0xff]
    %v423 = vld [vmem:[%s1 + $0x1f0] sm:$0xff]
    %v424 = vld [vmem:[%s1 + $0x1f8] sm:$0xff]
    %vm425 = vcmask 523264
    %v426 = vsel %vm425, %v361, 0.0
    %427 = vadd.xlane.f32.xlu0 %v426
    %v428 = vpop.xlane.xlu0 %427
    %v429 = vsel %vm425, %v362, 0.0
    %430 = vadd.xlane.f32.xlu0 %v429
    %v431 = vpop.xlane.xlu0 %430
    %v432 = vsel %vm425, %v363, 0.0
    %433 = vadd.xlane.f32.xlu0 %v432
    %v434 = vpop.xlane.xlu0 %433
    %v435 = vsel %vm425, %v364, 0.0
    %436 = vadd.xlane.f32.xlu0 %v435
    %v437 = vpop.xlane.xlu0 %436
    %v438 = vsel %vm425, %v365, 0.0
    %439 = vadd.xlane.f32.xlu0 %v438
    %v440 = vpop.xlane.xlu0 %439
    %v441 = vsel %vm425, %v366, 0.0
    %442 = vadd.xlane.f32.xlu0 %v441
    %v443 = vpop.xlane.xlu0 %442
    %v444 = vsel %vm425, %v367, 0.0
    %445 = vadd.xlane.f32.xlu0 %v444
    %v446 = vpop.xlane.xlu0 %445
    %v447 = vsel %vm425, %v368, 0.0
    %448 = vadd.xlane.f32.xlu0 %v447
    %v449 = vpop.xlane.xlu0 %448
    %v450 = vsel %vm425, %v369, 0.0
    %451 = vadd.xlane.f32.xlu0 %v450
    %v452 = vpop.xlane.xlu0 %451
    %v453 = vsel %vm425, %v370, 0.0
    %454 = vadd.xlane.f32.xlu0 %v453
    %v455 = vpop.xlane.xlu0 %454
    %v456 = vsel %vm425, %v371, 0.0
    %457 = vadd.xlane.f32.xlu0 %v456
    %v458 = vpop.xlane.xlu0 %457
    %v459 = vsel %vm425, %v372, 0.0
    %460 = vadd.xlane.f32.xlu0 %v459
    %v461 = vpop.xlane.xlu0 %460
    %v462 = vsel %vm425, %v373, 0.0
    %463 = vadd.xlane.f32.xlu0 %v462
    %v464 = vpop.xlane.xlu0 %463
    %v465 = vsel %vm425, %v374, 0.0
    %466 = vadd.xlane.f32.xlu0 %v465
    %v467 = vpop.xlane.xlu0 %466
    %v468 = vsel %vm425, %v375, 0.0
    %469 = vadd.xlane.f32.xlu0 %v468
    %v470 = vpop.xlane.xlu0 %469
    %v471 = vsel %vm425, %v376, 0.0
    %472 = vadd.xlane.f32.xlu0 %v471
    %v473 = vpop.xlane.xlu0 %472
    %v474 = vsel %vm425, %v377, 0.0
    %475 = vadd.xlane.f32.xlu0 %v474
    %v476 = vpop.xlane.xlu0 %475
    %v477 = vsel %vm425, %v378, 0.0
    %478 = vadd.xlane.f32.xlu0 %v477
    %v479 = vpop.xlane.xlu0 %478
    %v480 = vsel %vm425, %v379, 0.0
    %481 = vadd.xlane.f32.xlu0 %v480
    %v482 = vpop.xlane.xlu0 %481
    %v483 = vsel %vm425, %v380, 0.0
    %484 = vadd.xlane.f32.xlu0 %v483
    %v485 = vpop.xlane.xlu0 %484
    %v486 = vsel %vm425, %v381, 0.0
    %487 = vadd.xlane.f32.xlu0 %v486
    %v488 = vpop.xlane.xlu0 %487
    %v489 = vsel %vm425, %v382, 0.0
    %490 = vadd.xlane.f32.xlu0 %v489
    %v491 = vpop.xlane.xlu0 %490
    %v492 = vsel %vm425, %v383, 0.0
    %493 = vadd.xlane.f32.xlu0 %v492
    %v494 = vpop.xlane.xlu0 %493
    %v495 = vsel %vm425, %v384, 0.0
    %496 = vadd.xlane.f32.xlu0 %v495
    %v497 = vpop.xlane.xlu0 %496
    %v498 = vsel %vm425, %v385, 0.0
    %499 = vadd.xlane.f32.xlu0 %v498
    %v500 = vpop.xlane.xlu0 %499
    %v501 = vsel %vm425, %v386, 0.0
    %502 = vadd.xlane.f32.xlu0 %v501
    %v503 = vpop.xlane.xlu0 %502
    %v504 = vsel %vm425, %v387, 0.0
    %505 = vadd.xlane.f32.xlu0 %v504
    %v506 = vpop.xlane.xlu0 %505
    %v507 = vsel %vm425, %v388, 0.0
    %508 = vadd.xlane.f32.xlu0 %v507
    %v509 = vpop.xlane.xlu0 %508
    %v510 = vsel %vm425, %v389, 0.0
    %511 = vadd.xlane.f32.xlu0 %v510
    %v512 = vpop.xlane.xlu0 %511
    %v513 = vsel %vm425, %v390, 0.0
    %514 = vadd.xlane.f32.xlu0 %v513
    %v515 = vpop.xlane.xlu0 %514
    %v516 = vsel %vm425, %v391, 0.0
    %517 = vadd.xlane.f32.xlu0 %v516
    %v518 = vpop.xlane.xlu0 %517
    %v519 = vsel %vm425, %v392, 0.0
    %520 = vadd.xlane.f32.xlu0 %v519
    %v521 = vpop.xlane.xlu0 %520
    %v522 = vsel %vm425, %v393, 0.0
    %523 = vadd.xlane.f32.xlu0 %v522
    %v524 = vpop.xlane.xlu0 %523
    %v525 = vsel %vm425, %v394, 0.0
    %526 = vadd.xlane.f32.xlu0 %v525
    %v527 = vpop.xlane.xlu0 %526
    %v528 = vsel %vm425, %v395, 0.0
    %529 = vadd.xlane.f32.xlu0 %v528
    %v530 = vpop.xlane.xlu0 %529
    %v531 = vsel %vm425, %v396, 0.0
    %532 = vadd.xlane.f32.xlu0 %v531
    %v533 = vpop.xlane.xlu0 %532
    %v534 = vsel %vm425, %v397, 0.0
    %535 = vadd.xlane.f32.xlu0 %v534
    %v536 = vpop.xlane.xlu0 %535
    %v537 = vsel %vm425, %v398, 0.0
    %538 = vadd.xlane.f32.xlu0 %v537
    %v539 = vpop.xlane.xlu0 %538
    %v540 = vsel %vm425, %v399, 0.0
    %541 = vadd.xlane.f32.xlu0 %v540
    %v542 = vpop.xlane.xlu0 %541
    %v543 = vsel %vm425, %v400, 0.0
    %544 = vadd.xlane.f32.xlu0 %v543
    %v545 = vpop.xlane.xlu0 %544
    %v546 = vsel %vm425, %v401, 0.0
    %547 = vadd.xlane.f32.xlu0 %v546
    %v548 = vpop.xlane.xlu0 %547
    %v549 = vsel %vm425, %v402, 0.0
    %550 = vadd.xlane.f32.xlu0 %v549
    %v551 = vpop.xlane.xlu0 %550
    %v552 = vsel %vm425, %v403, 0.0
    %553 = vadd.xlane.f32.xlu0 %v552
    %v554 = vpop.xlane.xlu0 %553
    %v555 = vsel %vm425, %v404, 0.0
    %556 = vadd.xlane.f32.xlu0 %v555
    %v557 = vpop.xlane.xlu0 %556
    %v558 = vsel %vm425, %v405, 0.0
    %559 = vadd.xlane.f32.xlu0 %v558
    %v560 = vpop.xlane.xlu0 %559
    %v561 = vsel %vm425, %v406, 0.0
    %562 = vadd.xlane.f32.xlu0 %v561
    %v563 = vpop.xlane.xlu0 %562
    %v564 = vsel %vm425, %v407, 0.0
    %565 = vadd.xlane.f32.xlu0 %v564
    %v566 = vpop.xlane.xlu0 %565
    %v567 = vsel %vm425, %v408, 0.0
    %568 = vadd.xlane.f32.xlu0 %v567
    %v569 = vpop.xlane.xlu0 %568
    %v570 = vsel %vm425, %v409, 0.0
    %571 = vadd.xlane.f32.xlu0 %v570
    %v572 = vpop.xlane.xlu0 %571
    %v573 = vsel %vm425, %v410, 0.0
    %574 = vadd.xlane.f32.xlu0 %v573
    %v575 = vpop.xlane.xlu0 %574
    %v576 = vsel %vm425, %v411, 0.0
    %577 = vadd.xlane.f32.xlu0 %v576
    %v578 = vpop.xlane.xlu0 %577
    %v579 = vsel %vm425, %v412, 0.0
    %580 = vadd.xlane.f32.xlu0 %v579
    %v581 = vpop.xlane.xlu0 %580
    %v582 = vsel %vm425, %v413, 0.0
    %583 = vadd.xlane.f32.xlu0 %v582
    %v584 = vpop.xlane.xlu0 %583
    %v585 = vsel %vm425, %v414, 0.0
    %586 = vadd.xlane.f32.xlu0 %v585
    %v587 = vpop.xlane.xlu0 %586
    %v588 = vsel %vm425, %v415, 0.0
    %589 = vadd.xlane.f32.xlu0 %v588
    %v590 = vpop.xlane.xlu0 %589
    %v591 = vsel %vm425, %v416, 0.0
    %592 = vadd.xlane.f32.xlu0 %v591
    %v593 = vpop.xlane.xlu0 %592
    %v594 = vsel %vm425, %v417, 0.0
    %595 = vadd.xlane.f32.xlu0 %v594
    %v596 = vpop.xlane.xlu0 %595
    %v597 = vsel %vm425, %v418, 0.0
    %598 = vadd.xlane.f32.xlu0 %v597
    %v599 = vpop.xlane.xlu0 %598
    %v600 = vsel %vm425, %v419, 0.0
    %601 = vadd.xlane.f32.xlu0 %v600
    %v602 = vpop.xlane.xlu0 %601
    %v603 = vsel %vm425, %v420, 0.0
    %604 = vadd.xlane.f32.xlu0 %v603
    %v605 = vpop.xlane.xlu0 %604
    %v606 = vsel %vm425, %v421, 0.0
    %607 = vadd.xlane.f32.xlu0 %v606
    %v608 = vpop.xlane.xlu0 %607
    %v609 = vsel %vm425, %v422, 0.0
    %610 = vadd.xlane.f32.xlu0 %v609
    %v611 = vpop.xlane.xlu0 %610
    %v612 = vsel %vm425, %v423, 0.0
    %613 = vadd.xlane.f32.xlu0 %v612
    %v614 = vpop.xlane.xlu0 %613
    %v615 = vsel %vm425, %v424, 0.0
    %616 = vadd.xlane.f32.xlu0 %v615
    %v617 = vpop.xlane.xlu0 %616
    %v618 = vld [vmem:[%s2] sm:$0xff]
    %v619 = vld [vmem:[%s2 + $0x8] sm:$0xff]
    %v620 = vld [vmem:[%s2 + $0x10] sm:$0xff]
    %v621 = vld [vmem:[%s2 + $0x18] sm:$0xff]
    %v622 = vld [vmem:[%s2 + $0x20] sm:$0xff]
    %v623 = vld [vmem:[%s2 + $0x28] sm:$0xff]
    %v624 = vld [vmem:[%s2 + $0x30] sm:$0xff]
    %v625 = vld [vmem:[%s2 + $0x38] sm:$0xff]
    %v626 = vld [vmem:[%s2 + $0x40] sm:$0xff]
    %v627 = vld [vmem:[%s2 + $0x48] sm:$0xff]
    %v628 = vld [vmem:[%s2 + $0x50] sm:$0xff]
    %v629 = vld [vmem:[%s2 + $0x58] sm:$0xff]
    %v630 = vld [vmem:[%s2 + $0x60] sm:$0xff]
    %v631 = vld [vmem:[%s2 + $0x68] sm:$0xff]
    %v632 = vld [vmem:[%s2 + $0x70] sm:$0xff]
    %v633 = vld [vmem:[%s2 + $0x78] sm:$0xff]
    %v634 = vld [vmem:[%s2 + $0x80] sm:$0xff]
    %v635 = vld [vmem:[%s2 + $0x88] sm:$0xff]
    %v636 = vld [vmem:[%s2 + $0x90] sm:$0xff]
    %v637 = vld [vmem:[%s2 + $0x98] sm:$0xff]
    %v638 = vld [vmem:[%s2 + $0xa0] sm:$0xff]
    %v639 = vld [vmem:[%s2 + $0xa8] sm:$0xff]
    %v640 = vld [vmem:[%s2 + $0xb0] sm:$0xff]
    %v641 = vld [vmem:[%s2 + $0xb8] sm:$0xff]
    %v642 = vld [vmem:[%s2 + $0xc0] sm:$0xff]
    %v643 = vld [vmem:[%s2 + $0xc8] sm:$0xff]
    %v644 = vld [vmem:[%s2 + $0xd0] sm:$0xff]
    %v645 = vld [vmem:[%s2 + $0xd8] sm:$0xff]
    %v646 = vld [vmem:[%s2 + $0xe0] sm:$0xff]
    %v647 = vld [vmem:[%s2 + $0xe8] sm:$0xff]
    %v648 = vld [vmem:[%s2 + $0xf0] sm:$0xff]
    %v649 = vld [vmem:[%s2 + $0xf8] sm:$0xff]
    %v650 = vld [vmem:[%s2 + $0x100] sm:$0xff]
    %v651 = vld [vmem:[%s2 + $0x108] sm:$0xff]
    %v652 = vld [vmem:[%s2 + $0x110] sm:$0xff]
    %v653 = vld [vmem:[%s2 + $0x118] sm:$0xff]
    %v654 = vld [vmem:[%s2 + $0x120] sm:$0xff]
    %v655 = vld [vmem:[%s2 + $0x128] sm:$0xff]
    %v656 = vld [vmem:[%s2 + $0x130] sm:$0xff]
    %v657 = vld [vmem:[%s2 + $0x138] sm:$0xff]
    %v658 = vld [vmem:[%s2 + $0x140] sm:$0xff]
    %v659 = vld [vmem:[%s2 + $0x148] sm:$0xff]
    %v660 = vld [vmem:[%s2 + $0x150] sm:$0xff]
    %v661 = vld [vmem:[%s2 + $0x158] sm:$0xff]
    %v662 = vld [vmem:[%s2 + $0x160] sm:$0xff]
    %v663 = vld [vmem:[%s2 + $0x168] sm:$0xff]
    %v664 = vld [vmem:[%s2 + $0x170] sm:$0xff]
    %v665 = vld [vmem:[%s2 + $0x178] sm:$0xff]
    %v666 = vld [vmem:[%s2 + $0x180] sm:$0xff]
    %v667 = vld [vmem:[%s2 + $0x188] sm:$0xff]
    %v668 = vld [vmem:[%s2 + $0x190] sm:$0xff]
    %v669 = vld [vmem:[%s2 + $0x198] sm:$0xff]
    %v670 = vld [vmem:[%s2 + $0x1a0] sm:$0xff]
    %v671 = vld [vmem:[%s2 + $0x1a8] sm:$0xff]
    %v672 = vld [vmem:[%s2 + $0x1b0] sm:$0xff]
    %v673 = vld [vmem:[%s2 + $0x1b8] sm:$0xff]
    %v674 = vld [vmem:[%s2 + $0x1c0] sm:$0xff]
    %v675 = vld [vmem:[%s2 + $0x1c8] sm:$0xff]
    %v676 = vld [vmem:[%s2 + $0x1d0] sm:$0xff]
    %v677 = vld [vmem:[%s2 + $0x1d8] sm:$0xff]
    %v678 = vld [vmem:[%s2 + $0x1e0] sm:$0xff]
    %v679 = vld [vmem:[%s2 + $0x1e8] sm:$0xff]
    %v680 = vld [vmem:[%s2 + $0x1f0] sm:$0xff]
    %v681 = vld [vmem:[%s2 + $0x1f8] sm:$0xff]
    %vm682 = vcmask 130048
    %v683 = vsel %vm682, %v618, 0.0
    %684 = vadd.xlane.f32.xlu0 %v683
    %v685 = vpop.xlane.xlu0 %684
    %v686 = vsel %vm682, %v619, 0.0
    %687 = vadd.xlane.f32.xlu0 %v686
    %v688 = vpop.xlane.xlu0 %687
    %v689 = vsel %vm682, %v620, 0.0
    %690 = vadd.xlane.f32.xlu0 %v689
    %v691 = vpop.xlane.xlu0 %690
    %v692 = vsel %vm682, %v621, 0.0
    %693 = vadd.xlane.f32.xlu0 %v692
    %v694 = vpop.xlane.xlu0 %693
    %v695 = vsel %vm682, %v622, 0.0
    %696 = vadd.xlane.f32.xlu0 %v695
    %v697 = vpop.xlane.xlu0 %696
    %v698 = vsel %vm682, %v623, 0.0
    %699 = vadd.xlane.f32.xlu0 %v698
    %v700 = vpop.xlane.xlu0 %699
    %v701 = vsel %vm682, %v624, 0.0
    %702 = vadd.xlane.f32.xlu0 %v701
    %v703 = vpop.xlane.xlu0 %702
    %v704 = vsel %vm682, %v625, 0.0
    %705 = vadd.xlane.f32.xlu0 %v704
    %v706 = vpop.xlane.xlu0 %705
    %v707 = vsel %vm682, %v626, 0.0
    %708 = vadd.xlane.f32.xlu0 %v707
    %v709 = vpop.xlane.xlu0 %708
    %v710 = vsel %vm682, %v627, 0.0
    %711 = vadd.xlane.f32.xlu0 %v710
    %v712 = vpop.xlane.xlu0 %711
    %v713 = vsel %vm682, %v628, 0.0
    %714 = vadd.xlane.f32.xlu0 %v713
    %v715 = vpop.xlane.xlu0 %714
    %v716 = vsel %vm682, %v629, 0.0
    %717 = vadd.xlane.f32.xlu0 %v716
    %v718 = vpop.xlane.xlu0 %717
    %v719 = vsel %vm682, %v630, 0.0
    %720 = vadd.xlane.f32.xlu0 %v719
    %v721 = vpop.xlane.xlu0 %720
    %v722 = vsel %vm682, %v631, 0.0
    %723 = vadd.xlane.f32.xlu0 %v722
    %v724 = vpop.xlane.xlu0 %723
    %v725 = vsel %vm682, %v632, 0.0
    %726 = vadd.xlane.f32.xlu0 %v725
    %v727 = vpop.xlane.xlu0 %726
    %v728 = vsel %vm682, %v633, 0.0
    %729 = vadd.xlane.f32.xlu0 %v728
    %v730 = vpop.xlane.xlu0 %729
    %v731 = vsel %vm682, %v634, 0.0
    %732 = vadd.xlane.f32.xlu0 %v731
    %v733 = vpop.xlane.xlu0 %732
    %v734 = vsel %vm682, %v635, 0.0
    %735 = vadd.xlane.f32.xlu0 %v734
    %v736 = vpop.xlane.xlu0 %735
    %v737 = vsel %vm682, %v636, 0.0
    %738 = vadd.xlane.f32.xlu0 %v737
    %v739 = vpop.xlane.xlu0 %738
    %v740 = vsel %vm682, %v637, 0.0
    %741 = vadd.xlane.f32.xlu0 %v740
    %v742 = vpop.xlane.xlu0 %741
    %v743 = vsel %vm682, %v638, 0.0
    %744 = vadd.xlane.f32.xlu0 %v743
    %v745 = vpop.xlane.xlu0 %744
    %v746 = vsel %vm682, %v639, 0.0
    %747 = vadd.xlane.f32.xlu0 %v746
    %v748 = vpop.xlane.xlu0 %747
    %v749 = vsel %vm682, %v640, 0.0
    %750 = vadd.xlane.f32.xlu0 %v749
    %v751 = vpop.xlane.xlu0 %750
    %v752 = vsel %vm682, %v641, 0.0
    %753 = vadd.xlane.f32.xlu0 %v752
    %v754 = vpop.xlane.xlu0 %753
    %v755 = vsel %vm682, %v642, 0.0
    %756 = vadd.xlane.f32.xlu0 %v755
    %v757 = vpop.xlane.xlu0 %756
    %v758 = vsel %vm682, %v643, 0.0
    %759 = vadd.xlane.f32.xlu0 %v758
    %v760 = vpop.xlane.xlu0 %759
    %v761 = vsel %vm682, %v644, 0.0
    %762 = vadd.xlane.f32.xlu0 %v761
    %v763 = vpop.xlane.xlu0 %762
    %v764 = vsel %vm682, %v645, 0.0
    %765 = vadd.xlane.f32.xlu0 %v764
    %v766 = vpop.xlane.xlu0 %765
    %v767 = vsel %vm682, %v646, 0.0
    %768 = vadd.xlane.f32.xlu0 %v767
    %v769 = vpop.xlane.xlu0 %768
    %v770 = vsel %vm682, %v647, 0.0
    %771 = vadd.xlane.f32.xlu0 %v770
    %v772 = vpop.xlane.xlu0 %771
    %v773 = vsel %vm682, %v648, 0.0
    %774 = vadd.xlane.f32.xlu0 %v773
    %v775 = vpop.xlane.xlu0 %774
    %v776 = vsel %vm682, %v649, 0.0
    %777 = vadd.xlane.f32.xlu0 %v776
    %v778 = vpop.xlane.xlu0 %777
    %v779 = vsel %vm682, %v650, 0.0
    %780 = vadd.xlane.f32.xlu0 %v779
    %v781 = vpop.xlane.xlu0 %780
    %v782 = vsel %vm682, %v651, 0.0
    %783 = vadd.xlane.f32.xlu0 %v782
    %v784 = vpop.xlane.xlu0 %783
    %v785 = vsel %vm682, %v652, 0.0
    %786 = vadd.xlane.f32.xlu0 %v785
    %v787 = vpop.xlane.xlu0 %786
    %v788 = vsel %vm682, %v653, 0.0
    %789 = vadd.xlane.f32.xlu0 %v788
    %v790 = vpop.xlane.xlu0 %789
    %v791 = vsel %vm682, %v654, 0.0
    %792 = vadd.xlane.f32.xlu0 %v791
    %v793 = vpop.xlane.xlu0 %792
    %v794 = vsel %vm682, %v655, 0.0
    %795 = vadd.xlane.f32.xlu0 %v794
    %v796 = vpop.xlane.xlu0 %795
    %v797 = vsel %vm682, %v656, 0.0
    %798 = vadd.xlane.f32.xlu0 %v797
    %v799 = vpop.xlane.xlu0 %798
    %v800 = vsel %vm682, %v657, 0.0
    %801 = vadd.xlane.f32.xlu0 %v800
    %v802 = vpop.xlane.xlu0 %801
    %v803 = vsel %vm682, %v658, 0.0
    %804 = vadd.xlane.f32.xlu0 %v803
    %v805 = vpop.xlane.xlu0 %804
    %v806 = vsel %vm682, %v659, 0.0
    %807 = vadd.xlane.f32.xlu0 %v806
    %v808 = vpop.xlane.xlu0 %807
    %v809 = vsel %vm682, %v660, 0.0
    %810 = vadd.xlane.f32.xlu0 %v809
    %v811 = vpop.xlane.xlu0 %810
    %v812 = vsel %vm682, %v661, 0.0
    %813 = vadd.xlane.f32.xlu0 %v812
    %v814 = vpop.xlane.xlu0 %813
    %v815 = vsel %vm682, %v662, 0.0
    %816 = vadd.xlane.f32.xlu0 %v815
    %v817 = vpop.xlane.xlu0 %816
    %v818 = vsel %vm682, %v663, 0.0
    %819 = vadd.xlane.f32.xlu0 %v818
    %v820 = vpop.xlane.xlu0 %819
    %v821 = vsel %vm682, %v664, 0.0
    %822 = vadd.xlane.f32.xlu0 %v821
    %v823 = vpop.xlane.xlu0 %822
    %v824 = vsel %vm682, %v665, 0.0
    %825 = vadd.xlane.f32.xlu0 %v824
    %v826 = vpop.xlane.xlu0 %825
    %v827 = vsel %vm682, %v666, 0.0
    %828 = vadd.xlane.f32.xlu0 %v827
    %v829 = vpop.xlane.xlu0 %828
    %v830 = vsel %vm682, %v667, 0.0
    %831 = vadd.xlane.f32.xlu0 %v830
    %v832 = vpop.xlane.xlu0 %831
    %v833 = vsel %vm682, %v668, 0.0
    %834 = vadd.xlane.f32.xlu0 %v833
    %v835 = vpop.xlane.xlu0 %834
    %v836 = vsel %vm682, %v669, 0.0
    %837 = vadd.xlane.f32.xlu0 %v836
    %v838 = vpop.xlane.xlu0 %837
    %v839 = vsel %vm682, %v670, 0.0
    %840 = vadd.xlane.f32.xlu0 %v839
    %v841 = vpop.xlane.xlu0 %840
    %v842 = vsel %vm682, %v671, 0.0
    %843 = vadd.xlane.f32.xlu0 %v842
    %v844 = vpop.xlane.xlu0 %843
    %v845 = vsel %vm682, %v672, 0.0
    %846 = vadd.xlane.f32.xlu0 %v845
    %v847 = vpop.xlane.xlu0 %846
    %v848 = vsel %vm682, %v673, 0.0
    %849 = vadd.xlane.f32.xlu0 %v848
    %v850 = vpop.xlane.xlu0 %849
    %v851 = vsel %vm682, %v674, 0.0
    %852 = vadd.xlane.f32.xlu0 %v851
    %v853 = vpop.xlane.xlu0 %852
    %v854 = vsel %vm682, %v675, 0.0
    %855 = vadd.xlane.f32.xlu0 %v854
    %v856 = vpop.xlane.xlu0 %855
    %v857 = vsel %vm682, %v676, 0.0
    %858 = vadd.xlane.f32.xlu0 %v857
    %v859 = vpop.xlane.xlu0 %858
    %v860 = vsel %vm682, %v677, 0.0
    %861 = vadd.xlane.f32.xlu0 %v860
    %v862 = vpop.xlane.xlu0 %861
    %v863 = vsel %vm682, %v678, 0.0
    %864 = vadd.xlane.f32.xlu0 %v863
    %v865 = vpop.xlane.xlu0 %864
    %v866 = vsel %vm682, %v679, 0.0
    %867 = vadd.xlane.f32.xlu0 %v866
    %v868 = vpop.xlane.xlu0 %867
    %v869 = vsel %vm682, %v680, 0.0
    %870 = vadd.xlane.f32.xlu0 %v869
    %v871 = vpop.xlane.xlu0 %870
    %v872 = vsel %vm682, %v681, 0.0
    %873 = vadd.xlane.f32.xlu0 %v872
    %v874 = vpop.xlane.xlu0 %873
    %v875 = vld [vmem:[%s3] sm:$0xff]
    %v876 = vld [vmem:[%s3 + $0x8] sm:$0xff]
    %v877 = vld [vmem:[%s3 + $0x10] sm:$0xff]
    %v878 = vld [vmem:[%s3 + $0x18] sm:$0xff]
    %v879 = vld [vmem:[%s3 + $0x20] sm:$0xff]
    %v880 = vld [vmem:[%s3 + $0x28] sm:$0xff]
    %v881 = vld [vmem:[%s3 + $0x30] sm:$0xff]
    %v882 = vld [vmem:[%s3 + $0x38] sm:$0xff]
    %v883 = vld [vmem:[%s3 + $0x40] sm:$0xff]
    %v884 = vld [vmem:[%s3 + $0x48] sm:$0xff]
    %v885 = vld [vmem:[%s3 + $0x50] sm:$0xff]
    %v886 = vld [vmem:[%s3 + $0x58] sm:$0xff]
    %v887 = vld [vmem:[%s3 + $0x60] sm:$0xff]
    %v888 = vld [vmem:[%s3 + $0x68] sm:$0xff]
    %v889 = vld [vmem:[%s3 + $0x70] sm:$0xff]
    %v890 = vld [vmem:[%s3 + $0x78] sm:$0xff]
    %v891 = vld [vmem:[%s3 + $0x80] sm:$0xff]
    %v892 = vld [vmem:[%s3 + $0x88] sm:$0xff]
    %v893 = vld [vmem:[%s3 + $0x90] sm:$0xff]
    %v894 = vld [vmem:[%s3 + $0x98] sm:$0xff]
    %v895 = vld [vmem:[%s3 + $0xa0] sm:$0xff]
    %v896 = vld [vmem:[%s3 + $0xa8] sm:$0xff]
    %v897 = vld [vmem:[%s3 + $0xb0] sm:$0xff]
    %v898 = vld [vmem:[%s3 + $0xb8] sm:$0xff]
    %v899 = vld [vmem:[%s3 + $0xc0] sm:$0xff]
    %v900 = vld [vmem:[%s3 + $0xc8] sm:$0xff]
    %v901 = vld [vmem:[%s3 + $0xd0] sm:$0xff]
    %v902 = vld [vmem:[%s3 + $0xd8] sm:$0xff]
    %v903 = vld [vmem:[%s3 + $0xe0] sm:$0xff]
    %v904 = vld [vmem:[%s3 + $0xe8] sm:$0xff]
    %v905 = vld [vmem:[%s3 + $0xf0] sm:$0xff]
    %v906 = vld [vmem:[%s3 + $0xf8] sm:$0xff]
    %v907 = vld [vmem:[%s3 + $0x100] sm:$0xff]
    %v908 = vld [vmem:[%s3 + $0x108] sm:$0xff]
    %v909 = vld [vmem:[%s3 + $0x110] sm:$0xff]
    %v910 = vld [vmem:[%s3 + $0x118] sm:$0xff]
    %v911 = vld [vmem:[%s3 + $0x120] sm:$0xff]
    %v912 = vld [vmem:[%s3 + $0x128] sm:$0xff]
    %v913 = vld [vmem:[%s3 + $0x130] sm:$0xff]
    %v914 = vld [vmem:[%s3 + $0x138] sm:$0xff]
    %v915 = vld [vmem:[%s3 + $0x140] sm:$0xff]
    %v916 = vld [vmem:[%s3 + $0x148] sm:$0xff]
    %v917 = vld [vmem:[%s3 + $0x150] sm:$0xff]
    %v918 = vld [vmem:[%s3 + $0x158] sm:$0xff]
    %v919 = vld [vmem:[%s3 + $0x160] sm:$0xff]
    %v920 = vld [vmem:[%s3 + $0x168] sm:$0xff]
    %v921 = vld [vmem:[%s3 + $0x170] sm:$0xff]
    %v922 = vld [vmem:[%s3 + $0x178] sm:$0xff]
    %v923 = vld [vmem:[%s3 + $0x180] sm:$0xff]
    %v924 = vld [vmem:[%s3 + $0x188] sm:$0xff]
    %v925 = vld [vmem:[%s3 + $0x190] sm:$0xff]
    %v926 = vld [vmem:[%s3 + $0x198] sm:$0xff]
    %v927 = vld [vmem:[%s3 + $0x1a0] sm:$0xff]
    %v928 = vld [vmem:[%s3 + $0x1a8] sm:$0xff]
    %v929 = vld [vmem:[%s3 + $0x1b0] sm:$0xff]
    %v930 = vld [vmem:[%s3 + $0x1b8] sm:$0xff]
    %v931 = vld [vmem:[%s3 + $0x1c0] sm:$0xff]
    %v932 = vld [vmem:[%s3 + $0x1c8] sm:$0xff]
    %v933 = vld [vmem:[%s3 + $0x1d0] sm:$0xff]
    %v934 = vld [vmem:[%s3 + $0x1d8] sm:$0xff]
    %v935 = vld [vmem:[%s3 + $0x1e0] sm:$0xff]
    %v936 = vld [vmem:[%s3 + $0x1e8] sm:$0xff]
    %v937 = vld [vmem:[%s3 + $0x1f0] sm:$0xff]
    %v938 = vld [vmem:[%s3 + $0x1f8] sm:$0xff]
    %vm939 = vcmask 31744
    %v940 = vsel %vm939, %v875, 0.0
    %941 = vadd.xlane.f32.xlu0 %v940
    %v942 = vpop.xlane.xlu0 %941
    %v943 = vsel %vm939, %v876, 0.0
    %944 = vadd.xlane.f32.xlu0 %v943
    %v945 = vpop.xlane.xlu0 %944
    %v946 = vsel %vm939, %v877, 0.0
    %947 = vadd.xlane.f32.xlu0 %v946
    %v948 = vpop.xlane.xlu0 %947
    %v949 = vsel %vm939, %v878, 0.0
    %950 = vadd.xlane.f32.xlu0 %v949
    %v951 = vpop.xlane.xlu0 %950
    %v952 = vsel %vm939, %v879, 0.0
    %953 = vadd.xlane.f32.xlu0 %v952
    %v954 = vpop.xlane.xlu0 %953
    %v955 = vsel %vm939, %v880, 0.0
    %956 = vadd.xlane.f32.xlu0 %v955
    %v957 = vpop.xlane.xlu0 %956
    %v958 = vsel %vm939, %v881, 0.0
    %959 = vadd.xlane.f32.xlu0 %v958
    %v960 = vpop.xlane.xlu0 %959
    %v961 = vsel %vm939, %v882, 0.0
    %962 = vadd.xlane.f32.xlu0 %v961
    %v963 = vpop.xlane.xlu0 %962
    %v964 = vsel %vm939, %v883, 0.0
    %965 = vadd.xlane.f32.xlu0 %v964
    %v966 = vpop.xlane.xlu0 %965
    %v967 = vsel %vm939, %v884, 0.0
    %968 = vadd.xlane.f32.xlu0 %v967
    %v969 = vpop.xlane.xlu0 %968
    %v970 = vsel %vm939, %v885, 0.0
    %971 = vadd.xlane.f32.xlu0 %v970
    %v972 = vpop.xlane.xlu0 %971
    %v973 = vsel %vm939, %v886, 0.0
    %974 = vadd.xlane.f32.xlu0 %v973
    %v975 = vpop.xlane.xlu0 %974
    %v976 = vsel %vm939, %v887, 0.0
    %977 = vadd.xlane.f32.xlu0 %v976
    %v978 = vpop.xlane.xlu0 %977
    %v979 = vsel %vm939, %v888, 0.0
    %980 = vadd.xlane.f32.xlu0 %v979
    %v981 = vpop.xlane.xlu0 %980
    %v982 = vsel %vm939, %v889, 0.0
    %983 = vadd.xlane.f32.xlu0 %v982
    %v984 = vpop.xlane.xlu0 %983
    %v985 = vsel %vm939, %v890, 0.0
    %986 = vadd.xlane.f32.xlu0 %v985
    %v987 = vpop.xlane.xlu0 %986
    %v988 = vsel %vm939, %v891, 0.0
    %989 = vadd.xlane.f32.xlu0 %v988
    %v990 = vpop.xlane.xlu0 %989
    %v991 = vsel %vm939, %v892, 0.0
    %992 = vadd.xlane.f32.xlu0 %v991
    %v993 = vpop.xlane.xlu0 %992
    %v994 = vsel %vm939, %v893, 0.0
    %995 = vadd.xlane.f32.xlu0 %v994
    %v996 = vpop.xlane.xlu0 %995
    %v997 = vsel %vm939, %v894, 0.0
    %998 = vadd.xlane.f32.xlu0 %v997
    %v999 = vpop.xlane.xlu0 %998
    %v1000 = vsel %vm939, %v895, 0.0
    %1001 = vadd.xlane.f32.xlu0 %v1000
    %v1002 = vpop.xlane.xlu0 %1001
    %v1003 = vsel %vm939, %v896, 0.0
    %1004 = vadd.xlane.f32.xlu0 %v1003
    %v1005 = vpop.xlane.xlu0 %1004
    %v1006 = vsel %vm939, %v897, 0.0
    %1007 = vadd.xlane.f32.xlu0 %v1006
    %v1008 = vpop.xlane.xlu0 %1007
    %v1009 = vsel %vm939, %v898, 0.0
    %1010 = vadd.xlane.f32.xlu0 %v1009
    %v1011 = vpop.xlane.xlu0 %1010
    %v1012 = vsel %vm939, %v899, 0.0
    %1013 = vadd.xlane.f32.xlu0 %v1012
    %v1014 = vpop.xlane.xlu0 %1013
    %v1015 = vsel %vm939, %v900, 0.0
    %1016 = vadd.xlane.f32.xlu0 %v1015
    %v1017 = vpop.xlane.xlu0 %1016
    %v1018 = vsel %vm939, %v901, 0.0
    %1019 = vadd.xlane.f32.xlu0 %v1018
    %v1020 = vpop.xlane.xlu0 %1019
    %v1021 = vsel %vm939, %v902, 0.0
    %1022 = vadd.xlane.f32.xlu0 %v1021
    %v1023 = vpop.xlane.xlu0 %1022
    %v1024 = vsel %vm939, %v903, 0.0
    %1025 = vadd.xlane.f32.xlu0 %v1024
    %v1026 = vpop.xlane.xlu0 %1025
    %v1027 = vsel %vm939, %v904, 0.0
    %1028 = vadd.xlane.f32.xlu0 %v1027
    %v1029 = vpop.xlane.xlu0 %1028
    %v1030 = vsel %vm939, %v905, 0.0
    %1031 = vadd.xlane.f32.xlu0 %v1030
    %v1032 = vpop.xlane.xlu0 %1031
    %v1033 = vsel %vm939, %v906, 0.0
    %1034 = vadd.xlane.f32.xlu0 %v1033
    %v1035 = vpop.xlane.xlu0 %1034
    %v1036 = vsel %vm939, %v907, 0.0
    %1037 = vadd.xlane.f32.xlu0 %v1036
    %v1038 = vpop.xlane.xlu0 %1037
    %v1039 = vsel %vm939, %v908, 0.0
    %1040 = vadd.xlane.f32.xlu0 %v1039
    %v1041 = vpop.xlane.xlu0 %1040
    %v1042 = vsel %vm939, %v909, 0.0
    %1043 = vadd.xlane.f32.xlu0 %v1042
    %v1044 = vpop.xlane.xlu0 %1043
    %v1045 = vsel %vm939, %v910, 0.0
    %1046 = vadd.xlane.f32.xlu0 %v1045
    %v1047 = vpop.xlane.xlu0 %1046
    %v1048 = vsel %vm939, %v911, 0.0
    %1049 = vadd.xlane.f32.xlu0 %v1048
    %v1050 = vpop.xlane.xlu0 %1049
    %v1051 = vsel %vm939, %v912, 0.0
    %1052 = vadd.xlane.f32.xlu0 %v1051
    %v1053 = vpop.xlane.xlu0 %1052
    %v1054 = vsel %vm939, %v913, 0.0
    %1055 = vadd.xlane.f32.xlu0 %v1054
    %v1056 = vpop.xlane.xlu0 %1055
    %v1057 = vsel %vm939, %v914, 0.0
    %1058 = vadd.xlane.f32.xlu0 %v1057
    %v1059 = vpop.xlane.xlu0 %1058
    %v1060 = vsel %vm939, %v915, 0.0
    %1061 = vadd.xlane.f32.xlu0 %v1060
    %v1062 = vpop.xlane.xlu0 %1061
    %v1063 = vsel %vm939, %v916, 0.0
    %1064 = vadd.xlane.f32.xlu0 %v1063
    %v1065 = vpop.xlane.xlu0 %1064
    %v1066 = vsel %vm939, %v917, 0.0
    %1067 = vadd.xlane.f32.xlu0 %v1066
    %v1068 = vpop.xlane.xlu0 %1067
    %v1069 = vsel %vm939, %v918, 0.0
    %1070 = vadd.xlane.f32.xlu0 %v1069
    %v1071 = vpop.xlane.xlu0 %1070
    %v1072 = vsel %vm939, %v919, 0.0
    %1073 = vadd.xlane.f32.xlu0 %v1072
    %v1074 = vpop.xlane.xlu0 %1073
    %v1075 = vsel %vm939, %v920, 0.0
    %1076 = vadd.xlane.f32.xlu0 %v1075
    %v1077 = vpop.xlane.xlu0 %1076
    %v1078 = vsel %vm939, %v921, 0.0
    %1079 = vadd.xlane.f32.xlu0 %v1078
    %v1080 = vpop.xlane.xlu0 %1079
    %v1081 = vsel %vm939, %v922, 0.0
    %1082 = vadd.xlane.f32.xlu0 %v1081
    %v1083 = vpop.xlane.xlu0 %1082
    %v1084 = vsel %vm939, %v923, 0.0
    %1085 = vadd.xlane.f32.xlu0 %v1084
    %v1086 = vpop.xlane.xlu0 %1085
    %v1087 = vsel %vm939, %v924, 0.0
    %1088 = vadd.xlane.f32.xlu0 %v1087
    %v1089 = vpop.xlane.xlu0 %1088
    %v1090 = vsel %vm939, %v925, 0.0
    %1091 = vadd.xlane.f32.xlu0 %v1090
    %v1092 = vpop.xlane.xlu0 %1091
    %v1093 = vsel %vm939, %v926, 0.0
    %1094 = vadd.xlane.f32.xlu0 %v1093
    %v1095 = vpop.xlane.xlu0 %1094
    %v1096 = vsel %vm939, %v927, 0.0
    %1097 = vadd.xlane.f32.xlu0 %v1096
    %v1098 = vpop.xlane.xlu0 %1097
    %v1099 = vsel %vm939, %v928, 0.0
    %1100 = vadd.xlane.f32.xlu0 %v1099
    %v1101 = vpop.xlane.xlu0 %1100
    %v1102 = vsel %vm939, %v929, 0.0
    %1103 = vadd.xlane.f32.xlu0 %v1102
    %v1104 = vpop.xlane.xlu0 %1103
    %v1105 = vsel %vm939, %v930, 0.0
    %1106 = vadd.xlane.f32.xlu0 %v1105
    %v1107 = vpop.xlane.xlu0 %1106
    %v1108 = vsel %vm939, %v931, 0.0
    %1109 = vadd.xlane.f32.xlu0 %v1108
    %v1110 = vpop.xlane.xlu0 %1109
    %v1111 = vsel %vm939, %v932, 0.0
    %1112 = vadd.xlane.f32.xlu0 %v1111
    %v1113 = vpop.xlane.xlu0 %1112
    %v1114 = vsel %vm939, %v933, 0.0
    %1115 = vadd.xlane.f32.xlu0 %v1114
    %v1116 = vpop.xlane.xlu0 %1115
    %v1117 = vsel %vm939, %v934, 0.0
    %1118 = vadd.xlane.f32.xlu0 %v1117
    %v1119 = vpop.xlane.xlu0 %1118
    %v1120 = vsel %vm939, %v935, 0.0
    %1121 = vadd.xlane.f32.xlu0 %v1120
    %v1122 = vpop.xlane.xlu0 %1121
    %v1123 = vsel %vm939, %v936, 0.0
    %1124 = vadd.xlane.f32.xlu0 %v1123
    %v1125 = vpop.xlane.xlu0 %1124
    %v1126 = vsel %vm939, %v937, 0.0
    %1127 = vadd.xlane.f32.xlu0 %v1126
    %v1128 = vpop.xlane.xlu0 %1127
    %v1129 = vsel %vm939, %v938, 0.0
    %1130 = vadd.xlane.f32.xlu0 %v1129
    %v1131 = vpop.xlane.xlu0 %1130
    %v1196 = vlaneseq
    %v1197 = vand.u32 %v1196, 127
    %v1198 = vlaneseq
    %v1199 = vshrl.u32 %v1198, 7
    %v1200 = vsub.s32 %v1197, %v1199
    %v1201 = vrot.slane %v171, %v1200
    %v1202 = vadd.s32 %v1197, 4294967288
    %v1203 = vlaneseq
    %v1204 = vshrl.u32 %v1203, 7
    %v1205 = vsub.s32 %v1202, %v1204
    %v1206 = vrot.slane %v174, %v1205
    %vm1207 = vcmask 130112
    %v1208 = vsel %vm1207, %v1206, %v1201
    %v1209 = vadd.s32 %v1197, 4294967280
    %v1210 = vlaneseq
    %v1211 = vshrl.u32 %v1210, 7
    %v1212 = vsub.s32 %v1209, %v1211
    %v1213 = vrot.slane %v177, %v1212
    %vm1214 = vcmask 195712
    %v1215 = vsel %vm1214, %v1213, %v1208
    %v1216 = vadd.s32 %v1197, 4294967272
    %v1217 = vlaneseq
    %v1218 = vshrl.u32 %v1217, 7
    %v1219 = vsub.s32 %v1216, %v1218
    %v1220 = vrot.slane %v180, %v1219
    %vm1221 = vcmask 261312
    %v1222 = vsel %vm1221, %v1220, %v1215
    %v1223 = vadd.s32 %v1197, 4294967264
    %v1224 = vlaneseq
    %v1225 = vshrl.u32 %v1224, 7
    %v1226 = vsub.s32 %v1223, %v1225
    %v1227 = vrot.slane %v183, %v1226
    %vm1228 = vcmask 326912
    %v1229 = vsel %vm1228, %v1227, %v1222
    %v1230 = vadd.s32 %v1197, 4294967256
    %v1231 = vlaneseq
    %v1232 = vshrl.u32 %v1231, 7
    %v1233 = vsub.s32 %v1230, %v1232
    %v1234 = vrot.slane %v186, %v1233
    %vm1235 = vcmask 392512
    %v1236 = vsel %vm1235, %v1234, %v1229
    %v1237 = vadd.s32 %v1197, 4294967248
    %v1238 = vlaneseq
    %v1239 = vshrl.u32 %v1238, 7
    %v1240 = vsub.s32 %v1237, %v1239
    %v1241 = vrot.slane %v189, %v1240
    %vm1242 = vcmask 458112
    %v1243 = vsel %vm1242, %v1241, %v1236
    %v1244 = vadd.s32 %v1197, 4294967240
    %v1245 = vlaneseq
    %v1246 = vshrl.u32 %v1245, 7
    %v1247 = vsub.s32 %v1244, %v1246
    %v1248 = vrot.slane %v192, %v1247
    %vm1249 = vcmask 523712
    %v1250 = vsel %vm1249, %v1248, %v1243
    %v1251 = vadd.s32 %v1197, 4294967232
    %v1252 = vlaneseq
    %v1253 = vshrl.u32 %v1252, 7
    %v1254 = vsub.s32 %v1251, %v1253
    %v1255 = vrot.slane %v195, %v1254
    %vm1256 = vcmask 589312
    %v1257 = vsel %vm1256, %v1255, %v1250
    %v1258 = vadd.s32 %v1197, 4294967224
    %v1259 = vlaneseq
    %v1260 = vshrl.u32 %v1259, 7
    %v1261 = vsub.s32 %v1258, %v1260
    %v1262 = vrot.slane %v198, %v1261
    %vm1263 = vcmask 654912
    %v1264 = vsel %vm1263, %v1262, %v1257
    %v1265 = vadd.s32 %v1197, 4294967216
    %v1266 = vlaneseq
    %v1267 = vshrl.u32 %v1266, 7
    %v1268 = vsub.s32 %v1265, %v1267
    %v1269 = vrot.slane %v201, %v1268
    %vm1270 = vcmask 720512
    %v1271 = vsel %vm1270, %v1269, %v1264
    %v1272 = vadd.s32 %v1197, 4294967208
    %v1273 = vlaneseq
    %v1274 = vshrl.u32 %v1273, 7
    %v1275 = vsub.s32 %v1272, %v1274
    %v1276 = vrot.slane %v204, %v1275
    %vm1277 = vcmask 786112
    %v1278 = vsel %vm1277, %v1276, %v1271
    %v1279 = vadd.s32 %v1197, 4294967200
    %v1280 = vlaneseq
    %v1281 = vshrl.u32 %v1280, 7
    %v1282 = vsub.s32 %v1279, %v1281
    %v1283 = vrot.slane %v207, %v1282
    %vm1284 = vcmask 851712
    %v1285 = vsel %vm1284, %v1283, %v1278
    %v1286 = vadd.s32 %v1197, 4294967192
    %v1287 = vlaneseq
    %v1288 = vshrl.u32 %v1287, 7
    %v1289 = vsub.s32 %v1286, %v1288
    %v1290 = vrot.slane %v210, %v1289
    %vm1291 = vcmask 917312
    %v1292 = vsel %vm1291, %v1290, %v1285
    %v1293 = vadd.s32 %v1197, 4294967184
    %v1294 = vlaneseq
    %v1295 = vshrl.u32 %v1294, 7
    %v1296 = vsub.s32 %v1293, %v1295
    %v1297 = vrot.slane %v213, %v1296
    %vm1298 = vcmask 982912
    %v1299 = vsel %vm1298, %v1297, %v1292
    %v1300 = vadd.s32 %v1197, 4294967176
    %v1301 = vlaneseq
    %v1302 = vshrl.u32 %v1301, 7
    %v1303 = vsub.s32 %v1300, %v1302
    %v1304 = vrot.slane %v216, %v1303
    %vm1305 = vcmask 1048512
    %v1306 = vsel %vm1305, %v1304, %v1299
    %v1307 = vlaneseq
    %v1308 = vshrl.u32 %v1307, 7
    %v1309 = vsub.s32 %v1197, %v1308
    %v1310 = vrot.slane %v219, %v1309
    %v1311 = vlaneseq
    %v1312 = vshrl.u32 %v1311, 7
    %v1313 = vsub.s32 %v1202, %v1312
    %v1314 = vrot.slane %v222, %v1313
    %v1315 = vsel %vm1207, %v1314, %v1310
    %v1316 = vlaneseq
    %v1317 = vshrl.u32 %v1316, 7
    %v1318 = vsub.s32 %v1209, %v1317
    %v1319 = vrot.slane %v225, %v1318
    %v1320 = vsel %vm1214, %v1319, %v1315
    %v1321 = vlaneseq
    %v1322 = vshrl.u32 %v1321, 7
    %v1323 = vsub.s32 %v1216, %v1322
    %v1324 = vrot.slane %v228, %v1323
    %v1325 = vsel %vm1221, %v1324, %v1320
    %v1326 = vlaneseq
    %v1327 = vshrl.u32 %v1326, 7
    %v1328 = vsub.s32 %v1223, %v1327
    %v1329 = vrot.slane %v231, %v1328
    %v1330 = vsel %vm1228, %v1329, %v1325
    %v1331 = vlaneseq
    %v1332 = vshrl.u32 %v1331, 7
    %v1333 = vsub.s32 %v1230, %v1332
    %v1334 = vrot.slane %v234, %v1333
    %v1335 = vsel %vm1235, %v1334, %v1330
    %v1336 = vlaneseq
    %v1337 = vshrl.u32 %v1336, 7
    %v1338 = vsub.s32 %v1237, %v1337
    %v1339 = vrot.slane %v237, %v1338
    %v1340 = vsel %vm1242, %v1339, %v1335
    %v1341 = vlaneseq
    %v1342 = vshrl.u32 %v1341, 7
    %v1343 = vsub.s32 %v1244, %v1342
    %v1344 = vrot.slane %v240, %v1343
    %v1345 = vsel %vm1249, %v1344, %v1340
    %v1346 = vlaneseq
    %v1347 = vshrl.u32 %v1346, 7
    %v1348 = vsub.s32 %v1251, %v1347
    %v1349 = vrot.slane %v243, %v1348
    %v1350 = vsel %vm1256, %v1349, %v1345
    %v1351 = vlaneseq
    %v1352 = vshrl.u32 %v1351, 7
    %v1353 = vsub.s32 %v1258, %v1352
    %v1354 = vrot.slane %v246, %v1353
    %v1355 = vsel %vm1263, %v1354, %v1350
    %v1356 = vlaneseq
    %v1357 = vshrl.u32 %v1356, 7
    %v1358 = vsub.s32 %v1265, %v1357
    %v1359 = vrot.slane %v249, %v1358
    %v1360 = vsel %vm1270, %v1359, %v1355
    %v1361 = vlaneseq
    %v1362 = vshrl.u32 %v1361, 7
    %v1363 = vsub.s32 %v1272, %v1362
    %v1364 = vrot.slane %v252, %v1363
    %v1365 = vsel %vm1277, %v1364, %v1360
    %v1366 = vlaneseq
    %v1367 = vshrl.u32 %v1366, 7
    %v1368 = vsub.s32 %v1279, %v1367
    %v1369 = vrot.slane %v255, %v1368
    %v1370 = vsel %vm1284, %v1369, %v1365
    %v1371 = vlaneseq
    %v1372 = vshrl.u32 %v1371, 7
    %v1373 = vsub.s32 %v1286, %v1372
    %v1374 = vrot.slane %v258, %v1373
    %v1375 = vsel %vm1291, %v1374, %v1370
    %v1376 = vlaneseq
    %v1377 = vshrl.u32 %v1376, 7
    %v1378 = vsub.s32 %v1293, %v1377
    %v1379 = vrot.slane %v261, %v1378
    %v1380 = vsel %vm1298, %v1379, %v1375
    %v1381 = vlaneseq
    %v1382 = vshrl.u32 %v1381, 7
    %v1383 = vsub.s32 %v1300, %v1382
    %v1384 = vrot.slane %v264, %v1383
    %v1385 = vsel %vm1305, %v1384, %v1380
    %v1386 = vlaneseq
    %v1387 = vshrl.u32 %v1386, 7
    %v1388 = vsub.s32 %v1197, %v1387
    %v1389 = vrot.slane %v267, %v1388
    %v1390 = vlaneseq
    %v1391 = vshrl.u32 %v1390, 7
    %v1392 = vsub.s32 %v1202, %v1391
    %v1393 = vrot.slane %v270, %v1392
    %v1394 = vsel %vm1207, %v1393, %v1389
    %v1395 = vlaneseq
    %v1396 = vshrl.u32 %v1395, 7
    %v1397 = vsub.s32 %v1209, %v1396
    %v1398 = vrot.slane %v273, %v1397
    %v1399 = vsel %vm1214, %v1398, %v1394
    %v1400 = vlaneseq
    %v1401 = vshrl.u32 %v1400, 7
    %v1402 = vsub.s32 %v1216, %v1401
    %v1403 = vrot.slane %v276, %v1402
    %v1404 = vsel %vm1221, %v1403, %v1399
    %v1405 = vlaneseq
    %v1406 = vshrl.u32 %v1405, 7
    %v1407 = vsub.s32 %v1223, %v1406
    %v1408 = vrot.slane %v279, %v1407
    %v1409 = vsel %vm1228, %v1408, %v1404
    %v1410 = vlaneseq
    %v1411 = vshrl.u32 %v1410, 7
    %v1412 = vsub.s32 %v1230, %v1411
    %v1413 = vrot.slane %v282, %v1412
    %v1414 = vsel %vm1235, %v1413, %v1409
    %v1415 = vlaneseq
    %v1416 = vshrl.u32 %v1415, 7
    %v1417 = vsub.s32 %v1237, %v1416
    %v1418 = vrot.slane %v285, %v1417
    %v1419 = vsel %vm1242, %v1418, %v1414
    %v1420 = vlaneseq
    %v1421 = vshrl.u32 %v1420, 7
    %v1422 = vsub.s32 %v1244, %v1421
    %v1423 = vrot.slane %v288, %v1422
    %v1424 = vsel %vm1249, %v1423, %v1419
    %v1425 = vlaneseq
    %v1426 = vshrl.u32 %v1425, 7
    %v1427 = vsub.s32 %v1251, %v1426
    %v1428 = vrot.slane %v291, %v1427
    %v1429 = vsel %vm1256, %v1428, %v1424
    %v1430 = vlaneseq
    %v1431 = vshrl.u32 %v1430, 7
    %v1432 = vsub.s32 %v1258, %v1431
    %v1433 = vrot.slane %v294, %v1432
    %v1434 = vsel %vm1263, %v1433, %v1429
    %v1435 = vlaneseq
    %v1436 = vshrl.u32 %v1435, 7
    %v1437 = vsub.s32 %v1265, %v1436
    %v1438 = vrot.slane %v297, %v1437
    %v1439 = vsel %vm1270, %v1438, %v1434
    %v1440 = vlaneseq
    %v1441 = vshrl.u32 %v1440, 7
    %v1442 = vsub.s32 %v1272, %v1441
    %v1443 = vrot.slane %v300, %v1442
    %v1444 = vsel %vm1277, %v1443, %v1439
    %v1445 = vlaneseq
    %v1446 = vshrl.u32 %v1445, 7
    %v1447 = vsub.s32 %v1279, %v1446
    %v1448 = vrot.slane %v303, %v1447
    %v1449 = vsel %vm1284, %v1448, %v1444
    %v1450 = vlaneseq
    %v1451 = vshrl.u32 %v1450, 7
    %v1452 = vsub.s32 %v1286, %v1451
    %v1453 = vrot.slane %v306, %v1452
    %v1454 = vsel %vm1291, %v1453, %v1449
    %v1455 = vlaneseq
    %v1456 = vshrl.u32 %v1455, 7
    %v1457 = vsub.s32 %v1293, %v1456
    %v1458 = vrot.slane %v309, %v1457
    %v1459 = vsel %vm1298, %v1458, %v1454
    %v1460 = vlaneseq
    %v1461 = vshrl.u32 %v1460, 7
    %v1462 = vsub.s32 %v1300, %v1461
    %v1463 = vrot.slane %v312, %v1462
    %v1464 = vsel %vm1305, %v1463, %v1459
    %v1465 = vlaneseq
    %v1466 = vshrl.u32 %v1465, 7
    %v1467 = vsub.s32 %v1197, %v1466
    %v1468 = vrot.slane %v315, %v1467
    %v1469 = vlaneseq
    %v1470 = vshrl.u32 %v1469, 7
    %v1471 = vsub.s32 %v1202, %v1470
    %v1472 = vrot.slane %v318, %v1471
    %v1473 = vsel %vm1207, %v1472, %v1468
    %v1474 = vlaneseq
    %v1475 = vshrl.u32 %v1474, 7
    %v1476 = vsub.s32 %v1209, %v1475
    %v1477 = vrot.slane %v321, %v1476
    %v1478 = vsel %vm1214, %v1477, %v1473
    %v1479 = vlaneseq
    %v1480 = vshrl.u32 %v1479, 7
    %v1481 = vsub.s32 %v1216, %v1480
    %v1482 = vrot.slane %v324, %v1481
    %v1483 = vsel %vm1221, %v1482, %v1478
    %v1484 = vlaneseq
    %v1485 = vshrl.u32 %v1484, 7
    %v1486 = vsub.s32 %v1223, %v1485
    %v1487 = vrot.slane %v327, %v1486
    %v1488 = vsel %vm1228, %v1487, %v1483
    %v1489 = vlaneseq
    %v1490 = vshrl.u32 %v1489, 7
    %v1491 = vsub.s32 %v1230, %v1490
    %v1492 = vrot.slane %v330, %v1491
    %v1493 = vsel %vm1235, %v1492, %v1488
    %v1494 = vlaneseq
    %v1495 = vshrl.u32 %v1494, 7
    %v1496 = vsub.s32 %v1237, %v1495
    %v1497 = vrot.slane %v333, %v1496
    %v1498 = vsel %vm1242, %v1497, %v1493
    %v1499 = vlaneseq
    %v1500 = vshrl.u32 %v1499, 7
    %v1501 = vsub.s32 %v1244, %v1500
    %v1502 = vrot.slane %v336, %v1501
    %v1503 = vsel %vm1249, %v1502, %v1498
    %v1504 = vlaneseq
    %v1505 = vshrl.u32 %v1504, 7
    %v1506 = vsub.s32 %v1251, %v1505
    %v1507 = vrot.slane %v339, %v1506
    %v1508 = vsel %vm1256, %v1507, %v1503
    %v1509 = vlaneseq
    %v1510 = vshrl.u32 %v1509, 7
    %v1511 = vsub.s32 %v1258, %v1510
    %v1512 = vrot.slane %v342, %v1511
    %v1513 = vsel %vm1263, %v1512, %v1508
    %v1514 = vlaneseq
    %v1515 = vshrl.u32 %v1514, 7
    %v1516 = vsub.s32 %v1265, %v1515
    %v1517 = vrot.slane %v345, %v1516
    %v1518 = vsel %vm1270, %v1517, %v1513
    %v1519 = vlaneseq
    %v1520 = vshrl.u32 %v1519, 7
    %v1521 = vsub.s32 %v1272, %v1520
    %v1522 = vrot.slane %v348, %v1521
    %v1523 = vsel %vm1277, %v1522, %v1518
    %v1524 = vlaneseq
    %v1525 = vshrl.u32 %v1524, 7
    %v1526 = vsub.s32 %v1279, %v1525
    %v1527 = vrot.slane %v351, %v1526
    %v1528 = vsel %vm1284, %v1527, %v1523
    %v1529 = vlaneseq
    %v1530 = vshrl.u32 %v1529, 7
    %v1531 = vsub.s32 %v1286, %v1530
    %v1532 = vrot.slane %v354, %v1531
    %v1533 = vsel %vm1291, %v1532, %v1528
    %v1534 = vlaneseq
    %v1535 = vshrl.u32 %v1534, 7
    %v1536 = vsub.s32 %v1293, %v1535
    %v1537 = vrot.slane %v357, %v1536
    %v1538 = vsel %vm1298, %v1537, %v1533
    %v1539 = vlaneseq
    %v1540 = vshrl.u32 %v1539, 7
    %v1541 = vsub.s32 %v1300, %v1540
    %v1542 = vrot.slane %v360, %v1541
    %v1543 = vsel %vm1305, %v1542, %v1538
    %vm1544 = vcmask 1041409
    %v1545 = vsel %vm1544, %v1464, %v1306
    %v1546 = vsel %vm1544, %v1543, %v1385
    %v1613 = vlaneseq
    %v1614 = vshrl.u32 %v1613, 7
    %v1615 = vsub.s32 %v1197, %v1614
    %v1616 = vrot.slane %v428, %v1615
    %v1617 = vlaneseq
    %v1618 = vshrl.u32 %v1617, 7
    %v1619 = vsub.s32 %v1202, %v1618
    %v1620 = vrot.slane %v431, %v1619
    %v1621 = vsel %vm1207, %v1620, %v1616
    %v1622 = vlaneseq
    %v1623 = vshrl.u32 %v1622, 7
    %v1624 = vsub.s32 %v1209, %v1623
    %v1625 = vrot.slane %v434, %v1624
    %v1626 = vsel %vm1214, %v1625, %v1621
    %v1627 = vlaneseq
    %v1628 = vshrl.u32 %v1627, 7
    %v1629 = vsub.s32 %v1216, %v1628
    %v1630 = vrot.slane %v437, %v1629
    %v1631 = vsel %vm1221, %v1630, %v1626
    %v1632 = vlaneseq
    %v1633 = vshrl.u32 %v1632, 7
    %v1634 = vsub.s32 %v1223, %v1633
    %v1635 = vrot.slane %v440, %v1634
    %v1636 = vsel %vm1228, %v1635, %v1631
    %v1637 = vlaneseq
    %v1638 = vshrl.u32 %v1637, 7
    %v1639 = vsub.s32 %v1230, %v1638
    %v1640 = vrot.slane %v443, %v1639
    %v1641 = vsel %vm1235, %v1640, %v1636
    %v1642 = vlaneseq
    %v1643 = vshrl.u32 %v1642, 7
    %v1644 = vsub.s32 %v1237, %v1643
    %v1645 = vrot.slane %v446, %v1644
    %v1646 = vsel %vm1242, %v1645, %v1641
    %v1647 = vlaneseq
    %v1648 = vshrl.u32 %v1647, 7
    %v1649 = vsub.s32 %v1244, %v1648
    %v1650 = vrot.slane %v449, %v1649
    %v1651 = vsel %vm1249, %v1650, %v1646
    %v1652 = vlaneseq
    %v1653 = vshrl.u32 %v1652, 7
    %v1654 = vsub.s32 %v1251, %v1653
    %v1655 = vrot.slane %v452, %v1654
    %v1656 = vsel %vm1256, %v1655, %v1651
    %v1657 = vlaneseq
    %v1658 = vshrl.u32 %v1657, 7
    %v1659 = vsub.s32 %v1258, %v1658
    %v1660 = vrot.slane %v455, %v1659
    %v1661 = vsel %vm1263, %v1660, %v1656
    %v1662 = vlaneseq
    %v1663 = vshrl.u32 %v1662, 7
    %v1664 = vsub.s32 %v1265, %v1663
    %v1665 = vrot.slane %v458, %v1664
    %v1666 = vsel %vm1270, %v1665, %v1661
    %v1667 = vlaneseq
    %v1668 = vshrl.u32 %v1667, 7
    %v1669 = vsub.s32 %v1272, %v1668
    %v1670 = vrot.slane %v461, %v1669
    %v1671 = vsel %vm1277, %v1670, %v1666
    %v1672 = vlaneseq
    %v1673 = vshrl.u32 %v1672, 7
    %v1674 = vsub.s32 %v1279, %v1673
    %v1675 = vrot.slane %v464, %v1674
    %v1676 = vsel %vm1284, %v1675, %v1671
    %v1677 = vlaneseq
    %v1678 = vshrl.u32 %v1677, 7
    %v1679 = vsub.s32 %v1286, %v1678
    %v1680 = vrot.slane %v467, %v1679
    %v1681 = vsel %vm1291, %v1680, %v1676
    %v1682 = vlaneseq
    %v1683 = vshrl.u32 %v1682, 7
    %v1684 = vsub.s32 %v1293, %v1683
    %v1685 = vrot.slane %v470, %v1684
    %v1686 = vsel %vm1298, %v1685, %v1681
    %v1687 = vlaneseq
    %v1688 = vshrl.u32 %v1687, 7
    %v1689 = vsub.s32 %v1300, %v1688
    %v1690 = vrot.slane %v473, %v1689
    %v1691 = vsel %vm1305, %v1690, %v1686
    %v1692 = vlaneseq
    %v1693 = vshrl.u32 %v1692, 7
    %v1694 = vsub.s32 %v1197, %v1693
    %v1695 = vrot.slane %v476, %v1694
    %v1696 = vlaneseq
    %v1697 = vshrl.u32 %v1696, 7
    %v1698 = vsub.s32 %v1202, %v1697
    %v1699 = vrot.slane %v479, %v1698
    %v1700 = vsel %vm1207, %v1699, %v1695
    %v1701 = vlaneseq
    %v1702 = vshrl.u32 %v1701, 7
    %v1703 = vsub.s32 %v1209, %v1702
    %v1704 = vrot.slane %v482, %v1703
    %v1705 = vsel %vm1214, %v1704, %v1700
    %v1706 = vlaneseq
    %v1707 = vshrl.u32 %v1706, 7
    %v1708 = vsub.s32 %v1216, %v1707
    %v1709 = vrot.slane %v485, %v1708
    %v1710 = vsel %vm1221, %v1709, %v1705
    %v1711 = vlaneseq
    %v1712 = vshrl.u32 %v1711, 7
    %v1713 = vsub.s32 %v1223, %v1712
    %v1714 = vrot.slane %v488, %v1713
    %v1715 = vsel %vm1228, %v1714, %v1710
    %v1716 = vlaneseq
    %v1717 = vshrl.u32 %v1716, 7
    %v1718 = vsub.s32 %v1230, %v1717
    %v1719 = vrot.slane %v491, %v1718
    %v1720 = vsel %vm1235, %v1719, %v1715
    %v1721 = vlaneseq
    %v1722 = vshrl.u32 %v1721, 7
    %v1723 = vsub.s32 %v1237, %v1722
    %v1724 = vrot.slane %v494, %v1723
    %v1725 = vsel %vm1242, %v1724, %v1720
    %v1726 = vlaneseq
    %v1727 = vshrl.u32 %v1726, 7
    %v1728 = vsub.s32 %v1244, %v1727
    %v1729 = vrot.slane %v497, %v1728
    %v1730 = vsel %vm1249, %v1729, %v1725
    %v1731 = vlaneseq
    %v1732 = vshrl.u32 %v1731, 7
    %v1733 = vsub.s32 %v1251, %v1732
    %v1734 = vrot.slane %v500, %v1733
    %v1735 = vsel %vm1256, %v1734, %v1730
    %v1736 = vlaneseq
    %v1737 = vshrl.u32 %v1736, 7
    %v1738 = vsub.s32 %v1258, %v1737
    %v1739 = vrot.slane %v503, %v1738
    %v1740 = vsel %vm1263, %v1739, %v1735
    %v1741 = vlaneseq
    %v1742 = vshrl.u32 %v1741, 7
    %v1743 = vsub.s32 %v1265, %v1742
    %v1744 = vrot.slane %v506, %v1743
    %v1745 = vsel %vm1270, %v1744, %v1740
    %v1746 = vlaneseq
    %v1747 = vshrl.u32 %v1746, 7
    %v1748 = vsub.s32 %v1272, %v1747
    %v1749 = vrot.slane %v509, %v1748
    %v1750 = vsel %vm1277, %v1749, %v1745
    %v1751 = vlaneseq
    %v1752 = vshrl.u32 %v1751, 7
    %v1753 = vsub.s32 %v1279, %v1752
    %v1754 = vrot.slane %v512, %v1753
    %v1755 = vsel %vm1284, %v1754, %v1750
    %v1756 = vlaneseq
    %v1757 = vshrl.u32 %v1756, 7
    %v1758 = vsub.s32 %v1286, %v1757
    %v1759 = vrot.slane %v515, %v1758
    %v1760 = vsel %vm1291, %v1759, %v1755
    %v1761 = vlaneseq
    %v1762 = vshrl.u32 %v1761, 7
    %v1763 = vsub.s32 %v1293, %v1762
    %v1764 = vrot.slane %v518, %v1763
    %v1765 = vsel %vm1298, %v1764, %v1760
    %v1766 = vlaneseq
    %v1767 = vshrl.u32 %v1766, 7
    %v1768 = vsub.s32 %v1300, %v1767
    %v1769 = vrot.slane %v521, %v1768
    %v1770 = vsel %vm1305, %v1769, %v1765
    %v1771 = vlaneseq
    %v1772 = vshrl.u32 %v1771, 7
    %v1773 = vsub.s32 %v1197, %v1772
    %v1774 = vrot.slane %v524, %v1773
    %v1775 = vlaneseq
    %v1776 = vshrl.u32 %v1775, 7
    %v1777 = vsub.s32 %v1202, %v1776
    %v1778 = vrot.slane %v527, %v1777
    %v1779 = vsel %vm1207, %v1778, %v1774
    %v1780 = vlaneseq
    %v1781 = vshrl.u32 %v1780, 7
    %v1782 = vsub.s32 %v1209, %v1781
    %v1783 = vrot.slane %v530, %v1782
    %v1784 = vsel %vm1214, %v1783, %v1779
    %v1785 = vlaneseq
    %v1786 = vshrl.u32 %v1785, 7
    %v1787 = vsub.s32 %v1216, %v1786
    %v1788 = vrot.slane %v533, %v1787
    %v1789 = vsel %vm1221, %v1788, %v1784
    %v1790 = vlaneseq
    %v1791 = vshrl.u32 %v1790, 7
    %v1792 = vsub.s32 %v1223, %v1791
    %v1793 = vrot.slane %v536, %v1792
    %v1794 = vsel %vm1228, %v1793, %v1789
    %v1795 = vlaneseq
    %v1796 = vshrl.u32 %v1795, 7
    %v1797 = vsub.s32 %v1230, %v1796
    %v1798 = vrot.slane %v539, %v1797
    %v1799 = vsel %vm1235, %v1798, %v1794
    %v1800 = vlaneseq
    %v1801 = vshrl.u32 %v1800, 7
    %v1802 = vsub.s32 %v1237, %v1801
    %v1803 = vrot.slane %v542, %v1802
    %v1804 = vsel %vm1242, %v1803, %v1799
    %v1805 = vlaneseq
    %v1806 = vshrl.u32 %v1805, 7
    %v1807 = vsub.s32 %v1244, %v1806
    %v1808 = vrot.slane %v545, %v1807
    %v1809 = vsel %vm1249, %v1808, %v1804
    %v1810 = vlaneseq
    %v1811 = vshrl.u32 %v1810, 7
    %v1812 = vsub.s32 %v1251, %v1811
    %v1813 = vrot.slane %v548, %v1812
    %v1814 = vsel %vm1256, %v1813, %v1809
    %v1815 = vlaneseq
    %v1816 = vshrl.u32 %v1815, 7
    %v1817 = vsub.s32 %v1258, %v1816
    %v1818 = vrot.slane %v551, %v1817
    %v1819 = vsel %vm1263, %v1818, %v1814
    %v1820 = vlaneseq
    %v1821 = vshrl.u32 %v1820, 7
    %v1822 = vsub.s32 %v1265, %v1821
    %v1823 = vrot.slane %v554, %v1822
    %v1824 = vsel %vm1270, %v1823, %v1819
    %v1825 = vlaneseq
    %v1826 = vshrl.u32 %v1825, 7
    %v1827 = vsub.s32 %v1272, %v1826
    %v1828 = vrot.slane %v557, %v1827
    %v1829 = vsel %vm1277, %v1828, %v1824
    %v1830 = vlaneseq
    %v1831 = vshrl.u32 %v1830, 7
    %v1832 = vsub.s32 %v1279, %v1831
    %v1833 = vrot.slane %v560, %v1832
    %v1834 = vsel %vm1284, %v1833, %v1829
    %v1835 = vlaneseq
    %v1836 = vshrl.u32 %v1835, 7
    %v1837 = vsub.s32 %v1286, %v1836
    %v1838 = vrot.slane %v563, %v1837
    %v1839 = vsel %vm1291, %v1838, %v1834
    %v1840 = vlaneseq
    %v1841 = vshrl.u32 %v1840, 7
    %v1842 = vsub.s32 %v1293, %v1841
    %v1843 = vrot.slane %v566, %v1842
    %v1844 = vsel %vm1298, %v1843, %v1839
    %v1845 = vlaneseq
    %v1846 = vshrl.u32 %v1845, 7
    %v1847 = vsub.s32 %v1300, %v1846
    %v1848 = vrot.slane %v569, %v1847
    %v1849 = vsel %vm1305, %v1848, %v1844
    %v1850 = vlaneseq
    %v1851 = vshrl.u32 %v1850, 7
    %v1852 = vsub.s32 %v1197, %v1851
    %v1853 = vrot.slane %v572, %v1852
    %v1854 = vlaneseq
    %v1855 = vshrl.u32 %v1854, 7
    %v1856 = vsub.s32 %v1202, %v1855
    %v1857 = vrot.slane %v575, %v1856
    %v1858 = vsel %vm1207, %v1857, %v1853
    %v1859 = vlaneseq
    %v1860 = vshrl.u32 %v1859, 7
    %v1861 = vsub.s32 %v1209, %v1860
    %v1862 = vrot.slane %v578, %v1861
    %v1863 = vsel %vm1214, %v1862, %v1858
    %v1864 = vlaneseq
    %v1865 = vshrl.u32 %v1864, 7
    %v1866 = vsub.s32 %v1216, %v1865
    %v1867 = vrot.slane %v581, %v1866
    %v1868 = vsel %vm1221, %v1867, %v1863
    %v1869 = vlaneseq
    %v1870 = vshrl.u32 %v1869, 7
    %v1871 = vsub.s32 %v1223, %v1870
    %v1872 = vrot.slane %v584, %v1871
    %v1873 = vsel %vm1228, %v1872, %v1868
    %v1874 = vlaneseq
    %v1875 = vshrl.u32 %v1874, 7
    %v1876 = vsub.s32 %v1230, %v1875
    %v1877 = vrot.slane %v587, %v1876
    %v1878 = vsel %vm1235, %v1877, %v1873
    %v1879 = vlaneseq
    %v1880 = vshrl.u32 %v1879, 7
    %v1881 = vsub.s32 %v1237, %v1880
    %v1882 = vrot.slane %v590, %v1881
    %v1883 = vsel %vm1242, %v1882, %v1878
    %v1884 = vlaneseq
    %v1885 = vshrl.u32 %v1884, 7
    %v1886 = vsub.s32 %v1244, %v1885
    %v1887 = vrot.slane %v593, %v1886
    %v1888 = vsel %vm1249, %v1887, %v1883
    %v1889 = vlaneseq
    %v1890 = vshrl.u32 %v1889, 7
    %v1891 = vsub.s32 %v1251, %v1890
    %v1892 = vrot.slane %v596, %v1891
    %v1893 = vsel %vm1256, %v1892, %v1888
    %v1894 = vlaneseq
    %v1895 = vshrl.u32 %v1894, 7
    %v1896 = vsub.s32 %v1258, %v1895
    %v1897 = vrot.slane %v599, %v1896
    %v1898 = vsel %vm1263, %v1897, %v1893
    %v1899 = vlaneseq
    %v1900 = vshrl.u32 %v1899, 7
    %v1901 = vsub.s32 %v1265, %v1900
    %v1902 = vrot.slane %v602, %v1901
    %v1903 = vsel %vm1270, %v1902, %v1898
    %v1904 = vlaneseq
    %v1905 = vshrl.u32 %v1904, 7
    %v1906 = vsub.s32 %v1272, %v1905
    %v1907 = vrot.slane %v605, %v1906
    %v1908 = vsel %vm1277, %v1907, %v1903
    %v1909 = vlaneseq
    %v1910 = vshrl.u32 %v1909, 7
    %v1911 = vsub.s32 %v1279, %v1910
    %v1912 = vrot.slane %v608, %v1911
    %v1913 = vsel %vm1284, %v1912, %v1908
    %v1914 = vlaneseq
    %v1915 = vshrl.u32 %v1914, 7
    %v1916 = vsub.s32 %v1286, %v1915
    %v1917 = vrot.slane %v611, %v1916
    %v1918 = vsel %vm1291, %v1917, %v1913
    %v1919 = vlaneseq
    %v1920 = vshrl.u32 %v1919, 7
    %v1921 = vsub.s32 %v1293, %v1920
    %v1922 = vrot.slane %v614, %v1921
    %v1923 = vsel %vm1298, %v1922, %v1918
    %v1924 = vlaneseq
    %v1925 = vshrl.u32 %v1924, 7
    %v1926 = vsub.s32 %v1300, %v1925
    %v1927 = vrot.slane %v617, %v1926
    %v1928 = vsel %vm1305, %v1927, %v1923
    %v1929 = vsel %vm1544, %v1849, %v1691
    %v1930 = vsel %vm1544, %v1928, %v1770
    %v1997 = vlaneseq
    %v1998 = vshrl.u32 %v1997, 7
    %v1999 = vsub.s32 %v1197, %v1998
    %v2000 = vrot.slane %v685, %v1999
    %v2001 = vlaneseq
    %v2002 = vshrl.u32 %v2001, 7
    %v2003 = vsub.s32 %v1202, %v2002
    %v2004 = vrot.slane %v688, %v2003
    %v2005 = vsel %vm1207, %v2004, %v2000
    %v2006 = vlaneseq
    %v2007 = vshrl.u32 %v2006, 7
    %v2008 = vsub.s32 %v1209, %v2007
    %v2009 = vrot.slane %v691, %v2008
    %v2010 = vsel %vm1214, %v2009, %v2005
    %v2011 = vlaneseq
    %v2012 = vshrl.u32 %v2011, 7
    %v2013 = vsub.s32 %v1216, %v2012
    %v2014 = vrot.slane %v694, %v2013
    %v2015 = vsel %vm1221, %v2014, %v2010
    %v2016 = vlaneseq
    %v2017 = vshrl.u32 %v2016, 7
    %v2018 = vsub.s32 %v1223, %v2017
    %v2019 = vrot.slane %v697, %v2018
    %v2020 = vsel %vm1228, %v2019, %v2015
    %v2021 = vlaneseq
    %v2022 = vshrl.u32 %v2021, 7
    %v2023 = vsub.s32 %v1230, %v2022
    %v2024 = vrot.slane %v700, %v2023
    %v2025 = vsel %vm1235, %v2024, %v2020
    %v2026 = vlaneseq
    %v2027 = vshrl.u32 %v2026, 7
    %v2028 = vsub.s32 %v1237, %v2027
    %v2029 = vrot.slane %v703, %v2028
    %v2030 = vsel %vm1242, %v2029, %v2025
    %v2031 = vlaneseq
    %v2032 = vshrl.u32 %v2031, 7
    %v2033 = vsub.s32 %v1244, %v2032
    %v2034 = vrot.slane %v706, %v2033
    %v2035 = vsel %vm1249, %v2034, %v2030
    %v2036 = vlaneseq
    %v2037 = vshrl.u32 %v2036, 7
    %v2038 = vsub.s32 %v1251, %v2037
    %v2039 = vrot.slane %v709, %v2038
    %v2040 = vsel %vm1256, %v2039, %v2035
    %v2041 = vlaneseq
    %v2042 = vshrl.u32 %v2041, 7
    %v2043 = vsub.s32 %v1258, %v2042
    %v2044 = vrot.slane %v712, %v2043
    %v2045 = vsel %vm1263, %v2044, %v2040
    %v2046 = vlaneseq
    %v2047 = vshrl.u32 %v2046, 7
    %v2048 = vsub.s32 %v1265, %v2047
    %v2049 = vrot.slane %v715, %v2048
    %v2050 = vsel %vm1270, %v2049, %v2045
    %v2051 = vlaneseq
    %v2052 = vshrl.u32 %v2051, 7
    %v2053 = vsub.s32 %v1272, %v2052
    %v2054 = vrot.slane %v718, %v2053
    %v2055 = vsel %vm1277, %v2054, %v2050
    %v2056 = vlaneseq
    %v2057 = vshrl.u32 %v2056, 7
    %v2058 = vsub.s32 %v1279, %v2057
    %v2059 = vrot.slane %v721, %v2058
    %v2060 = vsel %vm1284, %v2059, %v2055
    %v2061 = vlaneseq
    %v2062 = vshrl.u32 %v2061, 7
    %v2063 = vsub.s32 %v1286, %v2062
    %v2064 = vrot.slane %v724, %v2063
    %v2065 = vsel %vm1291, %v2064, %v2060
    %v2066 = vlaneseq
    %v2067 = vshrl.u32 %v2066, 7
    %v2068 = vsub.s32 %v1293, %v2067
    %v2069 = vrot.slane %v727, %v2068
    %v2070 = vsel %vm1298, %v2069, %v2065
    %v2071 = vlaneseq
    %v2072 = vshrl.u32 %v2071, 7
    %v2073 = vsub.s32 %v1300, %v2072
    %v2074 = vrot.slane %v730, %v2073
    %v2075 = vsel %vm1305, %v2074, %v2070
    %v2076 = vlaneseq
    %v2077 = vshrl.u32 %v2076, 7
    %v2078 = vsub.s32 %v1197, %v2077
    %v2079 = vrot.slane %v733, %v2078
    %v2080 = vlaneseq
    %v2081 = vshrl.u32 %v2080, 7
    %v2082 = vsub.s32 %v1202, %v2081
    %v2083 = vrot.slane %v736, %v2082
    %v2084 = vsel %vm1207, %v2083, %v2079
    %v2085 = vlaneseq
    %v2086 = vshrl.u32 %v2085, 7
    %v2087 = vsub.s32 %v1209, %v2086
    %v2088 = vrot.slane %v739, %v2087
    %v2089 = vsel %vm1214, %v2088, %v2084
    %v2090 = vlaneseq
    %v2091 = vshrl.u32 %v2090, 7
    %v2092 = vsub.s32 %v1216, %v2091
    %v2093 = vrot.slane %v742, %v2092
    %v2094 = vsel %vm1221, %v2093, %v2089
    %v2095 = vlaneseq
    %v2096 = vshrl.u32 %v2095, 7
    %v2097 = vsub.s32 %v1223, %v2096
    %v2098 = vrot.slane %v745, %v2097
    %v2099 = vsel %vm1228, %v2098, %v2094
    %v2100 = vlaneseq
    %v2101 = vshrl.u32 %v2100, 7
    %v2102 = vsub.s32 %v1230, %v2101
    %v2103 = vrot.slane %v748, %v2102
    %v2104 = vsel %vm1235, %v2103, %v2099
    %v2105 = vlaneseq
    %v2106 = vshrl.u32 %v2105, 7
    %v2107 = vsub.s32 %v1237, %v2106
    %v2108 = vrot.slane %v751, %v2107
    %v2109 = vsel %vm1242, %v2108, %v2104
    %v2110 = vlaneseq
    %v2111 = vshrl.u32 %v2110, 7
    %v2112 = vsub.s32 %v1244, %v2111
    %v2113 = vrot.slane %v754, %v2112
    %v2114 = vsel %vm1249, %v2113, %v2109
    %v2115 = vlaneseq
    %v2116 = vshrl.u32 %v2115, 7
    %v2117 = vsub.s32 %v1251, %v2116
    %v2118 = vrot.slane %v757, %v2117
    %v2119 = vsel %vm1256, %v2118, %v2114
    %v2120 = vlaneseq
    %v2121 = vshrl.u32 %v2120, 7
    %v2122 = vsub.s32 %v1258, %v2121
    %v2123 = vrot.slane %v760, %v2122
    %v2124 = vsel %vm1263, %v2123, %v2119
    %v2125 = vlaneseq
    %v2126 = vshrl.u32 %v2125, 7
    %v2127 = vsub.s32 %v1265, %v2126
    %v2128 = vrot.slane %v763, %v2127
    %v2129 = vsel %vm1270, %v2128, %v2124
    %v2130 = vlaneseq
    %v2131 = vshrl.u32 %v2130, 7
    %v2132 = vsub.s32 %v1272, %v2131
    %v2133 = vrot.slane %v766, %v2132
    %v2134 = vsel %vm1277, %v2133, %v2129
    %v2135 = vlaneseq
    %v2136 = vshrl.u32 %v2135, 7
    %v2137 = vsub.s32 %v1279, %v2136
    %v2138 = vrot.slane %v769, %v2137
    %v2139 = vsel %vm1284, %v2138, %v2134
    %v2140 = vlaneseq
    %v2141 = vshrl.u32 %v2140, 7
    %v2142 = vsub.s32 %v1286, %v2141
    %v2143 = vrot.slane %v772, %v2142
    %v2144 = vsel %vm1291, %v2143, %v2139
    %v2145 = vlaneseq
    %v2146 = vshrl.u32 %v2145, 7
    %v2147 = vsub.s32 %v1293, %v2146
    %v2148 = vrot.slane %v775, %v2147
    %v2149 = vsel %vm1298, %v2148, %v2144
    %v2150 = vlaneseq
    %v2151 = vshrl.u32 %v2150, 7
    %v2152 = vsub.s32 %v1300, %v2151
    %v2153 = vrot.slane %v778, %v2152
    %v2154 = vsel %vm1305, %v2153, %v2149
    %v2155 = vlaneseq
    %v2156 = vshrl.u32 %v2155, 7
    %v2157 = vsub.s32 %v1197, %v2156
    %v2158 = vrot.slane %v781, %v2157
    %v2159 = vlaneseq
    %v2160 = vshrl.u32 %v2159, 7
    %v2161 = vsub.s32 %v1202, %v2160
    %v2162 = vrot.slane %v784, %v2161
    %v2163 = vsel %vm1207, %v2162, %v2158
    %v2164 = vlaneseq
    %v2165 = vshrl.u32 %v2164, 7
    %v2166 = vsub.s32 %v1209, %v2165
    %v2167 = vrot.slane %v787, %v2166
    %v2168 = vsel %vm1214, %v2167, %v2163
    %v2169 = vlaneseq
    %v2170 = vshrl.u32 %v2169, 7
    %v2171 = vsub.s32 %v1216, %v2170
    %v2172 = vrot.slane %v790, %v2171
    %v2173 = vsel %vm1221, %v2172, %v2168
    %v2174 = vlaneseq
    %v2175 = vshrl.u32 %v2174, 7
    %v2176 = vsub.s32 %v1223, %v2175
    %v2177 = vrot.slane %v793, %v2176
    %v2178 = vsel %vm1228, %v2177, %v2173
    %v2179 = vlaneseq
    %v2180 = vshrl.u32 %v2179, 7
    %v2181 = vsub.s32 %v1230, %v2180
    %v2182 = vrot.slane %v796, %v2181
    %v2183 = vsel %vm1235, %v2182, %v2178
    %v2184 = vlaneseq
    %v2185 = vshrl.u32 %v2184, 7
    %v2186 = vsub.s32 %v1237, %v2185
    %v2187 = vrot.slane %v799, %v2186
    %v2188 = vsel %vm1242, %v2187, %v2183
    %v2189 = vlaneseq
    %v2190 = vshrl.u32 %v2189, 7
    %v2191 = vsub.s32 %v1244, %v2190
    %v2192 = vrot.slane %v802, %v2191
    %v2193 = vsel %vm1249, %v2192, %v2188
    %v2194 = vlaneseq
    %v2195 = vshrl.u32 %v2194, 7
    %v2196 = vsub.s32 %v1251, %v2195
    %v2197 = vrot.slane %v805, %v2196
    %v2198 = vsel %vm1256, %v2197, %v2193
    %v2199 = vlaneseq
    %v2200 = vshrl.u32 %v2199, 7
    %v2201 = vsub.s32 %v1258, %v2200
    %v2202 = vrot.slane %v808, %v2201
    %v2203 = vsel %vm1263, %v2202, %v2198
    %v2204 = vlaneseq
    %v2205 = vshrl.u32 %v2204, 7
    %v2206 = vsub.s32 %v1265, %v2205
    %v2207 = vrot.slane %v811, %v2206
    %v2208 = vsel %vm1270, %v2207, %v2203
    %v2209 = vlaneseq
    %v2210 = vshrl.u32 %v2209, 7
    %v2211 = vsub.s32 %v1272, %v2210
    %v2212 = vrot.slane %v814, %v2211
    %v2213 = vsel %vm1277, %v2212, %v2208
    %v2214 = vlaneseq
    %v2215 = vshrl.u32 %v2214, 7
    %v2216 = vsub.s32 %v1279, %v2215
    %v2217 = vrot.slane %v817, %v2216
    %v2218 = vsel %vm1284, %v2217, %v2213
    %v2219 = vlaneseq
    %v2220 = vshrl.u32 %v2219, 7
    %v2221 = vsub.s32 %v1286, %v2220
    %v2222 = vrot.slane %v820, %v2221
    %v2223 = vsel %vm1291, %v2222, %v2218
    %v2224 = vlaneseq
    %v2225 = vshrl.u32 %v2224, 7
    %v2226 = vsub.s32 %v1293, %v2225
    %v2227 = vrot.slane %v823, %v2226
    %v2228 = vsel %vm1298, %v2227, %v2223
    %v2229 = vlaneseq
    %v2230 = vshrl.u32 %v2229, 7
    %v2231 = vsub.s32 %v1300, %v2230
    %v2232 = vrot.slane %v826, %v2231
    %v2233 = vsel %vm1305, %v2232, %v2228
    %v2234 = vlaneseq
    %v2235 = vshrl.u32 %v2234, 7
    %v2236 = vsub.s32 %v1197, %v2235
    %v2237 = vrot.slane %v829, %v2236
    %v2238 = vlaneseq
    %v2239 = vshrl.u32 %v2238, 7
    %v2240 = vsub.s32 %v1202, %v2239
    %v2241 = vrot.slane %v832, %v2240
    %v2242 = vsel %vm1207, %v2241, %v2237
    %v2243 = vlaneseq
    %v2244 = vshrl.u32 %v2243, 7
    %v2245 = vsub.s32 %v1209, %v2244
    %v2246 = vrot.slane %v835, %v2245
    %v2247 = vsel %vm1214, %v2246, %v2242
    %v2248 = vlaneseq
    %v2249 = vshrl.u32 %v2248, 7
    %v2250 = vsub.s32 %v1216, %v2249
    %v2251 = vrot.slane %v838, %v2250
    %v2252 = vsel %vm1221, %v2251, %v2247
    %v2253 = vlaneseq
    %v2254 = vshrl.u32 %v2253, 7
    %v2255 = vsub.s32 %v1223, %v2254
    %v2256 = vrot.slane %v841, %v2255
    %v2257 = vsel %vm1228, %v2256, %v2252
    %v2258 = vlaneseq
    %v2259 = vshrl.u32 %v2258, 7
    %v2260 = vsub.s32 %v1230, %v2259
    %v2261 = vrot.slane %v844, %v2260
    %v2262 = vsel %vm1235, %v2261, %v2257
    %v2263 = vlaneseq
    %v2264 = vshrl.u32 %v2263, 7
    %v2265 = vsub.s32 %v1237, %v2264
    %v2266 = vrot.slane %v847, %v2265
    %v2267 = vsel %vm1242, %v2266, %v2262
    %v2268 = vlaneseq
    %v2269 = vshrl.u32 %v2268, 7
    %v2270 = vsub.s32 %v1244, %v2269
    %v2271 = vrot.slane %v850, %v2270
    %v2272 = vsel %vm1249, %v2271, %v2267
    %v2273 = vlaneseq
    %v2274 = vshrl.u32 %v2273, 7
    %v2275 = vsub.s32 %v1251, %v2274
    %v2276 = vrot.slane %v853, %v2275
    %v2277 = vsel %vm1256, %v2276, %v2272
    %v2278 = vlaneseq
    %v2279 = vshrl.u32 %v2278, 7
    %v2280 = vsub.s32 %v1258, %v2279
    %v2281 = vrot.slane %v856, %v2280
    %v2282 = vsel %vm1263, %v2281, %v2277
    %v2283 = vlaneseq
    %v2284 = vshrl.u32 %v2283, 7
    %v2285 = vsub.s32 %v1265, %v2284
    %v2286 = vrot.slane %v859, %v2285
    %v2287 = vsel %vm1270, %v2286, %v2282
    %v2288 = vlaneseq
    %v2289 = vshrl.u32 %v2288, 7
    %v2290 = vsub.s32 %v1272, %v2289
    %v2291 = vrot.slane %v862, %v2290
    %v2292 = vsel %vm1277, %v2291, %v2287
    %v2293 = vlaneseq
    %v2294 = vshrl.u32 %v2293, 7
    %v2295 = vsub.s32 %v1279, %v2294
    %v2296 = vrot.slane %v865, %v2295
    %v2297 = vsel %vm1284, %v2296, %v2292
    %v2298 = vlaneseq
    %v2299 = vshrl.u32 %v2298, 7
    %v2300 = vsub.s32 %v1286, %v2299
    %v2301 = vrot.slane %v868, %v2300
    %v2302 = vsel %vm1291, %v2301, %v2297
    %v2303 = vlaneseq
    %v2304 = vshrl.u32 %v2303, 7
    %v2305 = vsub.s32 %v1293, %v2304
    %v2306 = vrot.slane %v871, %v2305
    %v2307 = vsel %vm1298, %v2306, %v2302
    %v2308 = vlaneseq
    %v2309 = vshrl.u32 %v2308, 7
    %v2310 = vsub.s32 %v1300, %v2309
    %v2311 = vrot.slane %v874, %v2310
    %v2312 = vsel %vm1305, %v2311, %v2307
    %v2313 = vsel %vm1544, %v2233, %v2075
    %v2314 = vsel %vm1544, %v2312, %v2154
    %v2381 = vlaneseq
    %v2382 = vshrl.u32 %v2381, 7
    %v2383 = vsub.s32 %v1197, %v2382
    %v2384 = vrot.slane %v942, %v2383
    %v2385 = vlaneseq
    %v2386 = vshrl.u32 %v2385, 7
    %v2387 = vsub.s32 %v1202, %v2386
    %v2388 = vrot.slane %v945, %v2387
    %v2389 = vsel %vm1207, %v2388, %v2384
    %v2390 = vlaneseq
    %v2391 = vshrl.u32 %v2390, 7
    %v2392 = vsub.s32 %v1209, %v2391
    %v2393 = vrot.slane %v948, %v2392
    %v2394 = vsel %vm1214, %v2393, %v2389
    %v2395 = vlaneseq
    %v2396 = vshrl.u32 %v2395, 7
    %v2397 = vsub.s32 %v1216, %v2396
    %v2398 = vrot.slane %v951, %v2397
    %v2399 = vsel %vm1221, %v2398, %v2394
    %v2400 = vlaneseq
    %v2401 = vshrl.u32 %v2400, 7
    %v2402 = vsub.s32 %v1223, %v2401
    %v2403 = vrot.slane %v954, %v2402
    %v2404 = vsel %vm1228, %v2403, %v2399
    %v2405 = vlaneseq
    %v2406 = vshrl.u32 %v2405, 7
    %v2407 = vsub.s32 %v1230, %v2406
    %v2408 = vrot.slane %v957, %v2407
    %v2409 = vsel %vm1235, %v2408, %v2404
    %v2410 = vlaneseq
    %v2411 = vshrl.u32 %v2410, 7
    %v2412 = vsub.s32 %v1237, %v2411
    %v2413 = vrot.slane %v960, %v2412
    %v2414 = vsel %vm1242, %v2413, %v2409
    %v2415 = vlaneseq
    %v2416 = vshrl.u32 %v2415, 7
    %v2417 = vsub.s32 %v1244, %v2416
    %v2418 = vrot.slane %v963, %v2417
    %v2419 = vsel %vm1249, %v2418, %v2414
    %v2420 = vlaneseq
    %v2421 = vshrl.u32 %v2420, 7
    %v2422 = vsub.s32 %v1251, %v2421
    %v2423 = vrot.slane %v966, %v2422
    %v2424 = vsel %vm1256, %v2423, %v2419
    %v2425 = vlaneseq
    %v2426 = vshrl.u32 %v2425, 7
    %v2427 = vsub.s32 %v1258, %v2426
    %v2428 = vrot.slane %v969, %v2427
    %v2429 = vsel %vm1263, %v2428, %v2424
    %v2430 = vlaneseq
    %v2431 = vshrl.u32 %v2430, 7
    %v2432 = vsub.s32 %v1265, %v2431
    %v2433 = vrot.slane %v972, %v2432
    %v2434 = vsel %vm1270, %v2433, %v2429
    %v2435 = vlaneseq
    %v2436 = vshrl.u32 %v2435, 7
    %v2437 = vsub.s32 %v1272, %v2436
    %v2438 = vrot.slane %v975, %v2437
    %v2439 = vsel %vm1277, %v2438, %v2434
    %v2440 = vlaneseq
    %v2441 = vshrl.u32 %v2440, 7
    %v2442 = vsub.s32 %v1279, %v2441
    %v2443 = vrot.slane %v978, %v2442
    %v2444 = vsel %vm1284, %v2443, %v2439
    %v2445 = vlaneseq
    %v2446 = vshrl.u32 %v2445, 7
    %v2447 = vsub.s32 %v1286, %v2446
    %v2448 = vrot.slane %v981, %v2447
    %v2449 = vsel %vm1291, %v2448, %v2444
    %v2450 = vlaneseq
    %v2451 = vshrl.u32 %v2450, 7
    %v2452 = vsub.s32 %v1293, %v2451
    %v2453 = vrot.slane %v984, %v2452
    %v2454 = vsel %vm1298, %v2453, %v2449
    %v2455 = vlaneseq
    %v2456 = vshrl.u32 %v2455, 7
    %v2457 = vsub.s32 %v1300, %v2456
    %v2458 = vrot.slane %v987, %v2457
    %v2459 = vsel %vm1305, %v2458, %v2454
    %v2460 = vlaneseq
    %v2461 = vshrl.u32 %v2460, 7
    %v2462 = vsub.s32 %v1197, %v2461
    %v2463 = vrot.slane %v990, %v2462
    %v2464 = vlaneseq
    %v2465 = vshrl.u32 %v2464, 7
    %v2466 = vsub.s32 %v1202, %v2465
    %v2467 = vrot.slane %v993, %v2466
    %v2468 = vsel %vm1207, %v2467, %v2463
    %v2469 = vlaneseq
    %v2470 = vshrl.u32 %v2469, 7
    %v2471 = vsub.s32 %v1209, %v2470
    %v2472 = vrot.slane %v996, %v2471
    %v2473 = vsel %vm1214, %v2472, %v2468
    %v2474 = vlaneseq
    %v2475 = vshrl.u32 %v2474, 7
    %v2476 = vsub.s32 %v1216, %v2475
    %v2477 = vrot.slane %v999, %v2476
    %v2478 = vsel %vm1221, %v2477, %v2473
    %v2479 = vlaneseq
    %v2480 = vshrl.u32 %v2479, 7
    %v2481 = vsub.s32 %v1223, %v2480
    %v2482 = vrot.slane %v1002, %v2481
    %v2483 = vsel %vm1228, %v2482, %v2478
    %v2484 = vlaneseq
    %v2485 = vshrl.u32 %v2484, 7
    %v2486 = vsub.s32 %v1230, %v2485
    %v2487 = vrot.slane %v1005, %v2486
    %v2488 = vsel %vm1235, %v2487, %v2483
    %v2489 = vlaneseq
    %v2490 = vshrl.u32 %v2489, 7
    %v2491 = vsub.s32 %v1237, %v2490
    %v2492 = vrot.slane %v1008, %v2491
    %v2493 = vsel %vm1242, %v2492, %v2488
    %v2494 = vlaneseq
    %v2495 = vshrl.u32 %v2494, 7
    %v2496 = vsub.s32 %v1244, %v2495
    %v2497 = vrot.slane %v1011, %v2496
    %v2498 = vsel %vm1249, %v2497, %v2493
    %v2499 = vlaneseq
    %v2500 = vshrl.u32 %v2499, 7
    %v2501 = vsub.s32 %v1251, %v2500
    %v2502 = vrot.slane %v1014, %v2501
    %v2503 = vsel %vm1256, %v2502, %v2498
    %v2504 = vlaneseq
    %v2505 = vshrl.u32 %v2504, 7
    %v2506 = vsub.s32 %v1258, %v2505
    %v2507 = vrot.slane %v1017, %v2506
    %v2508 = vsel %vm1263, %v2507, %v2503
    %v2509 = vlaneseq
    %v2510 = vshrl.u32 %v2509, 7
    %v2511 = vsub.s32 %v1265, %v2510
    %v2512 = vrot.slane %v1020, %v2511
    %v2513 = vsel %vm1270, %v2512, %v2508
    %v2514 = vlaneseq
    %v2515 = vshrl.u32 %v2514, 7
    %v2516 = vsub.s32 %v1272, %v2515
    %v2517 = vrot.slane %v1023, %v2516
    %v2518 = vsel %vm1277, %v2517, %v2513
    %v2519 = vlaneseq
    %v2520 = vshrl.u32 %v2519, 7
    %v2521 = vsub.s32 %v1279, %v2520
    %v2522 = vrot.slane %v1026, %v2521
    %v2523 = vsel %vm1284, %v2522, %v2518
    %v2524 = vlaneseq
    %v2525 = vshrl.u32 %v2524, 7
    %v2526 = vsub.s32 %v1286, %v2525
    %v2527 = vrot.slane %v1029, %v2526
    %v2528 = vsel %vm1291, %v2527, %v2523
    %v2529 = vlaneseq
    %v2530 = vshrl.u32 %v2529, 7
    %v2531 = vsub.s32 %v1293, %v2530
    %v2532 = vrot.slane %v1032, %v2531
    %v2533 = vsel %vm1298, %v2532, %v2528
    %v2534 = vlaneseq
    %v2535 = vshrl.u32 %v2534, 7
    %v2536 = vsub.s32 %v1300, %v2535
    %v2537 = vrot.slane %v1035, %v2536
    %v2538 = vsel %vm1305, %v2537, %v2533
    %v2539 = vlaneseq
    %v2540 = vshrl.u32 %v2539, 7
    %v2541 = vsub.s32 %v1197, %v2540
    %v2542 = vrot.slane %v1038, %v2541
    %v2543 = vlaneseq
    %v2544 = vshrl.u32 %v2543, 7
    %v2545 = vsub.s32 %v1202, %v2544
    %v2546 = vrot.slane %v1041, %v2545
    %v2547 = vsel %vm1207, %v2546, %v2542
    %v2548 = vlaneseq
    %v2549 = vshrl.u32 %v2548, 7
    %v2550 = vsub.s32 %v1209, %v2549
    %v2551 = vrot.slane %v1044, %v2550
    %v2552 = vsel %vm1214, %v2551, %v2547
    %v2553 = vlaneseq
    %v2554 = vshrl.u32 %v2553, 7
    %v2555 = vsub.s32 %v1216, %v2554
    %v2556 = vrot.slane %v1047, %v2555
    %v2557 = vsel %vm1221, %v2556, %v2552
    %v2558 = vlaneseq
    %v2559 = vshrl.u32 %v2558, 7
    %v2560 = vsub.s32 %v1223, %v2559
    %v2561 = vrot.slane %v1050, %v2560
    %v2562 = vsel %vm1228, %v2561, %v2557
    %v2563 = vlaneseq
    %v2564 = vshrl.u32 %v2563, 7
    %v2565 = vsub.s32 %v1230, %v2564
    %v2566 = vrot.slane %v1053, %v2565
    %v2567 = vsel %vm1235, %v2566, %v2562
    %v2568 = vlaneseq
    %v2569 = vshrl.u32 %v2568, 7
    %v2570 = vsub.s32 %v1237, %v2569
    %v2571 = vrot.slane %v1056, %v2570
    %v2572 = vsel %vm1242, %v2571, %v2567
    %v2573 = vlaneseq
    %v2574 = vshrl.u32 %v2573, 7
    %v2575 = vsub.s32 %v1244, %v2574
    %v2576 = vrot.slane %v1059, %v2575
    %v2577 = vsel %vm1249, %v2576, %v2572
    %v2578 = vlaneseq
    %v2579 = vshrl.u32 %v2578, 7
    %v2580 = vsub.s32 %v1251, %v2579
    %v2581 = vrot.slane %v1062, %v2580
    %v2582 = vsel %vm1256, %v2581, %v2577
    %v2583 = vlaneseq
    %v2584 = vshrl.u32 %v2583, 7
    %v2585 = vsub.s32 %v1258, %v2584
    %v2586 = vrot.slane %v1065, %v2585
    %v2587 = vsel %vm1263, %v2586, %v2582
    %v2588 = vlaneseq
    %v2589 = vshrl.u32 %v2588, 7
    %v2590 = vsub.s32 %v1265, %v2589
    %v2591 = vrot.slane %v1068, %v2590
    %v2592 = vsel %vm1270, %v2591, %v2587
    %v2593 = vlaneseq
    %v2594 = vshrl.u32 %v2593, 7
    %v2595 = vsub.s32 %v1272, %v2594
    %v2596 = vrot.slane %v1071, %v2595
    %v2597 = vsel %vm1277, %v2596, %v2592
    %v2598 = vlaneseq
    %v2599 = vshrl.u32 %v2598, 7
    %v2600 = vsub.s32 %v1279, %v2599
    %v2601 = vrot.slane %v1074, %v2600
    %v2602 = vsel %vm1284, %v2601, %v2597
    %v2603 = vlaneseq
    %v2604 = vshrl.u32 %v2603, 7
    %v2605 = vsub.s32 %v1286, %v2604
    %v2606 = vrot.slane %v1077, %v2605
    %v2607 = vsel %vm1291, %v2606, %v2602
    %v2608 = vlaneseq
    %v2609 = vshrl.u32 %v2608, 7
    %v2610 = vsub.s32 %v1293, %v2609
    %v2611 = vrot.slane %v1080, %v2610
    %v2612 = vsel %vm1298, %v2611, %v2607
    %v2613 = vlaneseq
    %v2614 = vshrl.u32 %v2613, 7
    %v2615 = vsub.s32 %v1300, %v2614
    %v2616 = vrot.slane %v1083, %v2615
    %v2617 = vsel %vm1305, %v2616, %v2612
    %v2618 = vlaneseq
    %v2619 = vshrl.u32 %v2618, 7
    %v2620 = vsub.s32 %v1197, %v2619
    %v2621 = vrot.slane %v1086, %v2620
    %v2622 = vlaneseq
    %v2623 = vshrl.u32 %v2622, 7
    %v2624 = vsub.s32 %v1202, %v2623
    %v2625 = vrot.slane %v1089, %v2624
    %v2626 = vsel %vm1207, %v2625, %v2621
    %v2627 = vlaneseq
    %v2628 = vshrl.u32 %v2627, 7
    %v2629 = vsub.s32 %v1209, %v2628
    %v2630 = vrot.slane %v1092, %v2629
    %v2631 = vsel %vm1214, %v2630, %v2626
    %v2632 = vlaneseq
    %v2633 = vshrl.u32 %v2632, 7
    %v2634 = vsub.s32 %v1216, %v2633
    %v2635 = vrot.slane %v1095, %v2634
    %v2636 = vsel %vm1221, %v2635, %v2631
    %v2637 = vlaneseq
    %v2638 = vshrl.u32 %v2637, 7
    %v2639 = vsub.s32 %v1223, %v2638
    %v2640 = vrot.slane %v1098, %v2639
    %v2641 = vsel %vm1228, %v2640, %v2636
    %v2642 = vlaneseq
    %v2643 = vshrl.u32 %v2642, 7
    %v2644 = vsub.s32 %v1230, %v2643
    %v2645 = vrot.slane %v1101, %v2644
    %v2646 = vsel %vm1235, %v2645, %v2641
    %v2647 = vlaneseq
    %v2648 = vshrl.u32 %v2647, 7
    %v2649 = vsub.s32 %v1237, %v2648
    %v2650 = vrot.slane %v1104, %v2649
    %v2651 = vsel %vm1242, %v2650, %v2646
    %v2652 = vlaneseq
    %v2653 = vshrl.u32 %v2652, 7
    %v2654 = vsub.s32 %v1244, %v2653
    %v2655 = vrot.slane %v1107, %v2654
    %v2656 = vsel %vm1249, %v2655, %v2651
    %v2657 = vlaneseq
    %v2658 = vshrl.u32 %v2657, 7
    %v2659 = vsub.s32 %v1251, %v2658
    %v2660 = vrot.slane %v1110, %v2659
    %v2661 = vsel %vm1256, %v2660, %v2656
    %v2662 = vlaneseq
    %v2663 = vshrl.u32 %v2662, 7
    %v2664 = vsub.s32 %v1258, %v2663
    %v2665 = vrot.slane %v1113, %v2664
    %v2666 = vsel %vm1263, %v2665, %v2661
    %v2667 = vlaneseq
    %v2668 = vshrl.u32 %v2667, 7
    %v2669 = vsub.s32 %v1265, %v2668
    %v2670 = vrot.slane %v1116, %v2669
    %v2671 = vsel %vm1270, %v2670, %v2666
    %v2672 = vlaneseq
    %v2673 = vshrl.u32 %v2672, 7
    %v2674 = vsub.s32 %v1272, %v2673
    %v2675 = vrot.slane %v1119, %v2674
    %v2676 = vsel %vm1277, %v2675, %v2671
    %v2677 = vlaneseq
    %v2678 = vshrl.u32 %v2677, 7
    %v2679 = vsub.s32 %v1279, %v2678
    %v2680 = vrot.slane %v1122, %v2679
    %v2681 = vsel %vm1284, %v2680, %v2676
    %v2682 = vlaneseq
    %v2683 = vshrl.u32 %v2682, 7
    %v2684 = vsub.s32 %v1286, %v2683
    %v2685 = vrot.slane %v1125, %v2684
    %v2686 = vsel %vm1291, %v2685, %v2681
    %v2687 = vlaneseq
    %v2688 = vshrl.u32 %v2687, 7
    %v2689 = vsub.s32 %v1293, %v2688
    %v2690 = vrot.slane %v1128, %v2689
    %v2691 = vsel %vm1298, %v2690, %v2686
    %v2692 = vlaneseq
    %v2693 = vshrl.u32 %v2692, 7
    %v2694 = vsub.s32 %v1300, %v2693
    %v2695 = vrot.slane %v1131, %v2694
    %v2696 = vsel %vm1305, %v2695, %v2691
    %v2697 = vsel %vm1544, %v2617, %v2459
    %v2698 = vsel %vm1544, %v2696, %v2538
    %v2701 = vld [vmem:[#allocation3] sm:$0xff]
    %v2702 = vld [vmem:[#allocation3 + $0x8] sm:$0xff]
    %v2703 = vld [vmem:[#allocation3 + $0x10] sm:$0xff]
    %v2704 = vld [vmem:[#allocation3 + $0x18] sm:$0xff]
    %v2705 = vld [vmem:[#allocation3 + $0x20] sm:$0xff]
    %v2706 = vld [vmem:[#allocation3 + $0x28] sm:$0xff]
    %v2707 = vld [vmem:[#allocation3 + $0x30] sm:$0xff]
    %v2708 = vld [vmem:[#allocation3 + $0x38] sm:$0xff]
    %v2709 = vld [vmem:[#allocation3 + $0x40] sm:$0xff]
    %v2710 = vld [vmem:[#allocation3 + $0x48] sm:$0xff]
    %v2711 = vld [vmem:[#allocation3 + $0x50] sm:$0xff]
    %v2712 = vld [vmem:[#allocation3 + $0x58] sm:$0xff]
    %v2713 = vld [vmem:[#allocation3 + $0x60] sm:$0xff]
    %v2714 = vld [vmem:[#allocation3 + $0x68] sm:$0xff]
    %v2715 = vld [vmem:[#allocation3 + $0x70] sm:$0xff]
    %v2716 = vld [vmem:[#allocation3 + $0x78] sm:$0xff]
    %v2717 = vld [vmem:[#allocation3 + $0x80] sm:$0xff]
    %v2718 = vld [vmem:[#allocation3 + $0x88] sm:$0xff]
    %v2719 = vld [vmem:[#allocation3 + $0x90] sm:$0xff]
    %v2720 = vld [vmem:[#allocation3 + $0x98] sm:$0xff]
    %v2721 = vld [vmem:[#allocation3 + $0xa0] sm:$0xff]
    %v2722 = vld [vmem:[#allocation3 + $0xa8] sm:$0xff]
    %v2723 = vld [vmem:[#allocation3 + $0xb0] sm:$0xff]
    %v2724 = vld [vmem:[#allocation3 + $0xb8] sm:$0xff]
    %v2725 = vld [vmem:[#allocation3 + $0xc0] sm:$0xff]
    %v2726 = vld [vmem:[#allocation3 + $0xc8] sm:$0xff]
    %v2727 = vld [vmem:[#allocation3 + $0xd0] sm:$0xff]
    %v2728 = vld [vmem:[#allocation3 + $0xd8] sm:$0xff]
    %v2729 = vld [vmem:[#allocation3 + $0xe0] sm:$0xff]
    %v2730 = vld [vmem:[#allocation3 + $0xe8] sm:$0xff]
    %v2731 = vld [vmem:[#allocation3 + $0xf0] sm:$0xff]
    %v2732 = vld [vmem:[#allocation3 + $0xf8] sm:$0xff]
    %v2733 = vld [vmem:[#allocation3 + $0x100] sm:$0xff]
    %v2734 = vld [vmem:[#allocation3 + $0x108] sm:$0xff]
    %v2735 = vld [vmem:[#allocation3 + $0x110] sm:$0xff]
    %v2736 = vld [vmem:[#allocation3 + $0x118] sm:$0xff]
    %v2737 = vld [vmem:[#allocation3 + $0x120] sm:$0xff]
    %v2738 = vld [vmem:[#allocation3 + $0x128] sm:$0xff]
    %v2739 = vld [vmem:[#allocation3 + $0x130] sm:$0xff]
    %v2740 = vld [vmem:[#allocation3 + $0x138] sm:$0xff]
    %v2741 = vld [vmem:[#allocation3 + $0x140] sm:$0xff]
    %v2742 = vld [vmem:[#allocation3 + $0x148] sm:$0xff]
    %v2743 = vld [vmem:[#allocation3 + $0x150] sm:$0xff]
    %v2744 = vld [vmem:[#allocation3 + $0x158] sm:$0xff]
    %v2745 = vld [vmem:[#allocation3 + $0x160] sm:$0xff]
    %v2746 = vld [vmem:[#allocation3 + $0x168] sm:$0xff]
    %v2747 = vld [vmem:[#allocation3 + $0x170] sm:$0xff]
    %v2748 = vld [vmem:[#allocation3 + $0x178] sm:$0xff]
    %v2749 = vld [vmem:[#allocation3 + $0x180] sm:$0xff]
    %v2750 = vld [vmem:[#allocation3 + $0x188] sm:$0xff]
    %v2751 = vld [vmem:[#allocation3 + $0x190] sm:$0xff]
    %v2752 = vld [vmem:[#allocation3 + $0x198] sm:$0xff]
    %v2753 = vld [vmem:[#allocation3 + $0x1a0] sm:$0xff]
    %v2754 = vld [vmem:[#allocation3 + $0x1a8] sm:$0xff]
    %v2755 = vld [vmem:[#allocation3 + $0x1b0] sm:$0xff]
    %v2756 = vld [vmem:[#allocation3 + $0x1b8] sm:$0xff]
    %v2757 = vld [vmem:[#allocation3 + $0x1c0] sm:$0xff]
    %v2758 = vld [vmem:[#allocation3 + $0x1c8] sm:$0xff]
    %v2759 = vld [vmem:[#allocation3 + $0x1d0] sm:$0xff]
    %v2760 = vld [vmem:[#allocation3 + $0x1d8] sm:$0xff]
    %v2761 = vld [vmem:[#allocation3 + $0x1e0] sm:$0xff]
    %v2762 = vld [vmem:[#allocation3 + $0x1e8] sm:$0xff]
    %v2763 = vld [vmem:[#allocation3 + $0x1f0] sm:$0xff]
    %v2764 = vld [vmem:[#allocation3 + $0x1f8] sm:$0xff]
    %v2765 = vld [vmem:[#allocation3 + $0x200] sm:$0xff]
    %v2766 = vld [vmem:[#allocation3 + $0x208] sm:$0xff]
    %v2767 = vld [vmem:[#allocation3 + $0x210] sm:$0xff]
    %v2768 = vld [vmem:[#allocation3 + $0x218] sm:$0xff]
    %v2769 = vld [vmem:[#allocation3 + $0x220] sm:$0xff]
    %v2770 = vld [vmem:[#allocation3 + $0x228] sm:$0xff]
    %v2771 = vld [vmem:[#allocation3 + $0x230] sm:$0xff]
    %v2772 = vld [vmem:[#allocation3 + $0x238] sm:$0xff]
    %v2773 = vld [vmem:[#allocation3 + $0x240] sm:$0xff]
    %v2774 = vld [vmem:[#allocation3 + $0x248] sm:$0xff]
    %v2775 = vld [vmem:[#allocation3 + $0x250] sm:$0xff]
    %v2776 = vld [vmem:[#allocation3 + $0x258] sm:$0xff]
    %v2777 = vld [vmem:[#allocation3 + $0x260] sm:$0xff]
    %v2778 = vld [vmem:[#allocation3 + $0x268] sm:$0xff]
    %v2779 = vld [vmem:[#allocation3 + $0x270] sm:$0xff]
    %v2780 = vld [vmem:[#allocation3 + $0x278] sm:$0xff]
    %v2781 = vld [vmem:[#allocation3 + $0x280] sm:$0xff]
    %v2782 = vld [vmem:[#allocation3 + $0x288] sm:$0xff]
    %v2783 = vld [vmem:[#allocation3 + $0x290] sm:$0xff]
    %v2784 = vld [vmem:[#allocation3 + $0x298] sm:$0xff]
    %v2785 = vld [vmem:[#allocation3 + $0x2a0] sm:$0xff]
    %v2786 = vld [vmem:[#allocation3 + $0x2a8] sm:$0xff]
    %v2787 = vld [vmem:[#allocation3 + $0x2b0] sm:$0xff]
    %v2788 = vld [vmem:[#allocation3 + $0x2b8] sm:$0xff]
    %v2789 = vld [vmem:[#allocation3 + $0x2c0] sm:$0xff]
    %v2790 = vld [vmem:[#allocation3 + $0x2c8] sm:$0xff]
    %v2791 = vld [vmem:[#allocation3 + $0x2d0] sm:$0xff]
    %v2792 = vld [vmem:[#allocation3 + $0x2d8] sm:$0xff]
    %v2793 = vld [vmem:[#allocation3 + $0x2e0] sm:$0xff]
    %v2794 = vld [vmem:[#allocation3 + $0x2e8] sm:$0xff]
    %v2795 = vld [vmem:[#allocation3 + $0x2f0] sm:$0xff]
    %v2796 = vld [vmem:[#allocation3 + $0x2f8] sm:$0xff]
    %v2797 = vld [vmem:[#allocation3 + $0x300] sm:$0xff]
    %v2798 = vld [vmem:[#allocation3 + $0x308] sm:$0xff]
    %v2799 = vld [vmem:[#allocation3 + $0x310] sm:$0xff]
    %v2800 = vld [vmem:[#allocation3 + $0x318] sm:$0xff]
    %v2801 = vld [vmem:[#allocation3 + $0x320] sm:$0xff]
    %v2802 = vld [vmem:[#allocation3 + $0x328] sm:$0xff]
    %v2803 = vld [vmem:[#allocation3 + $0x330] sm:$0xff]
    %v2804 = vld [vmem:[#allocation3 + $0x338] sm:$0xff]
    %v2805 = vld [vmem:[#allocation3 + $0x340] sm:$0xff]
    %v2806 = vld [vmem:[#allocation3 + $0x348] sm:$0xff]
    %v2807 = vld [vmem:[#allocation3 + $0x350] sm:$0xff]
    %v2808 = vld [vmem:[#allocation3 + $0x358] sm:$0xff]
    %v2809 = vld [vmem:[#allocation3 + $0x360] sm:$0xff]
    %v2810 = vld [vmem:[#allocation3 + $0x368] sm:$0xff]
    %v2811 = vld [vmem:[#allocation3 + $0x370] sm:$0xff]
    %v2812 = vld [vmem:[#allocation3 + $0x378] sm:$0xff]
    %v2813 = vld [vmem:[#allocation3 + $0x380] sm:$0xff]
    %v2814 = vld [vmem:[#allocation3 + $0x388] sm:$0xff]
    %v2815 = vld [vmem:[#allocation3 + $0x390] sm:$0xff]
    %v2816 = vld [vmem:[#allocation3 + $0x398] sm:$0xff]
    %v2817 = vld [vmem:[#allocation3 + $0x3a0] sm:$0xff]
    %v2818 = vld [vmem:[#allocation3 + $0x3a8] sm:$0xff]
    %v2819 = vld [vmem:[#allocation3 + $0x3b0] sm:$0xff]
    %v2820 = vld [vmem:[#allocation3 + $0x3b8] sm:$0xff]
    %v2821 = vld [vmem:[#allocation3 + $0x3c0] sm:$0xff]
    %v2822 = vld [vmem:[#allocation3 + $0x3c8] sm:$0xff]
    %v2823 = vld [vmem:[#allocation3 + $0x3d0] sm:$0xff]
    %v2824 = vld [vmem:[#allocation3 + $0x3d8] sm:$0xff]
    %v2825 = vld [vmem:[#allocation3 + $0x3e0] sm:$0xff]
    %v2826 = vld [vmem:[#allocation3 + $0x3e8] sm:$0xff]
    %v2827 = vld [vmem:[#allocation3 + $0x3f0] sm:$0xff]
    %v2828 = vld [vmem:[#allocation3 + $0x3f8] sm:$0xff]
    %v2829 = vld [vmem:[#allocation3 + $0x400] sm:$0xff]
    %v2830 = vld [vmem:[#allocation3 + $0x408] sm:$0xff]
    %v2831 = vld [vmem:[#allocation3 + $0x410] sm:$0xff]
    %v2832 = vld [vmem:[#allocation3 + $0x418] sm:$0xff]
    %v2833 = vld [vmem:[#allocation3 + $0x420] sm:$0xff]
    %v2834 = vld [vmem:[#allocation3 + $0x428] sm:$0xff]
    %v2835 = vld [vmem:[#allocation3 + $0x430] sm:$0xff]
    %v2836 = vld [vmem:[#allocation3 + $0x438] sm:$0xff]
    %v2837 = vld [vmem:[#allocation3 + $0x440] sm:$0xff]
    %v2838 = vld [vmem:[#allocation3 + $0x448] sm:$0xff]
    %v2839 = vld [vmem:[#allocation3 + $0x450] sm:$0xff]
    %v2840 = vld [vmem:[#allocation3 + $0x458] sm:$0xff]
    %v2841 = vld [vmem:[#allocation3 + $0x460] sm:$0xff]
    %v2842 = vld [vmem:[#allocation3 + $0x468] sm:$0xff]
    %v2843 = vld [vmem:[#allocation3 + $0x470] sm:$0xff]
    %v2844 = vld [vmem:[#allocation3 + $0x478] sm:$0xff]
    %v2845 = vld [vmem:[#allocation3 + $0x480] sm:$0xff]
    %v2846 = vld [vmem:[#allocation3 + $0x488] sm:$0xff]
    %v2847 = vld [vmem:[#allocation3 + $0x490] sm:$0xff]
    %v2848 = vld [vmem:[#allocation3 + $0x498] sm:$0xff]
    %v2849 = vld [vmem:[#allocation3 + $0x4a0] sm:$0xff]
    %v2850 = vld [vmem:[#allocation3 + $0x4a8] sm:$0xff]
    %v2851 = vld [vmem:[#allocation3 + $0x4b0] sm:$0xff]
    %v2852 = vld [vmem:[#allocation3 + $0x4b8] sm:$0xff]
    %v2853 = vld [vmem:[#allocation3 + $0x4c0] sm:$0xff]
    %v2854 = vld [vmem:[#allocation3 + $0x4c8] sm:$0xff]
    %v2855 = vld [vmem:[#allocation3 + $0x4d0] sm:$0xff]
    %v2856 = vld [vmem:[#allocation3 + $0x4d8] sm:$0xff]
    %v2857 = vld [vmem:[#allocation3 + $0x4e0] sm:$0xff]
    %v2858 = vld [vmem:[#allocation3 + $0x4e8] sm:$0xff]
    %v2859 = vld [vmem:[#allocation3 + $0x4f0] sm:$0xff]
    %v2860 = vld [vmem:[#allocation3 + $0x4f8] sm:$0xff]
    %v2861 = vld [vmem:[#allocation3 + $0x500] sm:$0xff]
    %v2862 = vld [vmem:[#allocation3 + $0x508] sm:$0xff]
    %v2863 = vld [vmem:[#allocation3 + $0x510] sm:$0xff]
    %v2864 = vld [vmem:[#allocation3 + $0x518] sm:$0xff]
    %v2865 = vld [vmem:[#allocation3 + $0x520] sm:$0xff]
    %v2866 = vld [vmem:[#allocation3 + $0x528] sm:$0xff]
    %v2867 = vld [vmem:[#allocation3 + $0x530] sm:$0xff]
    %v2868 = vld [vmem:[#allocation3 + $0x538] sm:$0xff]
    %v2869 = vld [vmem:[#allocation3 + $0x540] sm:$0xff]
    %v2870 = vld [vmem:[#allocation3 + $0x548] sm:$0xff]
    %v2871 = vld [vmem:[#allocation3 + $0x550] sm:$0xff]
    %v2872 = vld [vmem:[#allocation3 + $0x558] sm:$0xff]
    %v2873 = vld [vmem:[#allocation3 + $0x560] sm:$0xff]
    %v2874 = vld [vmem:[#allocation3 + $0x568] sm:$0xff]
    %v2875 = vld [vmem:[#allocation3 + $0x570] sm:$0xff]
    %v2876 = vld [vmem:[#allocation3 + $0x578] sm:$0xff]
    %v2877 = vld [vmem:[#allocation3 + $0x580] sm:$0xff]
    %v2878 = vld [vmem:[#allocation3 + $0x588] sm:$0xff]
    %v2879 = vld [vmem:[#allocation3 + $0x590] sm:$0xff]
    %v2880 = vld [vmem:[#allocation3 + $0x598] sm:$0xff]
    %v2881 = vld [vmem:[#allocation3 + $0x5a0] sm:$0xff]
    %v2882 = vld [vmem:[#allocation3 + $0x5a8] sm:$0xff]
    %v2883 = vld [vmem:[#allocation3 + $0x5b0] sm:$0xff]
    %v2884 = vld [vmem:[#allocation3 + $0x5b8] sm:$0xff]
    %v2885 = vld [vmem:[#allocation3 + $0x5c0] sm:$0xff]
    %v2886 = vld [vmem:[#allocation3 + $0x5c8] sm:$0xff]
    %v2887 = vld [vmem:[#allocation3 + $0x5d0] sm:$0xff]
    %v2888 = vld [vmem:[#allocation3 + $0x5d8] sm:$0xff]
    %v2889 = vld [vmem:[#allocation3 + $0x5e0] sm:$0xff]
    %v2890 = vld [vmem:[#allocation3 + $0x5e8] sm:$0xff]
    %v2891 = vld [vmem:[#allocation3 + $0x5f0] sm:$0xff]
    %v2892 = vld [vmem:[#allocation3 + $0x5f8] sm:$0xff]
    %v2893 = vld [vmem:[#allocation3 + $0x600] sm:$0xff]
    %v2894 = vld [vmem:[#allocation3 + $0x608] sm:$0xff]
    %v2895 = vld [vmem:[#allocation3 + $0x610] sm:$0xff]
    %v2896 = vld [vmem:[#allocation3 + $0x618] sm:$0xff]
    %v2897 = vld [vmem:[#allocation3 + $0x620] sm:$0xff]
    %v2898 = vld [vmem:[#allocation3 + $0x628] sm:$0xff]
    %v2899 = vld [vmem:[#allocation3 + $0x630] sm:$0xff]
    %v2900 = vld [vmem:[#allocation3 + $0x638] sm:$0xff]
    %v2901 = vld [vmem:[#allocation3 + $0x640] sm:$0xff]
    %v2902 = vld [vmem:[#allocation3 + $0x648] sm:$0xff]
    %v2903 = vld [vmem:[#allocation3 + $0x650] sm:$0xff]
    %v2904 = vld [vmem:[#allocation3 + $0x658] sm:$0xff]
    %v2905 = vld [vmem:[#allocation3 + $0x660] sm:$0xff]
    %v2906 = vld [vmem:[#allocation3 + $0x668] sm:$0xff]
    %v2907 = vld [vmem:[#allocation3 + $0x670] sm:$0xff]
    %v2908 = vld [vmem:[#allocation3 + $0x678] sm:$0xff]
    %v2909 = vld [vmem:[#allocation3 + $0x680] sm:$0xff]
    %v2910 = vld [vmem:[#allocation3 + $0x688] sm:$0xff]
    %v2911 = vld [vmem:[#allocation3 + $0x690] sm:$0xff]
    %v2912 = vld [vmem:[#allocation3 + $0x698] sm:$0xff]
    %v2913 = vld [vmem:[#allocation3 + $0x6a0] sm:$0xff]
    %v2914 = vld [vmem:[#allocation3 + $0x6a8] sm:$0xff]
    %v2915 = vld [vmem:[#allocation3 + $0x6b0] sm:$0xff]
    %v2916 = vld [vmem:[#allocation3 + $0x6b8] sm:$0xff]
    %v2917 = vld [vmem:[#allocation3 + $0x6c0] sm:$0xff]
    %v2918 = vld [vmem:[#allocation3 + $0x6c8] sm:$0xff]
    %v2919 = vld [vmem:[#allocation3 + $0x6d0] sm:$0xff]
    %v2920 = vld [vmem:[#allocation3 + $0x6d8] sm:$0xff]
    %v2921 = vld [vmem:[#allocation3 + $0x6e0] sm:$0xff]
    %v2922 = vld [vmem:[#allocation3 + $0x6e8] sm:$0xff]
    %v2923 = vld [vmem:[#allocation3 + $0x6f0] sm:$0xff]
    %v2924 = vld [vmem:[#allocation3 + $0x6f8] sm:$0xff]
    %v2925 = vld [vmem:[#allocation3 + $0x700] sm:$0xff]
    %v2926 = vld [vmem:[#allocation3 + $0x708] sm:$0xff]
    %v2927 = vld [vmem:[#allocation3 + $0x710] sm:$0xff]
    %v2928 = vld [vmem:[#allocation3 + $0x718] sm:$0xff]
    %v2929 = vld [vmem:[#allocation3 + $0x720] sm:$0xff]
    %v2930 = vld [vmem:[#allocation3 + $0x728] sm:$0xff]
    %v2931 = vld [vmem:[#allocation3 + $0x730] sm:$0xff]
    %v2932 = vld [vmem:[#allocation3 + $0x738] sm:$0xff]
    %v2933 = vld [vmem:[#allocation3 + $0x740] sm:$0xff]
    %v2934 = vld [vmem:[#allocation3 + $0x748] sm:$0xff]
    %v2935 = vld [vmem:[#allocation3 + $0x750] sm:$0xff]
    %v2936 = vld [vmem:[#allocation3 + $0x758] sm:$0xff]
    %v2937 = vld [vmem:[#allocation3 + $0x760] sm:$0xff]
    %v2938 = vld [vmem:[#allocation3 + $0x768] sm:$0xff]
    %v2939 = vld [vmem:[#allocation3 + $0x770] sm:$0xff]
    %v2940 = vld [vmem:[#allocation3 + $0x778] sm:$0xff]
    %v2941 = vld [vmem:[#allocation3 + $0x780] sm:$0xff]
    %v2942 = vld [vmem:[#allocation3 + $0x788] sm:$0xff]
    %v2943 = vld [vmem:[#allocation3 + $0x790] sm:$0xff]
    %v2944 = vld [vmem:[#allocation3 + $0x798] sm:$0xff]
    %v2945 = vld [vmem:[#allocation3 + $0x7a0] sm:$0xff]
    %v2946 = vld [vmem:[#allocation3 + $0x7a8] sm:$0xff]
    %v2947 = vld [vmem:[#allocation3 + $0x7b0] sm:$0xff]
    %v2948 = vld [vmem:[#allocation3 + $0x7b8] sm:$0xff]
    %v2949 = vld [vmem:[#allocation3 + $0x7c0] sm:$0xff]
    %v2950 = vld [vmem:[#allocation3 + $0x7c8] sm:$0xff]
    %v2951 = vld [vmem:[#allocation3 + $0x7d0] sm:$0xff]
    %v2952 = vld [vmem:[#allocation3 + $0x7d8] sm:$0xff]
    %v2953 = vld [vmem:[#allocation3 + $0x7e0] sm:$0xff]
    %v2954 = vld [vmem:[#allocation3 + $0x7e8] sm:$0xff]
    %v2955 = vld [vmem:[#allocation3 + $0x7f0] sm:$0xff]
    %v2956 = vld [vmem:[#allocation3 + $0x7f8] sm:$0xff]
    %v2957 = vunpack.c.l.bf16 %v2701
    %v2958 = vunpack.c.h.bf16 %v2701
    %v2959 = vunpack.c.l.bf16 %v2702
    %v2960 = vunpack.c.h.bf16 %v2702
    %v2961 = vunpack.c.l.bf16 %v2703
    %v2962 = vunpack.c.h.bf16 %v2703
    %v2963 = vunpack.c.l.bf16 %v2704
    %v2964 = vunpack.c.h.bf16 %v2704
    %v2965 = vunpack.c.l.bf16 %v2705
    %v2966 = vunpack.c.h.bf16 %v2705
    %v2967 = vunpack.c.l.bf16 %v2706
    %v2968 = vunpack.c.h.bf16 %v2706
    %v2969 = vunpack.c.l.bf16 %v2707
    %v2970 = vunpack.c.h.bf16 %v2707
    %v2971 = vunpack.c.l.bf16 %v2708
    %v2972 = vunpack.c.h.bf16 %v2708
    %v2973 = vunpack.c.l.bf16 %v2709
    %v2974 = vunpack.c.h.bf16 %v2709
    %v2975 = vunpack.c.l.bf16 %v2710
    %v2976 = vunpack.c.h.bf16 %v2710
    %v2977 = vunpack.c.l.bf16 %v2711
    %v2978 = vunpack.c.h.bf16 %v2711
    %v2979 = vunpack.c.l.bf16 %v2712
    %v2980 = vunpack.c.h.bf16 %v2712
    %v2981 = vunpack.c.l.bf16 %v2713
    %v2982 = vunpack.c.h.bf16 %v2713
    %v2983 = vunpack.c.l.bf16 %v2714
    %v2984 = vunpack.c.h.bf16 %v2714
    %v2985 = vunpack.c.l.bf16 %v2715
    %v2986 = vunpack.c.h.bf16 %v2715
    %v2987 = vunpack.c.l.bf16 %v2716
    %v2988 = vunpack.c.h.bf16 %v2716
    %v2989 = vunpack.c.l.bf16 %v2717
    %v2990 = vunpack.c.h.bf16 %v2717
    %v2991 = vunpack.c.l.bf16 %v2718
    %v2992 = vunpack.c.h.bf16 %v2718
    %v2993 = vunpack.c.l.bf16 %v2719
    %v2994 = vunpack.c.h.bf16 %v2719
    %v2995 = vunpack.c.l.bf16 %v2720
    %v2996 = vunpack.c.h.bf16 %v2720
    %v2997 = vunpack.c.l.bf16 %v2721
    %v2998 = vunpack.c.h.bf16 %v2721
    %v2999 = vunpack.c.l.bf16 %v2722
    %v3000 = vunpack.c.h.bf16 %v2722
    %v3001 = vunpack.c.l.bf16 %v2723
    %v3002 = vunpack.c.h.bf16 %v2723
    %v3003 = vunpack.c.l.bf16 %v2724
    %v3004 = vunpack.c.h.bf16 %v2724
    %v3005 = vunpack.c.l.bf16 %v2725
    %v3006 = vunpack.c.h.bf16 %v2725
    %v3007 = vunpack.c.l.bf16 %v2726
    %v3008 = vunpack.c.h.bf16 %v2726
    %v3009 = vunpack.c.l.bf16 %v2727
    %v3010 = vunpack.c.h.bf16 %v2727
    %v3011 = vunpack.c.l.bf16 %v2728
    %v3012 = vunpack.c.h.bf16 %v2728
    %v3013 = vunpack.c.l.bf16 %v2729
    %v3014 = vunpack.c.h.bf16 %v2729
    %v3015 = vunpack.c.l.bf16 %v2730
    %v3016 = vunpack.c.h.bf16 %v2730
    %v3017 = vunpack.c.l.bf16 %v2731
    %v3018 = vunpack.c.h.bf16 %v2731
    %v3019 = vunpack.c.l.bf16 %v2732
    %v3020 = vunpack.c.h.bf16 %v2732
    %v3021 = vunpack.c.l.bf16 %v2733
    %v3022 = vunpack.c.h.bf16 %v2733
    %v3023 = vunpack.c.l.bf16 %v2734
    %v3024 = vunpack.c.h.bf16 %v2734
    %v3025 = vunpack.c.l.bf16 %v2735
    %v3026 = vunpack.c.h.bf16 %v2735
    %v3027 = vunpack.c.l.bf16 %v2736
    %v3028 = vunpack.c.h.bf16 %v2736
    %v3029 = vunpack.c.l.bf16 %v2737
    %v3030 = vunpack.c.h.bf16 %v2737
    %v3031 = vunpack.c.l.bf16 %v2738
    %v3032 = vunpack.c.h.bf16 %v2738
    %v3033 = vunpack.c.l.bf16 %v2739
    %v3034 = vunpack.c.h.bf16 %v2739
    %v3035 = vunpack.c.l.bf16 %v2740
    %v3036 = vunpack.c.h.bf16 %v2740
    %v3037 = vunpack.c.l.bf16 %v2741
    %v3038 = vunpack.c.h.bf16 %v2741
    %v3039 = vunpack.c.l.bf16 %v2742
    %v3040 = vunpack.c.h.bf16 %v2742
    %v3041 = vunpack.c.l.bf16 %v2743
    %v3042 = vunpack.c.h.bf16 %v2743
    %v3043 = vunpack.c.l.bf16 %v2744
    %v3044 = vunpack.c.h.bf16 %v2744
    %v3045 = vunpack.c.l.bf16 %v2745
    %v3046 = vunpack.c.h.bf16 %v2745
    %v3047 = vunpack.c.l.bf16 %v2746
    %v3048 = vunpack.c.h.bf16 %v2746
    %v3049 = vunpack.c.l.bf16 %v2747
    %v3050 = vunpack.c.h.bf16 %v2747
    %v3051 = vunpack.c.l.bf16 %v2748
    %v3052 = vunpack.c.h.bf16 %v2748
    %v3053 = vunpack.c.l.bf16 %v2749
    %v3054 = vunpack.c.h.bf16 %v2749
    %v3055 = vunpack.c.l.bf16 %v2750
    %v3056 = vunpack.c.h.bf16 %v2750
    %v3057 = vunpack.c.l.bf16 %v2751
    %v3058 = vunpack.c.h.bf16 %v2751
    %v3059 = vunpack.c.l.bf16 %v2752
    %v3060 = vunpack.c.h.bf16 %v2752
    %v3061 = vunpack.c.l.bf16 %v2753
    %v3062 = vunpack.c.h.bf16 %v2753
    %v3063 = vunpack.c.l.bf16 %v2754
    %v3064 = vunpack.c.h.bf16 %v2754
    %v3065 = vunpack.c.l.bf16 %v2755
    %v3066 = vunpack.c.h.bf16 %v2755
    %v3067 = vunpack.c.l.bf16 %v2756
    %v3068 = vunpack.c.h.bf16 %v2756
    %v3069 = vunpack.c.l.bf16 %v2757
    %v3070 = vunpack.c.h.bf16 %v2757
    %v3071 = vunpack.c.l.bf16 %v2758
    %v3072 = vunpack.c.h.bf16 %v2758
    %v3073 = vunpack.c.l.bf16 %v2759
    %v3074 = vunpack.c.h.bf16 %v2759
    %v3075 = vunpack.c.l.bf16 %v2760
    %v3076 = vunpack.c.h.bf16 %v2760
    %v3077 = vunpack.c.l.bf16 %v2761
    %v3078 = vunpack.c.h.bf16 %v2761
    %v3079 = vunpack.c.l.bf16 %v2762
    %v3080 = vunpack.c.h.bf16 %v2762
    %v3081 = vunpack.c.l.bf16 %v2763
    %v3082 = vunpack.c.h.bf16 %v2763
    %v3083 = vunpack.c.l.bf16 %v2764
    %v3084 = vunpack.c.h.bf16 %v2764
    %v3085 = vunpack.c.l.bf16 %v2765
    %v3086 = vunpack.c.h.bf16 %v2765
    %v3087 = vunpack.c.l.bf16 %v2766
    %v3088 = vunpack.c.h.bf16 %v2766
    %v3089 = vunpack.c.l.bf16 %v2767
    %v3090 = vunpack.c.h.bf16 %v2767
    %v3091 = vunpack.c.l.bf16 %v2768
    %v3092 = vunpack.c.h.bf16 %v2768
    %v3093 = vunpack.c.l.bf16 %v2769
    %v3094 = vunpack.c.h.bf16 %v2769
    %v3095 = vunpack.c.l.bf16 %v2770
    %v3096 = vunpack.c.h.bf16 %v2770
    %v3097 = vunpack.c.l.bf16 %v2771
    %v3098 = vunpack.c.h.bf16 %v2771
    %v3099 = vunpack.c.l.bf16 %v2772
    %v3100 = vunpack.c.h.bf16 %v2772
    %v3101 = vunpack.c.l.bf16 %v2773
    %v3102 = vunpack.c.h.bf16 %v2773
    %v3103 = vunpack.c.l.bf16 %v2774
    %v3104 = vunpack.c.h.bf16 %v2774
    %v3105 = vunpack.c.l.bf16 %v2775
    %v3106 = vunpack.c.h.bf16 %v2775
    %v3107 = vunpack.c.l.bf16 %v2776
    %v3108 = vunpack.c.h.bf16 %v2776
    %v3109 = vunpack.c.l.bf16 %v2777
    %v3110 = vunpack.c.h.bf16 %v2777
    %v3111 = vunpack.c.l.bf16 %v2778
    %v3112 = vunpack.c.h.bf16 %v2778
    %v3113 = vunpack.c.l.bf16 %v2779
    %v3114 = vunpack.c.h.bf16 %v2779
    %v3115 = vunpack.c.l.bf16 %v2780
    %v3116 = vunpack.c.h.bf16 %v2780
    %v3117 = vunpack.c.l.bf16 %v2781
    %v3118 = vunpack.c.h.bf16 %v2781
    %v3119 = vunpack.c.l.bf16 %v2782
    %v3120 = vunpack.c.h.bf16 %v2782
    %v3121 = vunpack.c.l.bf16 %v2783
    %v3122 = vunpack.c.h.bf16 %v2783
    %v3123 = vunpack.c.l.bf16 %v2784
    %v3124 = vunpack.c.h.bf16 %v2784
    %v3125 = vunpack.c.l.bf16 %v2785
    %v3126 = vunpack.c.h.bf16 %v2785
    %v3127 = vunpack.c.l.bf16 %v2786
    %v3128 = vunpack.c.h.bf16 %v2786
    %v3129 = vunpack.c.l.bf16 %v2787
    %v3130 = vunpack.c.h.bf16 %v2787
    %v3131 = vunpack.c.l.bf16 %v2788
    %v3132 = vunpack.c.h.bf16 %v2788
    %v3133 = vunpack.c.l.bf16 %v2789
    %v3134 = vunpack.c.h.bf16 %v2789
    %v3135 = vunpack.c.l.bf16 %v2790
    %v3136 = vunpack.c.h.bf16 %v2790
    %v3137 = vunpack.c.l.bf16 %v2791
    %v3138 = vunpack.c.h.bf16 %v2791
    %v3139 = vunpack.c.l.bf16 %v2792
    %v3140 = vunpack.c.h.bf16 %v2792
    %v3141 = vunpack.c.l.bf16 %v2793
    %v3142 = vunpack.c.h.bf16 %v2793
    %v3143 = vunpack.c.l.bf16 %v2794
    %v3144 = vunpack.c.h.bf16 %v2794
    %v3145 = vunpack.c.l.bf16 %v2795
    %v3146 = vunpack.c.h.bf16 %v2795
    %v3147 = vunpack.c.l.bf16 %v2796
    %v3148 = vunpack.c.h.bf16 %v2796
    %v3149 = vunpack.c.l.bf16 %v2797
    %v3150 = vunpack.c.h.bf16 %v2797
    %v3151 = vunpack.c.l.bf16 %v2798
    %v3152 = vunpack.c.h.bf16 %v2798
    %v3153 = vunpack.c.l.bf16 %v2799
    %v3154 = vunpack.c.h.bf16 %v2799
    %v3155 = vunpack.c.l.bf16 %v2800
    %v3156 = vunpack.c.h.bf16 %v2800
    %v3157 = vunpack.c.l.bf16 %v2801
    %v3158 = vunpack.c.h.bf16 %v2801
    %v3159 = vunpack.c.l.bf16 %v2802
    %v3160 = vunpack.c.h.bf16 %v2802
    %v3161 = vunpack.c.l.bf16 %v2803
    %v3162 = vunpack.c.h.bf16 %v2803
    %v3163 = vunpack.c.l.bf16 %v2804
    %v3164 = vunpack.c.h.bf16 %v2804
    %v3165 = vunpack.c.l.bf16 %v2805
    %v3166 = vunpack.c.h.bf16 %v2805
    %v3167 = vunpack.c.l.bf16 %v2806
    %v3168 = vunpack.c.h.bf16 %v2806
    %v3169 = vunpack.c.l.bf16 %v2807
    %v3170 = vunpack.c.h.bf16 %v2807
    %v3171 = vunpack.c.l.bf16 %v2808
    %v3172 = vunpack.c.h.bf16 %v2808
    %v3173 = vunpack.c.l.bf16 %v2809
    %v3174 = vunpack.c.h.bf16 %v2809
    %v3175 = vunpack.c.l.bf16 %v2810
    %v3176 = vunpack.c.h.bf16 %v2810
    %v3177 = vunpack.c.l.bf16 %v2811
    %v3178 = vunpack.c.h.bf16 %v2811
    %v3179 = vunpack.c.l.bf16 %v2812
    %v3180 = vunpack.c.h.bf16 %v2812
    %v3181 = vunpack.c.l.bf16 %v2813
    %v3182 = vunpack.c.h.bf16 %v2813
    %v3183 = vunpack.c.l.bf16 %v2814
    %v3184 = vunpack.c.h.bf16 %v2814
    %v3185 = vunpack.c.l.bf16 %v2815
    %v3186 = vunpack.c.h.bf16 %v2815
    %v3187 = vunpack.c.l.bf16 %v2816
    %v3188 = vunpack.c.h.bf16 %v2816
    %v3189 = vunpack.c.l.bf16 %v2817
    %v3190 = vunpack.c.h.bf16 %v2817
    %v3191 = vunpack.c.l.bf16 %v2818
    %v3192 = vunpack.c.h.bf16 %v2818
    %v3193 = vunpack.c.l.bf16 %v2819
    %v3194 = vunpack.c.h.bf16 %v2819
    %v3195 = vunpack.c.l.bf16 %v2820
    %v3196 = vunpack.c.h.bf16 %v2820
    %v3197 = vunpack.c.l.bf16 %v2821
    %v3198 = vunpack.c.h.bf16 %v2821
    %v3199 = vunpack.c.l.bf16 %v2822
    %v3200 = vunpack.c.h.bf16 %v2822
    %v3201 = vunpack.c.l.bf16 %v2823
    %v3202 = vunpack.c.h.bf16 %v2823
    %v3203 = vunpack.c.l.bf16 %v2824
    %v3204 = vunpack.c.h.bf16 %v2824
    %v3205 = vunpack.c.l.bf16 %v2825
    %v3206 = vunpack.c.h.bf16 %v2825
    %v3207 = vunpack.c.l.bf16 %v2826
    %v3208 = vunpack.c.h.bf16 %v2826
    %v3209 = vunpack.c.l.bf16 %v2827
    %v3210 = vunpack.c.h.bf16 %v2827
    %v3211 = vunpack.c.l.bf16 %v2828
    %v3212 = vunpack.c.h.bf16 %v2828
    %v3213 = vunpack.c.l.bf16 %v2829
    %v3214 = vunpack.c.h.bf16 %v2829
    %v3215 = vunpack.c.l.bf16 %v2830
    %v3216 = vunpack.c.h.bf16 %v2830
    %v3217 = vunpack.c.l.bf16 %v2831
    %v3218 = vunpack.c.h.bf16 %v2831
    %v3219 = vunpack.c.l.bf16 %v2832
    %v3220 = vunpack.c.h.bf16 %v2832
    %v3221 = vunpack.c.l.bf16 %v2833
    %v3222 = vunpack.c.h.bf16 %v2833
    %v3223 = vunpack.c.l.bf16 %v2834
    %v3224 = vunpack.c.h.bf16 %v2834
    %v3225 = vunpack.c.l.bf16 %v2835
    %v3226 = vunpack.c.h.bf16 %v2835
    %v3227 = vunpack.c.l.bf16 %v2836
    %v3228 = vunpack.c.h.bf16 %v2836
    %v3229 = vunpack.c.l.bf16 %v2837
    %v3230 = vunpack.c.h.bf16 %v2837
    %v3231 = vunpack.c.l.bf16 %v2838
    %v3232 = vunpack.c.h.bf16 %v2838
    %v3233 = vunpack.c.l.bf16 %v2839
    %v3234 = vunpack.c.h.bf16 %v2839
    %v3235 = vunpack.c.l.bf16 %v2840
    %v3236 = vunpack.c.h.bf16 %v2840
    %v3237 = vunpack.c.l.bf16 %v2841
    %v3238 = vunpack.c.h.bf16 %v2841
    %v3239 = vunpack.c.l.bf16 %v2842
    %v3240 = vunpack.c.h.bf16 %v2842
    %v3241 = vunpack.c.l.bf16 %v2843
    %v3242 = vunpack.c.h.bf16 %v2843
    %v3243 = vunpack.c.l.bf16 %v2844
    %v3244 = vunpack.c.h.bf16 %v2844
    %v3245 = vunpack.c.l.bf16 %v2845
    %v3246 = vunpack.c.h.bf16 %v2845
    %v3247 = vunpack.c.l.bf16 %v2846
    %v3248 = vunpack.c.h.bf16 %v2846
    %v3249 = vunpack.c.l.bf16 %v2847
    %v3250 = vunpack.c.h.bf16 %v2847
    %v3251 = vunpack.c.l.bf16 %v2848
    %v3252 = vunpack.c.h.bf16 %v2848
    %v3253 = vunpack.c.l.bf16 %v2849
    %v3254 = vunpack.c.h.bf16 %v2849
    %v3255 = vunpack.c.l.bf16 %v2850
    %v3256 = vunpack.c.h.bf16 %v2850
    %v3257 = vunpack.c.l.bf16 %v2851
    %v3258 = vunpack.c.h.bf16 %v2851
    %v3259 = vunpack.c.l.bf16 %v2852
    %v3260 = vunpack.c.h.bf16 %v2852
    %v3261 = vunpack.c.l.bf16 %v2853
    %v3262 = vunpack.c.h.bf16 %v2853
    %v3263 = vunpack.c.l.bf16 %v2854
    %v3264 = vunpack.c.h.bf16 %v2854
    %v3265 = vunpack.c.l.bf16 %v2855
    %v3266 = vunpack.c.h.bf16 %v2855
    %v3267 = vunpack.c.l.bf16 %v2856
    %v3268 = vunpack.c.h.bf16 %v2856
    %v3269 = vunpack.c.l.bf16 %v2857
    %v3270 = vunpack.c.h.bf16 %v2857
    %v3271 = vunpack.c.l.bf16 %v2858
    %v3272 = vunpack.c.h.bf16 %v2858
    %v3273 = vunpack.c.l.bf16 %v2859
    %v3274 = vunpack.c.h.bf16 %v2859
    %v3275 = vunpack.c.l.bf16 %v2860
    %v3276 = vunpack.c.h.bf16 %v2860
    %v3277 = vunpack.c.l.bf16 %v2861
    %v3278 = vunpack.c.h.bf16 %v2861
    %v3279 = vunpack.c.l.bf16 %v2862
    %v3280 = vunpack.c.h.bf16 %v2862
    %v3281 = vunpack.c.l.bf16 %v2863
    %v3282 = vunpack.c.h.bf16 %v2863
    %v3283 = vunpack.c.l.bf16 %v2864
    %v3284 = vunpack.c.h.bf16 %v2864
    %v3285 = vunpack.c.l.bf16 %v2865
    %v3286 = vunpack.c.h.bf16 %v2865
    %v3287 = vunpack.c.l.bf16 %v2866
    %v3288 = vunpack.c.h.bf16 %v2866
    %v3289 = vunpack.c.l.bf16 %v2867
    %v3290 = vunpack.c.h.bf16 %v2867
    %v3291 = vunpack.c.l.bf16 %v2868
    %v3292 = vunpack.c.h.bf16 %v2868
    %v3293 = vunpack.c.l.bf16 %v2869
    %v3294 = vunpack.c.h.bf16 %v2869
    %v3295 = vunpack.c.l.bf16 %v2870
    %v3296 = vunpack.c.h.bf16 %v2870
    %v3297 = vunpack.c.l.bf16 %v2871
    %v3298 = vunpack.c.h.bf16 %v2871
    %v3299 = vunpack.c.l.bf16 %v2872
    %v3300 = vunpack.c.h.bf16 %v2872
    %v3301 = vunpack.c.l.bf16 %v2873
    %v3302 = vunpack.c.h.bf16 %v2873
    %v3303 = vunpack.c.l.bf16 %v2874
    %v3304 = vunpack.c.h.bf16 %v2874
    %v3305 = vunpack.c.l.bf16 %v2875
    %v3306 = vunpack.c.h.bf16 %v2875
    %v3307 = vunpack.c.l.bf16 %v2876
    %v3308 = vunpack.c.h.bf16 %v2876
    %v3309 = vunpack.c.l.bf16 %v2877
    %v3310 = vunpack.c.h.bf16 %v2877
    %v3311 = vunpack.c.l.bf16 %v2878
    %v3312 = vunpack.c.h.bf16 %v2878
    %v3313 = vunpack.c.l.bf16 %v2879
    %v3314 = vunpack.c.h.bf16 %v2879
    %v3315 = vunpack.c.l.bf16 %v2880
    %v3316 = vunpack.c.h.bf16 %v2880
    %v3317 = vunpack.c.l.bf16 %v2881
    %v3318 = vunpack.c.h.bf16 %v2881
    %v3319 = vunpack.c.l.bf16 %v2882
    %v3320 = vunpack.c.h.bf16 %v2882
    %v3321 = vunpack.c.l.bf16 %v2883
    %v3322 = vunpack.c.h.bf16 %v2883
    %v3323 = vunpack.c.l.bf16 %v2884
    %v3324 = vunpack.c.h.bf16 %v2884
    %v3325 = vunpack.c.l.bf16 %v2885
    %v3326 = vunpack.c.h.bf16 %v2885
    %v3327 = vunpack.c.l.bf16 %v2886
    %v3328 = vunpack.c.h.bf16 %v2886
    %v3329 = vunpack.c.l.bf16 %v2887
    %v3330 = vunpack.c.h.bf16 %v2887
    %v3331 = vunpack.c.l.bf16 %v2888
    %v3332 = vunpack.c.h.bf16 %v2888
    %v3333 = vunpack.c.l.bf16 %v2889
    %v3334 = vunpack.c.h.bf16 %v2889
    %v3335 = vunpack.c.l.bf16 %v2890
    %v3336 = vunpack.c.h.bf16 %v2890
    %v3337 = vunpack.c.l.bf16 %v2891
    %v3338 = vunpack.c.h.bf16 %v2891
    %v3339 = vunpack.c.l.bf16 %v2892
    %v3340 = vunpack.c.h.bf16 %v2892
    %v3341 = vunpack.c.l.bf16 %v2893
    %v3342 = vunpack.c.h.bf16 %v2893
    %v3343 = vunpack.c.l.bf16 %v2894
    %v3344 = vunpack.c.h.bf16 %v2894
    %v3345 = vunpack.c.l.bf16 %v2895
    %v3346 = vunpack.c.h.bf16 %v2895
    %v3347 = vunpack.c.l.bf16 %v2896
    %v3348 = vunpack.c.h.bf16 %v2896
    %v3349 = vunpack.c.l.bf16 %v2897
    %v3350 = vunpack.c.h.bf16 %v2897
    %v3351 = vunpack.c.l.bf16 %v2898
    %v3352 = vunpack.c.h.bf16 %v2898
    %v3353 = vunpack.c.l.bf16 %v2899
    %v3354 = vunpack.c.h.bf16 %v2899
    %v3355 = vunpack.c.l.bf16 %v2900
    %v3356 = vunpack.c.h.bf16 %v2900
    %v3357 = vunpack.c.l.bf16 %v2901
    %v3358 = vunpack.c.h.bf16 %v2901
    %v3359 = vunpack.c.l.bf16 %v2902
    %v3360 = vunpack.c.h.bf16 %v2902
    %v3361 = vunpack.c.l.bf16 %v2903
    %v3362 = vunpack.c.h.bf16 %v2903
    %v3363 = vunpack.c.l.bf16 %v2904
    %v3364 = vunpack.c.h.bf16 %v2904
    %v3365 = vunpack.c.l.bf16 %v2905
    %v3366 = vunpack.c.h.bf16 %v2905
    %v3367 = vunpack.c.l.bf16 %v2906
    %v3368 = vunpack.c.h.bf16 %v2906
    %v3369 = vunpack.c.l.bf16 %v2907
    %v3370 = vunpack.c.h.bf16 %v2907
    %v3371 = vunpack.c.l.bf16 %v2908
    %v3372 = vunpack.c.h.bf16 %v2908
    %v3373 = vunpack.c.l.bf16 %v2909
    %v3374 = vunpack.c.h.bf16 %v2909
    %v3375 = vunpack.c.l.bf16 %v2910
    %v3376 = vunpack.c.h.bf16 %v2910
    %v3377 = vunpack.c.l.bf16 %v2911
    %v3378 = vunpack.c.h.bf16 %v2911
    %v3379 = vunpack.c.l.bf16 %v2912
    %v3380 = vunpack.c.h.bf16 %v2912
    %v3381 = vunpack.c.l.bf16 %v2913
    %v3382 = vunpack.c.h.bf16 %v2913
    %v3383 = vunpack.c.l.bf16 %v2914
    %v3384 = vunpack.c.h.bf16 %v2914
    %v3385 = vunpack.c.l.bf16 %v2915
    %v3386 = vunpack.c.h.bf16 %v2915
    %v3387 = vunpack.c.l.bf16 %v2916
    %v3388 = vunpack.c.h.bf16 %v2916
    %v3389 = vunpack.c.l.bf16 %v2917
    %v3390 = vunpack.c.h.bf16 %v2917
    %v3391 = vunpack.c.l.bf16 %v2918
    %v3392 = vunpack.c.h.bf16 %v2918
    %v3393 = vunpack.c.l.bf16 %v2919
    %v3394 = vunpack.c.h.bf16 %v2919
    %v3395 = vunpack.c.l.bf16 %v2920
    %v3396 = vunpack.c.h.bf16 %v2920
    %v3397 = vunpack.c.l.bf16 %v2921
    %v3398 = vunpack.c.h.bf16 %v2921
    %v3399 = vunpack.c.l.bf16 %v2922
    %v3400 = vunpack.c.h.bf16 %v2922
    %v3401 = vunpack.c.l.bf16 %v2923
    %v3402 = vunpack.c.h.bf16 %v2923
    %v3403 = vunpack.c.l.bf16 %v2924
    %v3404 = vunpack.c.h.bf16 %v2924
    %v3405 = vunpack.c.l.bf16 %v2925
    %v3406 = vunpack.c.h.bf16 %v2925
    %v3407 = vunpack.c.l.bf16 %v2926
    %v3408 = vunpack.c.h.bf16 %v2926
    %v3409 = vunpack.c.l.bf16 %v2927
    %v3410 = vunpack.c.h.bf16 %v2927
    %v3411 = vunpack.c.l.bf16 %v2928
    %v3412 = vunpack.c.h.bf16 %v2928
    %v3413 = vunpack.c.l.bf16 %v2929
    %v3414 = vunpack.c.h.bf16 %v2929
    %v3415 = vunpack.c.l.bf16 %v2930
    %v3416 = vunpack.c.h.bf16 %v2930
    %v3417 = vunpack.c.l.bf16 %v2931
    %v3418 = vunpack.c.h.bf16 %v2931
    %v3419 = vunpack.c.l.bf16 %v2932
    %v3420 = vunpack.c.h.bf16 %v2932
    %v3421 = vunpack.c.l.bf16 %v2933
    %v3422 = vunpack.c.h.bf16 %v2933
    %v3423 = vunpack.c.l.bf16 %v2934
    %v3424 = vunpack.c.h.bf16 %v2934
    %v3425 = vunpack.c.l.bf16 %v2935
    %v3426 = vunpack.c.h.bf16 %v2935
    %v3427 = vunpack.c.l.bf16 %v2936
    %v3428 = vunpack.c.h.bf16 %v2936
    %v3429 = vunpack.c.l.bf16 %v2937
    %v3430 = vunpack.c.h.bf16 %v2937
    %v3431 = vunpack.c.l.bf16 %v2938
    %v3432 = vunpack.c.h.bf16 %v2938
    %v3433 = vunpack.c.l.bf16 %v2939
    %v3434 = vunpack.c.h.bf16 %v2939
    %v3435 = vunpack.c.l.bf16 %v2940
    %v3436 = vunpack.c.h.bf16 %v2940
    %v3437 = vunpack.c.l.bf16 %v2941
    %v3438 = vunpack.c.h.bf16 %v2941
    %v3439 = vunpack.c.l.bf16 %v2942
    %v3440 = vunpack.c.h.bf16 %v2942
    %v3441 = vunpack.c.l.bf16 %v2943
    %v3442 = vunpack.c.h.bf16 %v2943
    %v3443 = vunpack.c.l.bf16 %v2944
    %v3444 = vunpack.c.h.bf16 %v2944
    %v3445 = vunpack.c.l.bf16 %v2945
    %v3446 = vunpack.c.h.bf16 %v2945
    %v3447 = vunpack.c.l.bf16 %v2946
    %v3448 = vunpack.c.h.bf16 %v2946
    %v3449 = vunpack.c.l.bf16 %v2947
    %v3450 = vunpack.c.h.bf16 %v2947
    %v3451 = vunpack.c.l.bf16 %v2948
    %v3452 = vunpack.c.h.bf16 %v2948
    %v3453 = vunpack.c.l.bf16 %v2949
    %v3454 = vunpack.c.h.bf16 %v2949
    %v3455 = vunpack.c.l.bf16 %v2950
    %v3456 = vunpack.c.h.bf16 %v2950
    %v3457 = vunpack.c.l.bf16 %v2951
    %v3458 = vunpack.c.h.bf16 %v2951
    %v3459 = vunpack.c.l.bf16 %v2952
    %v3460 = vunpack.c.h.bf16 %v2952
    %v3461 = vunpack.c.l.bf16 %v2953
    %v3462 = vunpack.c.h.bf16 %v2953
    %v3463 = vunpack.c.l.bf16 %v2954
    %v3464 = vunpack.c.h.bf16 %v2954
    %v3465 = vunpack.c.l.bf16 %v2955
    %v3466 = vunpack.c.h.bf16 %v2955
    %v3467 = vunpack.c.l.bf16 %v2956
    %v3468 = vunpack.c.h.bf16 %v2956
    %v3469 = vld [vmem:[%s5] sm:$0xff]
    %v3471 = vlaneseq
    %v3472 = vshrl.u32 %v3471, 7
    %v3473 = vsub.s32 0, %v3472
    %v3474 = vrot.slane %v3469, %v3473
    %v3475 = vlaneseq
    %v3476 = vshrl.u32 %v3475, 7
    %v3477 = vsub.s32 2, %v3476
    %v3478 = vrot.slane %v3469, %v3477
    %v3479 = vlaneseq
    %v3480 = vshrl.u32 %v3479, 7
    %v3481 = vsub.s32 4, %v3480
    %v3482 = vrot.slane %v3469, %v3481
    %v3483 = vlaneseq
    %v3484 = vshrl.u32 %v3483, 7
    %v3485 = vsub.s32 6, %v3484
    %v3486 = vrot.slane %v3469, %v3485
    %v3491 = vlaneseq
    %v3492 = vshrl.u32 %v3491, 7
    %v3493 = vsub.s32 0, %v3492
    %v3494 = vrot.slane %v3474, %v3493
    %v3495 = vlaneseq
    %v3496 = vshrl.u32 %v3495, 7
    %v3497 = vsub.s32 0, %v3496
    %v3498 = vrot.slane %v3478, %v3497
    %v3499 = vlaneseq
    %v3500 = vshrl.u32 %v3499, 7
    %v3501 = vsub.s32 0, %v3500
    %v3502 = vrot.slane %v3482, %v3501
    %v3503 = vlaneseq
    %v3504 = vshrl.u32 %v3503, 7
    %v3505 = vsub.s32 0, %v3504
    %v3506 = vrot.slane %v3486, %v3505
    %3507 = vmatprep.subr.mxu0 %v3018
    %3508 = vmatpush1.msra.mxu0 %v3017
    %3509 = vmatprep.subr.mxu0 %v3014
    %3510 = vmatpush1.msra.mxu0 %v3013
    %3511 = vmatprep.subr.mxu0 %v3010
    %3512 = vmatpush1.msra.mxu0 %v3009
    %3513 = vmatprep.subr.mxu0 %v3006
    %3514 = vmatpush1.msra.mxu0 %v3005
    %3515 = vmatprep.subr.mxu0 %v3002
    %3516 = vmatpush1.msra.mxu0 %v3001
    %3517 = vmatprep.subr.mxu0 %v2998
    %3518 = vmatpush1.msra.mxu0 %v2997
    %3519 = vmatprep.subr.mxu0 %v2994
    %3520 = vmatpush1.msra.mxu0 %v2993
    %3521 = vmatprep.subr.mxu0 %v2990
    %3522 = vmatpush1.msra.mxu0 %v2989
    %3523 = vmatprep.subr.mxu0 %v2986
    %3524 = vmatpush1.msra.mxu0 %v2985
    %3525 = vmatprep.subr.mxu0 %v2982
    %3526 = vmatpush1.msra.mxu0 %v2981
    %3527 = vmatprep.subr.mxu0 %v2978
    %3528 = vmatpush1.msra.mxu0 %v2977
    %3529 = vmatprep.subr.mxu0 %v2974
    %3530 = vmatpush1.msra.mxu0 %v2973
    %3531 = vmatprep.subr.mxu0 %v2970
    %3532 = vmatpush1.msra.mxu0 %v2969
    %3533 = vmatprep.subr.mxu0 %v2966
    %3534 = vmatpush1.msra.mxu0 %v2965
    %3535 = vmatprep.subr.mxu0 %v2962
    %3536 = vmatpush1.msra.mxu0 %v2961
    %3537 = vmatprep.subr.mxu0 %v2958
    %3538 = vmatpush1.msra.mxu0 %v2957
    %3539 = vmatprep.subr.mxu0 %v3082
    %3540 = vmatpush2.msra.mxu0 %v3081
    %3541 = vmatprep.subr.mxu0 %v3078
    %3542 = vmatpush2.msra.mxu0 %v3077
    %3543 = vmatprep.subr.mxu0 %v3074
    %3544 = vmatpush2.msra.mxu0 %v3073
    %3545 = vmatprep.subr.mxu0 %v3070
    %3546 = vmatpush2.msra.mxu0 %v3069
    %3547 = vmatprep.subr.mxu0 %v3066
    %3548 = vmatpush2.msra.mxu0 %v3065
    %3549 = vmatprep.subr.mxu0 %v3062
    %3550 = vmatpush2.msra.mxu0 %v3061
    %3551 = vmatprep.subr.mxu0 %v3058
    %3552 = vmatpush2.msra.mxu0 %v3057
    %3553 = vmatprep.subr.mxu0 %v3054
    %3554 = vmatpush2.msra.mxu0 %v3053
    %3555 = vmatprep.subr.mxu0 %v3050
    %3556 = vmatpush2.msra.mxu0 %v3049
    %3557 = vmatprep.subr.mxu0 %v3046
    %3558 = vmatpush2.msra.mxu0 %v3045
    %3559 = vmatprep.subr.mxu0 %v3042
    %3560 = vmatpush2.msra.mxu0 %v3041
    %3561 = vmatprep.subr.mxu0 %v3038
    %3562 = vmatpush2.msra.mxu0 %v3037
    %3563 = vmatprep.subr.mxu0 %v3034
    %3564 = vmatpush2.msra.mxu0 %v3033
    %3565 = vmatprep.subr.mxu0 %v3030
    %3566 = vmatpush2.msra.mxu0 %v3029
    %3567 = vmatprep.subr.mxu0 %v3026
    %3568 = vmatpush2.msra.mxu0 %v3025
    %3569 = vmatprep.subr.mxu0 %v3022
    %3570 = vmatpush2.msra.mxu0 %v3021
    %3571 = vmatprep.mubr.f32.mxu0 %v1546
    %3572 = vmatmul.mubr.f32.gmra.mxu0 %v1545
    %v3573 = vpop.f32.mrf.mxu0
    %v3574 = vadd.f32 %v3494, %v3573
    %v3575 = vpop.f32.mrf.mxu0
    %v3576 = vadd.f32 %v3498, %v3575
    %3577 = vdwg.mxu0
    %3578 = vmatprep.subr.mxu0 %v3146
    %3579 = vmatpush1.msra.mxu0 %v3145
    %3580 = vmatprep.subr.mxu0 %v3142
    %3581 = vmatpush1.msra.mxu0 %v3141
    %3582 = vmatprep.subr.mxu0 %v3138
    %3583 = vmatpush1.msra.mxu0 %v3137
    %3584 = vmatprep.subr.mxu0 %v3134
    %3585 = vmatpush1.msra.mxu0 %v3133
    %3586 = vmatprep.subr.mxu0 %v3130
    %3587 = vmatpush1.msra.mxu0 %v3129
    %3588 = vmatprep.subr.mxu0 %v3126
    %3589 = vmatpush1.msra.mxu0 %v3125
    %3590 = vmatprep.subr.mxu0 %v3122
    %3591 = vmatpush1.msra.mxu0 %v3121
    %3592 = vmatprep.subr.mxu0 %v3118
    %3593 = vmatpush1.msra.mxu0 %v3117
    %3594 = vmatprep.subr.mxu0 %v3114
    %3595 = vmatpush1.msra.mxu0 %v3113
    %3596 = vmatprep.subr.mxu0 %v3110
    %3597 = vmatpush1.msra.mxu0 %v3109
    %3598 = vmatprep.subr.mxu0 %v3106
    %3599 = vmatpush1.msra.mxu0 %v3105
    %3600 = vmatprep.subr.mxu0 %v3102
    %3601 = vmatpush1.msra.mxu0 %v3101
    %3602 = vmatprep.subr.mxu0 %v3098
    %3603 = vmatpush1.msra.mxu0 %v3097
    %3604 = vmatprep.subr.mxu0 %v3094
    %3605 = vmatpush1.msra.mxu0 %v3093
    %3606 = vmatprep.subr.mxu0 %v3090
    %3607 = vmatpush1.msra.mxu0 %v3089
    %3608 = vmatprep.subr.mxu0 %v3086
    %3609 = vmatpush1.msra.mxu0 %v3085
    %3610 = vmatprep.subr.mxu0 %v3210
    %3611 = vmatpush2.msra.mxu0 %v3209
    %3612 = vmatprep.subr.mxu0 %v3206
    %3613 = vmatpush2.msra.mxu0 %v3205
    %3614 = vmatprep.subr.mxu0 %v3202
    %3615 = vmatpush2.msra.mxu0 %v3201
    %3616 = vmatprep.subr.mxu0 %v3198
    %3617 = vmatpush2.msra.mxu0 %v3197
    %3618 = vmatprep.subr.mxu0 %v3194
    %3619 = vmatpush2.msra.mxu0 %v3193
    %3620 = vmatprep.subr.mxu0 %v3190
    %3621 = vmatpush2.msra.mxu0 %v3189
    %3622 = vmatprep.subr.mxu0 %v3186
    %3623 = vmatpush2.msra.mxu0 %v3185
    %3624 = vmatprep.subr.mxu0 %v3182
    %3625 = vmatpush2.msra.mxu0 %v3181
    %3626 = vmatprep.subr.mxu0 %v3178
    %3627 = vmatpush2.msra.mxu0 %v3177
    %3628 = vmatprep.subr.mxu0 %v3174
    %3629 = vmatpush2.msra.mxu0 %v3173
    %3630 = vmatprep.subr.mxu0 %v3170
    %3631 = vmatpush2.msra.mxu0 %v3169
    %3632 = vmatprep.subr.mxu0 %v3166
    %3633 = vmatpush2.msra.mxu0 %v3165
    %3634 = vmatprep.subr.mxu0 %v3162
    %3635 = vmatpush2.msra.mxu0 %v3161
    %3636 = vmatprep.subr.mxu0 %v3158
    %3637 = vmatpush2.msra.mxu0 %v3157
    %3638 = vmatprep.subr.mxu0 %v3154
    %3639 = vmatpush2.msra.mxu0 %v3153
    %3640 = vmatprep.subr.mxu0 %v3150
    %3641 = vmatpush2.msra.mxu0 %v3149
    %3642 = vmatprep.mubr.f32.mxu0 %v1930
    %3643 = vmatmul.mubr.f32.gmra.mxu0 %v1929
    %v3644 = vpop.f32.mrf.mxu0
    %v3645 = vadd.f32 %v3574, %v3644
    %v3646 = vpop.f32.mrf.mxu0
    %v3647 = vadd.f32 %v3576, %v3646
    %3648 = vdwg.mxu0
    %3649 = vmatprep.subr.mxu0 %v3274
    %3650 = vmatpush1.msra.mxu0 %v3273
    %3651 = vmatprep.subr.mxu0 %v3270
    %3652 = vmatpush1.msra.mxu0 %v3269
    %3653 = vmatprep.subr.mxu0 %v3266
    %3654 = vmatpush1.msra.mxu0 %v3265
    %3655 = vmatprep.subr.mxu0 %v3262
    %3656 = vmatpush1.msra.mxu0 %v3261
    %3657 = vmatprep.subr.mxu0 %v3258
    %3658 = vmatpush1.msra.mxu0 %v3257
    %3659 = vmatprep.subr.mxu0 %v3254
    %3660 = vmatpush1.msra.mxu0 %v3253
    %3661 = vmatprep.subr.mxu0 %v3250
    %3662 = vmatpush1.msra.mxu0 %v3249
    %3663 = vmatprep.subr.mxu0 %v3246
    %3664 = vmatpush1.msra.mxu0 %v3245
    %3665 = vmatprep.subr.mxu0 %v3242
    %3666 = vmatpush1.msra.mxu0 %v3241
    %3667 = vmatprep.subr.mxu0 %v3238
    %3668 = vmatpush1.msra.mxu0 %v3237
    %3669 = vmatprep.subr.mxu0 %v3234
    %3670 = vmatpush1.msra.mxu0 %v3233
    %3671 = vmatprep.subr.mxu0 %v3230
    %3672 = vmatpush1.msra.mxu0 %v3229
    %3673 = vmatprep.subr.mxu0 %v3226
    %3674 = vmatpush1.msra.mxu0 %v3225
    %3675 = vmatprep.subr.mxu0 %v3222
    %3676 = vmatpush1.msra.mxu0 %v3221
    %3677 = vmatprep.subr.mxu0 %v3218
    %3678 = vmatpush1.msra.mxu0 %v3217
    %3679 = vmatprep.subr.mxu0 %v3214
    %3680 = vmatpush1.msra.mxu0 %v3213
    %3681 = vmatprep.subr.mxu0 %v3338
    %3682 = vmatpush2.msra.mxu0 %v3337
    %3683 = vmatprep.subr.mxu0 %v3334
    %3684 = vmatpush2.msra.mxu0 %v3333
    %3685 = vmatprep.subr.mxu0 %v3330
    %3686 = vmatpush2.msra.mxu0 %v3329
    %3687 = vmatprep.subr.mxu0 %v3326
    %3688 = vmatpush2.msra.mxu0 %v3325
    %3689 = vmatprep.subr.mxu0 %v3322
    %3690 = vmatpush2.msra.mxu0 %v3321
    %3691 = vmatprep.subr.mxu0 %v3318
    %3692 = vmatpush2.msra.mxu0 %v3317
    %3693 = vmatprep.subr.mxu0 %v3314
    %3694 = vmatpush2.msra.mxu0 %v3313
    %3695 = vmatprep.subr.mxu0 %v3310
    %3696 = vmatpush2.msra.mxu0 %v3309
    %3697 = vmatprep.subr.mxu0 %v3306
    %3698 = vmatpush2.msra.mxu0 %v3305
    %3699 = vmatprep.subr.mxu0 %v3302
    %3700 = vmatpush2.msra.mxu0 %v3301
    %3701 = vmatprep.subr.mxu0 %v3298
    %3702 = vmatpush2.msra.mxu0 %v3297
    %3703 = vmatprep.subr.mxu0 %v3294
    %3704 = vmatpush2.msra.mxu0 %v3293
    %3705 = vmatprep.subr.mxu0 %v3290
    %3706 = vmatpush2.msra.mxu0 %v3289
    %3707 = vmatprep.subr.mxu0 %v3286
    %3708 = vmatpush2.msra.mxu0 %v3285
    %3709 = vmatprep.subr.mxu0 %v3282
    %3710 = vmatpush2.msra.mxu0 %v3281
    %3711 = vmatprep.subr.mxu0 %v3278
    %3712 = vmatpush2.msra.mxu0 %v3277
    %3713 = vmatprep.mubr.f32.mxu0 %v2314
    %3714 = vmatmul.mubr.f32.gmra.mxu0 %v2313
    %v3715 = vpop.f32.mrf.mxu0
    %v3716 = vadd.f32 %v3645, %v3715
    %v3717 = vpop.f32.mrf.mxu0
    %v3718 = vadd.f32 %v3647, %v3717
    %3719 = vdwg.mxu0
    %3720 = vmatprep.subr.mxu0 %v3402
    %3721 = vmatpush1.msra.mxu0 %v3401
    %3722 = vmatprep.subr.mxu0 %v3398
    %3723 = vmatpush1.msra.mxu0 %v3397
    %3724 = vmatprep.subr.mxu0 %v3394
    %3725 = vmatpush1.msra.mxu0 %v3393
    %3726 = vmatprep.subr.mxu0 %v3390
    %3727 = vmatpush1.msra.mxu0 %v3389
    %3728 = vmatprep.subr.mxu0 %v3386
    %3729 = vmatpush1.msra.mxu0 %v3385
    %3730 = vmatprep.subr.mxu0 %v3382
    %3731 = vmatpush1.msra.mxu0 %v3381
    %3732 = vmatprep.subr.mxu0 %v3378
    %3733 = vmatpush1.msra.mxu0 %v3377
    %3734 = vmatprep.subr.mxu0 %v3374
    %3735 = vmatpush1.msra.mxu0 %v3373
    %3736 = vmatprep.subr.mxu0 %v3370
    %3737 = vmatpush1.msra.mxu0 %v3369
    %3738 = vmatprep.subr.mxu0 %v3366
    %3739 = vmatpush1.msra.mxu0 %v3365
    %3740 = vmatprep.subr.mxu0 %v3362
    %3741 = vmatpush1.msra.mxu0 %v3361
    %3742 = vmatprep.subr.mxu0 %v3358
    %3743 = vmatpush1.msra.mxu0 %v3357
    %3744 = vmatprep.subr.mxu0 %v3354
    %3745 = vmatpush1.msra.mxu0 %v3353
    %3746 = vmatprep.subr.mxu0 %v3350
    %3747 = vmatpush1.msra.mxu0 %v3349
    %3748 = vmatprep.subr.mxu0 %v3346
    %3749 = vmatpush1.msra.mxu0 %v3345
    %3750 = vmatprep.subr.mxu0 %v3342
    %3751 = vmatpush1.msra.mxu0 %v3341
    %3752 = vmatprep.subr.mxu0 %v3466
    %3753 = vmatpush2.msra.mxu0 %v3465
    %3754 = vmatprep.subr.mxu0 %v3462
    %3755 = vmatpush2.msra.mxu0 %v3461
    %3756 = vmatprep.subr.mxu0 %v3458
    %3757 = vmatpush2.msra.mxu0 %v3457
    %3758 = vmatprep.subr.mxu0 %v3454
    %3759 = vmatpush2.msra.mxu0 %v3453
    %3760 = vmatprep.subr.mxu0 %v3450
    %3761 = vmatpush2.msra.mxu0 %v3449
    %3762 = vmatprep.subr.mxu0 %v3446
    %3763 = vmatpush2.msra.mxu0 %v3445
    %3764 = vmatprep.subr.mxu0 %v3442
    %3765 = vmatpush2.msra.mxu0 %v3441
    %3766 = vmatprep.subr.mxu0 %v3438
    %3767 = vmatpush2.msra.mxu0 %v3437
    %3768 = vmatprep.subr.mxu0 %v3434
    %3769 = vmatpush2.msra.mxu0 %v3433
    %3770 = vmatprep.subr.mxu0 %v3430
    %3771 = vmatpush2.msra.mxu0 %v3429
    %3772 = vmatprep.subr.mxu0 %v3426
    %3773 = vmatpush2.msra.mxu0 %v3425
    %3774 = vmatprep.subr.mxu0 %v3422
    %3775 = vmatpush2.msra.mxu0 %v3421
    %3776 = vmatprep.subr.mxu0 %v3418
    %3777 = vmatpush2.msra.mxu0 %v3417
    %3778 = vmatprep.subr.mxu0 %v3414
    %3779 = vmatpush2.msra.mxu0 %v3413
    %3780 = vmatprep.subr.mxu0 %v3410
    %3781 = vmatpush2.msra.mxu0 %v3409
    %3782 = vmatprep.subr.mxu0 %v3406
    %3783 = vmatpush2.msra.mxu0 %v3405
    %3784 = vmatprep.mubr.f32.mxu0 %v2698
    %3785 = vmatmul.mubr.f32.gmra.mxu0 %v2697
    %v3786 = vpop.f32.mrf.mxu0
    %v3787 = vadd.f32 %v3716, %v3786
    %v3788 = vpop.f32.mrf.mxu0
    %v3789 = vadd.f32 %v3718, %v3788
    %3790 = vdwg.mxu0
    %3791 = vmatprep.subr.mxu0 %v3020
    %3792 = vmatpush1.msra.mxu0 %v3019
    %3793 = vmatprep.subr.mxu0 %v3016
    %3794 = vmatpush1.msra.mxu0 %v3015
    %3795 = vmatprep.subr.mxu0 %v3012
    %3796 = vmatpush1.msra.mxu0 %v3011
    %3797 = vmatprep.subr.mxu0 %v3008
    %3798 = vmatpush1.msra.mxu0 %v3007
    %3799 = vmatprep.subr.mxu0 %v3004
    %3800 = vmatpush1.msra.mxu0 %v3003
    %3801 = vmatprep.subr.mxu0 %v3000
    %3802 = vmatpush1.msra.mxu0 %v2999
    %3803 = vmatprep.subr.mxu0 %v2996
    %3804 = vmatpush1.msra.mxu0 %v2995
    %3805 = vmatprep.subr.mxu0 %v2992
    %3806 = vmatpush1.msra.mxu0 %v2991
    %3807 = vmatprep.subr.mxu0 %v2988
    %3808 = vmatpush1.msra.mxu0 %v2987
    %3809 = vmatprep.subr.mxu0 %v2984
    %3810 = vmatpush1.msra.mxu0 %v2983
    %3811 = vmatprep.subr.mxu0 %v2980
    %3812 = vmatpush1.msra.mxu0 %v2979
    %3813 = vmatprep.subr.mxu0 %v2976
    %3814 = vmatpush1.msra.mxu0 %v2975
    %3815 = vmatprep.subr.mxu0 %v2972
    %3816 = vmatpush1.msra.mxu0 %v2971
    %3817 = vmatprep.subr.mxu0 %v2968
    %3818 = vmatpush1.msra.mxu0 %v2967
    %3819 = vmatprep.subr.mxu0 %v2964
    %3820 = vmatpush1.msra.mxu0 %v2963
    %3821 = vmatprep.subr.mxu0 %v2960
    %3822 = vmatpush1.msra.mxu0 %v2959
    %3823 = vmatprep.subr.mxu0 %v3084
    %3824 = vmatpush2.msra.mxu0 %v3083
    %3825 = vmatprep.subr.mxu0 %v3080
    %3826 = vmatpush2.msra.mxu0 %v3079
    %3827 = vmatprep.subr.mxu0 %v3076
    %3828 = vmatpush2.msra.mxu0 %v3075
    %3829 = vmatprep.subr.mxu0 %v3072
    %3830 = vmatpush2.msra.mxu0 %v3071
    %3831 = vmatprep.subr.mxu0 %v3068
    %3832 = vmatpush2.msra.mxu0 %v3067
    %3833 = vmatprep.subr.mxu0 %v3064
    %3834 = vmatpush2.msra.mxu0 %v3063
    %3835 = vmatprep.subr.mxu0 %v3060
    %3836 = vmatpush2.msra.mxu0 %v3059
    %3837 = vmatprep.subr.mxu0 %v3056
    %3838 = vmatpush2.msra.mxu0 %v3055
    %3839 = vmatprep.subr.mxu0 %v3052
    %3840 = vmatpush2.msra.mxu0 %v3051
    %3841 = vmatprep.subr.mxu0 %v3048
    %3842 = vmatpush2.msra.mxu0 %v3047
    %3843 = vmatprep.subr.mxu0 %v3044
    %3844 = vmatpush2.msra.mxu0 %v3043
    %3845 = vmatprep.subr.mxu0 %v3040
    %3846 = vmatpush2.msra.mxu0 %v3039
    %3847 = vmatprep.subr.mxu0 %v3036
    %3848 = vmatpush2.msra.mxu0 %v3035
    %3849 = vmatprep.subr.mxu0 %v3032
    %3850 = vmatpush2.msra.mxu0 %v3031
    %3851 = vmatprep.subr.mxu0 %v3028
    %3852 = vmatpush2.msra.mxu0 %v3027
    %3853 = vmatprep.subr.mxu0 %v3024
    %3854 = vmatpush2.msra.mxu0 %v3023
    %3855 = vmatprep.mubr.f32.mxu0 %v1546
    %3856 = vmatmul.mubr.f32.gmra.mxu0 %v1545
    %v3857 = vpop.f32.mrf.mxu0
    %v3858 = vadd.f32 %v3502, %v3857
    %v3859 = vpop.f32.mrf.mxu0
    %v3860 = vadd.f32 %v3506, %v3859
    %3861 = vdwg.mxu0
    %3862 = vmatprep.subr.mxu0 %v3148
    %3863 = vmatpush1.msra.mxu0 %v3147
    %3864 = vmatprep.subr.mxu0 %v3144
    %3865 = vmatpush1.msra.mxu0 %v3143
    %3866 = vmatprep.subr.mxu0 %v3140
    %3867 = vmatpush1.msra.mxu0 %v3139
    %3868 = vmatprep.subr.mxu0 %v3136
    %3869 = vmatpush1.msra.mxu0 %v3135
    %3870 = vmatprep.subr.mxu0 %v3132
    %3871 = vmatpush1.msra.mxu0 %v3131
    %3872 = vmatprep.subr.mxu0 %v3128
    %3873 = vmatpush1.msra.mxu0 %v3127
    %3874 = vmatprep.subr.mxu0 %v3124
    %3875 = vmatpush1.msra.mxu0 %v3123
    %3876 = vmatprep.subr.mxu0 %v3120
    %3877 = vmatpush1.msra.mxu0 %v3119
    %3878 = vmatprep.subr.mxu0 %v3116
    %3879 = vmatpush1.msra.mxu0 %v3115
    %3880 = vmatprep.subr.mxu0 %v3112
    %3881 = vmatpush1.msra.mxu0 %v3111
    %3882 = vmatprep.subr.mxu0 %v3108
    %3883 = vmatpush1.msra.mxu0 %v3107
    %3884 = vmatprep.subr.mxu0 %v3104
    %3885 = vmatpush1.msra.mxu0 %v3103
    %3886 = vmatprep.subr.mxu0 %v3100
    %3887 = vmatpush1.msra.mxu0 %v3099
    %3888 = vmatprep.subr.mxu0 %v3096
    %3889 = vmatpush1.msra.mxu0 %v3095
    %3890 = vmatprep.subr.mxu0 %v3092
    %3891 = vmatpush1.msra.mxu0 %v3091
    %3892 = vmatprep.subr.mxu0 %v3088
    %3893 = vmatpush1.msra.mxu0 %v3087
    %3894 = vmatprep.subr.mxu0 %v3212
    %3895 = vmatpush2.msra.mxu0 %v3211
    %3896 = vmatprep.subr.mxu0 %v3208
    %3897 = vmatpush2.msra.mxu0 %v3207
    %3898 = vmatprep.subr.mxu0 %v3204
    %3899 = vmatpush2.msra.mxu0 %v3203
    %3900 = vmatprep.subr.mxu0 %v3200
    %3901 = vmatpush2.msra.mxu0 %v3199
    %3902 = vmatprep.subr.mxu0 %v3196
    %3903 = vmatpush2.msra.mxu0 %v3195
    %3904 = vmatprep.subr.mxu0 %v3192
    %3905 = vmatpush2.msra.mxu0 %v3191
    %3906 = vmatprep.subr.mxu0 %v3188
    %3907 = vmatpush2.msra.mxu0 %v3187
    %3908 = vmatprep.subr.mxu0 %v3184
    %3909 = vmatpush2.msra.mxu0 %v3183
    %3910 = vmatprep.subr.mxu0 %v3180
    %3911 = vmatpush2.msra.mxu0 %v3179
    %3912 = vmatprep.subr.mxu0 %v3176
    %3913 = vmatpush2.msra.mxu0 %v3175
    %3914 = vmatprep.subr.mxu0 %v3172
    %3915 = vmatpush2.msra.mxu0 %v3171
    %3916 = vmatprep.subr.mxu0 %v3168
    %3917 = vmatpush2.msra.mxu0 %v3167
    %3918 = vmatprep.subr.mxu0 %v3164
    %3919 = vmatpush2.msra.mxu0 %v3163
    %3920 = vmatprep.subr.mxu0 %v3160
    %3921 = vmatpush2.msra.mxu0 %v3159
    %3922 = vmatprep.subr.mxu0 %v3156
    %3923 = vmatpush2.msra.mxu0 %v3155
    %3924 = vmatprep.subr.mxu0 %v3152
    %3925 = vmatpush2.msra.mxu0 %v3151
    %3926 = vmatprep.mubr.f32.mxu0 %v1930
    %3927 = vmatmul.mubr.f32.gmra.mxu0 %v1929
    %v3928 = vpop.f32.mrf.mxu0
    %v3929 = vadd.f32 %v3858, %v3928
    %v3930 = vpop.f32.mrf.mxu0
    %v3931 = vadd.f32 %v3860, %v3930
    %3932 = vdwg.mxu0
    %3933 = vmatprep.subr.mxu0 %v3276
    %3934 = vmatpush1.msra.mxu0 %v3275
    %3935 = vmatprep.subr.mxu0 %v3272
    %3936 = vmatpush1.msra.mxu0 %v3271
    %3937 = vmatprep.subr.mxu0 %v3268
    %3938 = vmatpush1.msra.mxu0 %v3267
    %3939 = vmatprep.subr.mxu0 %v3264
    %3940 = vmatpush1.msra.mxu0 %v3263
    %3941 = vmatprep.subr.mxu0 %v3260
    %3942 = vmatpush1.msra.mxu0 %v3259
    %3943 = vmatprep.subr.mxu0 %v3256
    %3944 = vmatpush1.msra.mxu0 %v3255
    %3945 = vmatprep.subr.mxu0 %v3252
    %3946 = vmatpush1.msra.mxu0 %v3251
    %3947 = vmatprep.subr.mxu0 %v3248
    %3948 = vmatpush1.msra.mxu0 %v3247
    %3949 = vmatprep.subr.mxu0 %v3244
    %3950 = vmatpush1.msra.mxu0 %v3243
    %3951 = vmatprep.subr.mxu0 %v3240
    %3952 = vmatpush1.msra.mxu0 %v3239
    %3953 = vmatprep.subr.mxu0 %v3236
    %3954 = vmatpush1.msra.mxu0 %v3235
    %3955 = vmatprep.subr.mxu0 %v3232
    %3956 = vmatpush1.msra.mxu0 %v3231
    %3957 = vmatprep.subr.mxu0 %v3228
    %3958 = vmatpush1.msra.mxu0 %v3227
    %3959 = vmatprep.subr.mxu0 %v3224
    %3960 = vmatpush1.msra.mxu0 %v3223
    %3961 = vmatprep.subr.mxu0 %v3220
    %3962 = vmatpush1.msra.mxu0 %v3219
    %3963 = vmatprep.subr.mxu0 %v3216
    %3964 = vmatpush1.msra.mxu0 %v3215
    %3965 = vmatprep.subr.mxu0 %v3340
    %3966 = vmatpush2.msra.mxu0 %v3339
    %3967 = vmatprep.subr.mxu0 %v3336
    %3968 = vmatpush2.msra.mxu0 %v3335
    %3969 = vmatprep.subr.mxu0 %v3332
    %3970 = vmatpush2.msra.mxu0 %v3331
    %3971 = vmatprep.subr.mxu0 %v3328
    %3972 = vmatpush2.msra.mxu0 %v3327
    %3973 = vmatprep.subr.mxu0 %v3324
    %3974 = vmatpush2.msra.mxu0 %v3323
    %3975 = vmatprep.subr.mxu0 %v3320
    %3976 = vmatpush2.msra.mxu0 %v3319
    %3977 = vmatprep.subr.mxu0 %v3316
    %3978 = vmatpush2.msra.mxu0 %v3315
    %3979 = vmatprep.subr.mxu0 %v3312
    %3980 = vmatpush2.msra.mxu0 %v3311
    %3981 = vmatprep.subr.mxu0 %v3308
    %3982 = vmatpush2.msra.mxu0 %v3307
    %3983 = vmatprep.subr.mxu0 %v3304
    %3984 = vmatpush2.msra.mxu0 %v3303
    %3985 = vmatprep.subr.mxu0 %v3300
    %3986 = vmatpush2.msra.mxu0 %v3299
    %3987 = vmatprep.subr.mxu0 %v3296
    %3988 = vmatpush2.msra.mxu0 %v3295
    %3989 = vmatprep.subr.mxu0 %v3292
    %3990 = vmatpush2.msra.mxu0 %v3291
    %3991 = vmatprep.subr.mxu0 %v3288
    %3992 = vmatpush2.msra.mxu0 %v3287
    %3993 = vmatprep.subr.mxu0 %v3284
    %3994 = vmatpush2.msra.mxu0 %v3283
    %3995 = vmatprep.subr.mxu0 %v3280
    %3996 = vmatpush2.msra.mxu0 %v3279
    %3997 = vmatprep.mubr.f32.mxu0 %v2314
    %3998 = vmatmul.mubr.f32.gmra.mxu0 %v2313
    %v3999 = vpop.f32.mrf.mxu0
    %v4000 = vadd.f32 %v3929, %v3999
    %v4001 = vpop.f32.mrf.mxu0
    %v4002 = vadd.f32 %v3931, %v4001
    %4003 = vdwg.mxu0
    %4004 = vmatprep.subr.mxu0 %v3404
    %4005 = vmatpush1.msra.mxu0 %v3403
    %4006 = vmatprep.subr.mxu0 %v3400
    %4007 = vmatpush1.msra.mxu0 %v3399
    %4008 = vmatprep.subr.mxu0 %v3396
    %4009 = vmatpush1.msra.mxu0 %v3395
    %4010 = vmatprep.subr.mxu0 %v3392
    %4011 = vmatpush1.msra.mxu0 %v3391
    %4012 = vmatprep.subr.mxu0 %v3388
    %4013 = vmatpush1.msra.mxu0 %v3387
    %4014 = vmatprep.subr.mxu0 %v3384
    %4015 = vmatpush1.msra.mxu0 %v3383
    %4016 = vmatprep.subr.mxu0 %v3380
    %4017 = vmatpush1.msra.mxu0 %v3379
    %4018 = vmatprep.subr.mxu0 %v3376
    %4019 = vmatpush1.msra.mxu0 %v3375
    %4020 = vmatprep.subr.mxu0 %v3372
    %4021 = vmatpush1.msra.mxu0 %v3371
    %4022 = vmatprep.subr.mxu0 %v3368
    %4023 = vmatpush1.msra.mxu0 %v3367
    %4024 = vmatprep.subr.mxu0 %v3364
    %4025 = vmatpush1.msra.mxu0 %v3363
    %4026 = vmatprep.subr.mxu0 %v3360
    %4027 = vmatpush1.msra.mxu0 %v3359
    %4028 = vmatprep.subr.mxu0 %v3356
    %4029 = vmatpush1.msra.mxu0 %v3355
    %4030 = vmatprep.subr.mxu0 %v3352
    %4031 = vmatpush1.msra.mxu0 %v3351
    %4032 = vmatprep.subr.mxu0 %v3348
    %4033 = vmatpush1.msra.mxu0 %v3347
    %4034 = vmatprep.subr.mxu0 %v3344
    %4035 = vmatpush1.msra.mxu0 %v3343
    %4036 = vmatprep.subr.mxu0 %v3468
    %4037 = vmatpush2.msra.mxu0 %v3467
    %4038 = vmatprep.subr.mxu0 %v3464
    %4039 = vmatpush2.msra.mxu0 %v3463
    %4040 = vmatprep.subr.mxu0 %v3460
    %4041 = vmatpush2.msra.mxu0 %v3459
    %4042 = vmatprep.subr.mxu0 %v3456
    %4043 = vmatpush2.msra.mxu0 %v3455
    %4044 = vmatprep.subr.mxu0 %v3452
    %4045 = vmatpush2.msra.mxu0 %v3451
    %4046 = vmatprep.subr.mxu0 %v3448
    %4047 = vmatpush2.msra.mxu0 %v3447
    %4048 = vmatprep.subr.mxu0 %v3444
    %4049 = vmatpush2.msra.mxu0 %v3443
    %4050 = vmatprep.subr.mxu0 %v3440
    %4051 = vmatpush2.msra.mxu0 %v3439
    %4052 = vmatprep.subr.mxu0 %v3436
    %4053 = vmatpush2.msra.mxu0 %v3435
    %4054 = vmatprep.subr.mxu0 %v3432
    %4055 = vmatpush2.msra.mxu0 %v3431
    %4056 = vmatprep.subr.mxu0 %v3428
    %4057 = vmatpush2.msra.mxu0 %v3427
    %4058 = vmatprep.subr.mxu0 %v3424
    %4059 = vmatpush2.msra.mxu0 %v3423
    %4060 = vmatprep.subr.mxu0 %v3420
    %4061 = vmatpush2.msra.mxu0 %v3419
    %4062 = vmatprep.subr.mxu0 %v3416
    %4063 = vmatpush2.msra.mxu0 %v3415
    %4064 = vmatprep.subr.mxu0 %v3412
    %4065 = vmatpush2.msra.mxu0 %v3411
    %4066 = vmatprep.subr.mxu0 %v3408
    %4067 = vmatpush2.msra.mxu0 %v3407
    %4068 = vmatprep.mubr.f32.mxu0 %v2698
    %4069 = vmatmul.mubr.f32.gmra.mxu0 %v2697
    %v4070 = vpop.f32.mrf.mxu0
    %v4071 = vadd.f32 %v4000, %v4070
    %v4072 = vpop.f32.mrf.mxu0
    %v4073 = vadd.f32 %v4002, %v4072
    %4074 = vdwg.mxu0
    %v4075 = vmul.f32 %v3787, 0.5
    %v4076 = vmul.f32 %v3789, 0.5
    %v4077 = vmul.f32 %v4071, 0.5
    %v4078 = vmul.f32 %v4073, 0.5
    %v4079 = vmul.f32 %v3787, 0.70710677
    %v4080 = vmul.f32 %v3789, 0.70710677
    %v4081 = vmul.f32 %v4071, 0.70710677
    %v4082 = vmul.f32 %v4073, 0.70710677
    %v4083 = verf.f32.pop %v4079
    %v4084 = verf.f32.pop %v4080
    %v4085 = verf.f32.pop %v4081
    %v4086 = verf.f32.pop %v4082
    %v4087 = vadd.f32 %v4083, 1.0
    %v4088 = vadd.f32 %v4084, 1.0
    %v4089 = vadd.f32 %v4085, 1.0
    %v4090 = vadd.f32 %v4086, 1.0
    %v4091 = vmul.f32 %v4075, %v4087
    %v4092 = vmul.f32 %v4076, %v4088
    %v4093 = vmul.f32 %v4077, %v4089
    %v4094 = vmul.f32 %v4078, %v4090
    %v4095 = vlaneseq
    %v4096 = vshrl.u32 %v4095, 7
    %v4097 = vsub.s32 1, %v4096
    %v4098 = vrot.slane %v3469, %v4097
    %v4099 = vlaneseq
    %v4100 = vshrl.u32 %v4099, 7
    %v4101 = vsub.s32 3, %v4100
    %v4102 = vrot.slane %v3469, %v4101
    %v4103 = vlaneseq
    %v4104 = vshrl.u32 %v4103, 7
    %v4105 = vsub.s32 5, %v4104
    %v4106 = vrot.slane %v3469, %v4105
    %v4107 = vlaneseq
    %v4108 = vshrl.u32 %v4107, 7
    %v4109 = vsub.s32 7, %v4108
    %v4110 = vrot.slane %v3469, %v4109
    %v4115 = vlaneseq
    %v4116 = vshrl.u32 %v4115, 7
    %v4117 = vsub.s32 1, %v4116
    %v4118 = vrot.slane %v4098, %v4117
    %v4119 = vlaneseq
    %v4120 = vshrl.u32 %v4119, 7
    %v4121 = vsub.s32 1, %v4120
    %v4122 = vrot.slane %v4102, %v4121
    %v4123 = vlaneseq
    %v4124 = vshrl.u32 %v4123, 7
    %v4125 = vsub.s32 1, %v4124
    %v4126 = vrot.slane %v4106, %v4125
    %v4127 = vlaneseq
    %v4128 = vshrl.u32 %v4127, 7
    %v4129 = vsub.s32 1, %v4128
    %v4130 = vrot.slane %v4110, %v4129
    %v4131 = vmul.f32 %v4091, %v4118
    %v4132 = vmul.f32 %v4092, %v4122
    %v4133 = vmul.f32 %v4093, %v4126
    %v4134 = vmul.f32 %v4094, %v4130
    %vm4135 = vcmask 1041408
    %v4136 = vsel %vm4135, %v4131, 0.0
    %v4137 = vsel %vm4135, %v4132, 0.0
    %v4138 = vadd.f32 %v4136, %v4137
    %v4139 = vsel %vm4135, %v4133, 0.0
    %v4140 = vadd.f32 %v4138, %v4139
    %v4141 = vsel %vm4135, %v4134, 0.0
    %v4142 = vadd.f32 %v4140, %v4141
    %4143 = vadd.xlane.f32.xlu0 %v4142
    %v4144 = vpop.xlane.xlu0 %4143
    %s4145 = sld [smem:[#allocation2]]
    %v4146 = vstv %s4145
    %v4147 = vadd.f32 %v4144, %v4146
    %vm4148 = vcmask 1024
    %4149 = vst.msk [vmem:[%s7] sm:$0x3] %vm4148, %v4147
    // Predicated region
    $region34: #{tpu_custom_call.1} parent=1 // pred_check
      _
    $region35: #{tpu_custom_call.1} parent=1 // pred_check_branch
      %4151 = sbr.rel (0) target = $region37
    $region36: #{tpu_custom_call.1} parent=1 // pred_region
      _
    $region37: #{tpu_custom_call.1} parent=1 // pred_fallthru
      _
    // Predicated region
    $region38: #{tpu_custom_call.1} parent=1 // pred_check
      _
    $region39: #{tpu_custom_call.1} parent=1 // pred_check_branch
      %4153 = sbr.rel (0) target = $region41
    $region40: #{tpu_custom_call.1} parent=1 // pred_region
      _
    $region41: #{tpu_custom_call.1} parent=1 // pred_fallthru
      _
    %4154 = vsyncpa [#allocation4], 1

</llo_original>
